<compile_context>
chip_gen: v7x
topology: tpu7x:2x2x1
jax: 0.10.0
libtpu: 0.0.40
codegen_flags: <defaults>
</compile_context>

<pallas_src>
import jax
import jax.numpy as jnp
from jax.experimental import pallas as pl
from jax.experimental.pallas import tpu as pltpu

EPS = 1e-5


def _round_up(x, m):
    return (x + m - 1) // m * m


# ----------------------------------------------------------------------------
# Fused kernel: one grid step = one batch element (whole image resident in VMEM)
# ----------------------------------------------------------------------------
def _bottleneck_kernel(x_ref, w1_ref, b1_ref, w2_ref, b2_ref, w3_ref, b3_ref,
                       o_ref, p_ref):
    # x_ref : (1, H, W, Cin)      f32   input tile (one image)
    # w1_ref: (Cin, Wp)           bf16  conv1 weight, bn1 scale folded
    # b1_ref: (1, Wp)             f32   bn1 shift
    # w2_ref: (3, 3, Wp, Wp)      bf16  conv2 weight (ky,kx,Cin,Cout), bn2 folded
    # b2_ref: (1, Wp)             f32   bn2 shift
    # w3_ref: (Wp, Cout)          bf16  conv3 weight, bn3 scale folded
    # b3_ref: (1, Cout)           f32   bn3 shift
    # o_ref : (1, H, W, Cout)     f32   output tile
    # p_ref : (H+2, WR, Wp)       bf16  zero-bordered conv1 output scratch,
    #                                   WR = roundup(W+2, 8)  (sublane-dense)
    H, W, Cout = o_ref.shape[1], o_ref.shape[2], o_ref.shape[3]
    Cin = x_ref.shape[3]
    Wp = w1_ref.shape[1]
    WR = p_ref.shape[1]

    # --- conv1 (1x1) + bn1 + relu (scale folded into w1) --------------------
    # (W is a multiple of 8 in this configuration so the reshape is layout-free;
    #  for W=14/7 stages, pad W as well — see module TODOs.)
    x2d = x_ref[0].reshape(H * W, Cin).astype(jnp.bfloat16)
    h1 = jnp.dot(x2d, w1_ref[...], preferred_element_type=jnp.float32)
    h1 = jnp.maximum(h1 + b1_ref[...], 0.0)                      # (H*W, Wp)

    # --- stage into zero-bordered scratch (this IS conv2's padding=1) -------
    # Border-only zeroing, done every grid step (NOT a one-time pl.when init:
    # on megacore each TensorCore has its own scratch instance).  The interior
    # is fully overwritten below, so no full-buffer memset is needed.
    zrow = jnp.zeros((1, WR, Wp), jnp.bfloat16)
    p_ref[0:1, :, :] = zrow                                       # top row
    p_ref[H + 1:H + 2, :, :] = zrow                               # bottom row
    p_ref[1:H + 1, 0:1, :] = jnp.zeros((H, 1, Wp), jnp.bfloat16)  # left col
    p_ref[1:H + 1, W + 1:WR, :] = jnp.zeros((H, WR - W - 1, Wp),
                                            jnp.bfloat16)         # right pad cols
    p_ref[1:H + 1, 1:W + 1, :] = h1.astype(jnp.bfloat16).reshape(H, W, Wp)

    # --- conv2 (3x3, stride=1, pad=1) + bn2 + relu ---------------------------
    # 9 shifted-tap MXU matmuls accumulated into a *value* (no VMEM RMW).
    # Each tap's LHS is a contiguous, slab-aligned slice of p_ref along the
    # leading (row) dim; WR % 8 == 0 makes the 2-D reshape layout-free, so no
    # tap copy is materialized.  The kx shift is realized as an XLU sublane
    # rotation of the f32 result; rows beyond the W interior columns (and the
    # wrapped rows) never feed a used output, so they are harmless.
    acc = None
    for ky in range(3):
        lhs = p_ref[ky:ky + H, :, :].reshape(H * WR, Wp)          # (H*WR, Wp) bf16
        for kx in range(3):
            d = jnp.dot(lhs, w2_ref[ky, kx],
                        preferred_element_type=jnp.float32)       # (H*WR, Wp)
            if kx:
                d = pltpu.roll(d, shift=H * WR - kx, axis=0)
            acc = d if acc is None else acc + d
    h2 = jnp.maximum(acc + b2_ref[...], 0.0)                      # (H*WR, Wp) f32

    # --- conv3 (1x1) + bn3 + residual add + relu -----------------------------
    y = jnp.dot(h2.astype(jnp.bfloat16), w3_ref[...],
                preferred_element_type=jnp.float32)               # (H*WR, Cout)
    y = y.reshape(H, WR, Cout)[:, :W, :]                          # drop pad cols
    identity = x_ref[0]                                           # reload f32 at use
    o_ref[...] = jnp.maximum(y + b3_ref[...] + identity, 0.0).reshape(1, H, W, Cout)


# ----------------------------------------------------------------------------
# Wrappers
# ----------------------------------------------------------------------------
def _bn_scale_shift(gamma, beta, mean, var):
    scale = gamma / jnp.sqrt(var + EPS)
    shift = beta - mean * scale
    return scale, shift


def _vmem_limit_bytes():
    # v5e/v6e: 128 MiB physical VMEM -> allow bigger blocks.  v7x: 64 MiB
    # physical -> stay <= 48 MiB.  Unknown chips get the conservative value.
    try:
        kind = jax.devices()[0].device_kind.lower()
    except Exception:
        kind = ""
    if "v7" in kind:
        return 48 * 1024 * 1024
    if ("v5" in kind) or ("v6" in kind):
        return 64 * 1024 * 1024
    return 48 * 1024 * 1024


def _make_fused(N, H, W, Cin, outp, Wp, WR, single_buffer_weights):
    def const_spec(shape):
        ndim = len(shape)
        idx_map = lambda n: (0,) * ndim
        if single_buffer_weights:
            # Constant-index blocks never change across grid steps: a single
            # buffer halves their VMEM residency (w2 is the big one).
            return pl.BlockSpec(shape, idx_map, pipeline_mode=pl.Buffered(1))
        return pl.BlockSpec(shape, idx_map)

    return pl.pallas_call(
        _bottleneck_kernel,
        out_shape=jax.ShapeDtypeStruct((N, H, W, outp), jnp.float32),
        grid_spec=pltpu.PrefetchScalarGridSpec(
            num_scalar_prefetch=0,
            grid=(N,),
            in_specs=[
                pl.BlockSpec((1, H, W, Cin), lambda n: (n, 0, 0, 0)),
                const_spec((Cin, Wp)),
                const_spec((1, Wp)),
                const_spec((3, 3, Wp, Wp)),
                const_spec((1, Wp)),
                const_spec((Wp, outp)),
                const_spec((1, outp)),
            ],
            out_specs=pl.BlockSpec((1, H, W, outp), lambda n: (n, 0, 0, 0)),
            scratch_shapes=[
                pltpu.VMEM((H + 2, WR, Wp), jnp.bfloat16),   # padded conv1 output
            ],
        ),
        compiler_params=pltpu.CompilerParams(
            dimension_semantics=("parallel",),
            vmem_limit_bytes=_vmem_limit_bytes(),
        ),
    )


def bottleneck_forward_nhwc(x_nhwc, params):
    """Fused bottleneck forward in NHWC. x_nhwc: (N, H, W, Cin) float32."""
    N, H, W, Cin = x_nhwc.shape
    width = params["w1"].shape[0]
    outp = params["w3"].shape[0]
    assert outp == Cin, "identity shortcut requires inplanes == planes*expansion"

    Wp = _round_up(width, 128)          # lane-dense intermediate channel width
    WR = _round_up(W + 2, 8)            # sublane-dense padded row width

    s1, b1 = _bn_scale_shift(params["g1"], params["b1"], params["m1"], params["v1"])
    s2, b2 = _bn_scale_shift(params["g2"], params["b2"], params["m2"], params["v2"])
    s3, b3 = _bn_scale_shift(params["g3"], params["b3"], params["m3"], params["v3"])

    # conv1: (O,I,1,1) -> (I,O), fold bn1 scale into O, pad O->Wp, cast bf16
    w1 = params["w1"][:, :, 0, 0].T * s1[None, :]
    w1 = jnp.pad(w1, ((0, 0), (0, Wp - width))).astype(jnp.bfloat16)
    b1p = jnp.pad(b1, (0, Wp - width))[None, :].astype(jnp.float32)

    # conv2: (O,I,3,3) -> (3,3,I,O), fold bn2 scale into O, pad I,O -> Wp
    w2 = jnp.transpose(params["w2"], (2, 3, 1, 0)) * s2[None, None, None, :]
    w2 = jnp.pad(w2, ((0, 0), (0, 0), (0, Wp - width), (0, Wp - width)))
    w2 = w2.astype(jnp.bfloat16)
    b2p = jnp.pad(b2, (0, Wp - width))[None, :].astype(jnp.float32)

    # conv3: (O,I,1,1) -> (I,O), fold bn3 scale into O, pad I->Wp
    w3 = params["w3"][:, :, 0, 0].T * s3[None, :]
    w3 = jnp.pad(w3, ((0, Wp - width), (0, 0))).astype(jnp.bfloat16)
    b3p = b3[None, :].astype(jnp.float32)

    args = (x_nhwc, w1, b1p, w2, b2p, w3, b3p)
    if hasattr(pl, "Buffered"):
        try:
            return _make_fused(N, H, W, Cin, outp, Wp, WR, True)(*args)
        except Exception:
            pass  # fall back to default double-buffered weight blocks
    return _make_fused(N, H, W, Cin, outp, Wp, WR, False)(*args)


def bottleneck_forward(x_nchw, params):
    """PyTorch-layout (NCHW) entry point; layout conversion done once here."""
    x_nhwc = jnp.transpose(x_nchw, (0, 2, 3, 1))
    out_nhwc = bottleneck_forward_nhwc(x_nhwc, params)
    return jnp.transpose(out_nhwc, (0, 3, 1, 2))


# ----------------------------------------------------------------------------
# Pure-JAX reference (NCHW, f32), used for a correctness check
# ----------------------------------------------------------------------------
def _ref_forward(x, p):
    def conv(x, w, pad):
        return jax.lax.conv_general_dilated(
            x, w, (1, 1), pad, dimension_numbers=("NCHW", "OIHW", "NCHW"))

    def bn(x, g, b, m, v):
        sc = g / jnp.sqrt(v + EPS)
        sh = b - m * sc
        return x * sc[None, :, None, None] + sh[None, :, None, None]

    out = jax.nn.relu(bn(conv(x, p["w1"], "VALID"), p["g1"], p["b1"], p["m1"], p["v1"]))
    out = jax.nn.relu(bn(conv(out, p["w2"], ((1, 1), (1, 1))), p["g2"], p["b2"], p["m2"], p["v2"]))
    out = bn(conv(out, p["w3"], "VALID"), p["g3"], p["b3"], p["m3"], p["v3"])
    return jax.nn.relu(out + x)


# ----------------------------------------------------------------------------
if __name__ == "__main__":
    # Small config: inplanes=16, planes=4 -> width=4, out_channels=16
    # (inplanes == planes*expansion, so identity shortcut is valid, stride=1)
    N, inplanes, H, W = 2, 16, 8, 8
    planes = 4
    width = planes          # base_width=64, groups=1
    outp = planes * 4       # expansion = 4

    key = jax.random.PRNGKey(0)
    ks = jax.random.split(key, 16)

    params = {
        "w1": jax.random.normal(ks[0], (width, inplanes, 1, 1), jnp.float32) * 0.1,
        "g1": jax.random.uniform(ks[1], (width,), jnp.float32, 0.5, 1.5),
        "b1": jax.random.normal(ks[2], (width,), jnp.float32) * 0.1,
        "m1": jax.random.normal(ks[3], (width,), jnp.float32) * 0.1,
        "v1": jax.random.uniform(ks[4], (width,), jnp.float32, 0.5, 1.5),
        "w2": jax.random.normal(ks[5], (width, width, 3, 3), jnp.float32) * 0.1,
        "g2": jax.random.uniform(ks[6], (width,), jnp.float32, 0.5, 1.5),
        "b2": jax.random.normal(ks[7], (width,), jnp.float32) * 0.1,
        "m2": jax.random.normal(ks[8], (width,), jnp.float32) * 0.1,
        "v2": jax.random.uniform(ks[9], (width,), jnp.float32, 0.5, 1.5),
        "w3": jax.random.normal(ks[10], (outp, width, 1, 1), jnp.float32) * 0.1,
        "g3": jax.random.uniform(ks[11], (outp,), jnp.float32, 0.5, 1.5),
        "b3": jax.random.normal(ks[12], (outp,), jnp.float32) * 0.1,
        "m3": jax.random.normal(ks[13], (outp,), jnp.float32) * 0.1,
        "v3": jax.random.uniform(ks[14], (outp,), jnp.float32, 0.5, 1.5),
    }

    x = jax.random.normal(ks[15], (N, inplanes, H, W), jnp.float32)

    out = bottleneck_forward(x, params)
    out = jax.block_until_ready(out)

    ref = jax.block_until_ready(_ref_forward(x, params))
    assert out.shape == ref.shape == (N, inplanes, H, W)
    err = float(jnp.max(jnp.abs(out - ref)))
    # bf16 matmul inputs with f32 accumulation -> small rounding vs f32 reference
    assert err < 2e-2, f"mismatch vs JAX reference: max abs err {err}"

    print("KERNEL_OK")
</pallas_src>

<mosaic_0001>
module attributes {stable_mosaic.version = 11 : i64} {
  func.func @_bottleneck_kernel(%arg0: i32, %arg1: memref<1x8x8x16xf32, #tpu.memory_space<vmem>>, %arg2: memref<16x128xbf16, #tpu.memory_space<vmem>>, %arg3: memref<1x128xf32, #tpu.memory_space<vmem>>, %arg4: memref<3x3x128x128xbf16, #tpu.memory_space<vmem>>, %arg5: memref<1x128xf32, #tpu.memory_space<vmem>>, %arg6: memref<128x16xbf16, #tpu.memory_space<vmem>>, %arg7: memref<1x16xf32, #tpu.memory_space<vmem>>, %arg8: memref<1x8x8x16xf32, #tpu.memory_space<vmem>>, %arg9: memref<10x16x128xbf16, #tpu.memory_space<vmem>>) attributes {dimension_semantics = [#tpu.dimension_semantics<parallel>], iteration_bounds = array<i64: 2>, scalar_prefetch = 0 : i64, scratch_operands = 1 : i64, tpu.core_type = #tpu.core_type<tc>, window_params = [{transform_indices = @transform_0, window_bounds = array<i64: 1, 8, 8, 16>}, {pipeline_mode = #tpu.pipeline_mode<synchronous>, transform_indices = @transform_1, window_bounds = array<i64: 16, 128>}, {pipeline_mode = #tpu.pipeline_mode<synchronous>, transform_indices = @transform_2, window_bounds = array<i64: 1, 128>}, {pipeline_mode = #tpu.pipeline_mode<synchronous>, transform_indices = @transform_3, window_bounds = array<i64: 3, 3, 128, 128>}, {pipeline_mode = #tpu.pipeline_mode<synchronous>, transform_indices = @transform_4, window_bounds = array<i64: 1, 128>}, {pipeline_mode = #tpu.pipeline_mode<synchronous>, transform_indices = @transform_5, window_bounds = array<i64: 128, 16>}, {pipeline_mode = #tpu.pipeline_mode<synchronous>, transform_indices = @transform_6, window_bounds = array<i64: 1, 16>}, {transform_indices = @transform_7, window_bounds = array<i64: 1, 8, 8, 16>}]} {
    %c0 = arith.constant 0 : index
    %c0_0 = arith.constant 0 : index
    %c0_1 = arith.constant 0 : index
    %c0_2 = arith.constant 0 : index
    %0 = vector.load %arg1[%c0, %c0_0, %c0_1, %c0_2] : memref<1x8x8x16xf32, #tpu.memory_space<vmem>>, vector<1x8x8x16xf32>
    %1 = vector.shape_cast %0 : vector<1x8x8x16xf32> to vector<8x8x16xf32>
    %2 = vector.shape_cast %1 : vector<8x8x16xf32> to vector<64x16xf32>
    %3 = arith.truncf %2 : vector<64x16xf32> to vector<64x16xbf16>
    %c0_3 = arith.constant 0 : index
    %c0_4 = arith.constant 0 : index
    %4 = vector.load %arg2[%c0_3, %c0_4] : memref<16x128xbf16, #tpu.memory_space<vmem>>, vector<16x128xbf16>
    %cst = arith.constant dense<0.000000e+00> : vector<64x128xf32>
    %5 = tpu.matmul %3, %4, %cst {dimension_numbers = #tpu.dot_dimension_numbers<[1], [0], [0], [1], [0, 0, 1, 1], [], []>} : vector<64x16xbf16>, vector<16x128xbf16>, vector<64x128xf32> -> vector<64x128xf32>
    %c0_5 = arith.constant 0 : index
    %c0_6 = arith.constant 0 : index
    %6 = vector.load %arg3[%c0_5, %c0_6] : memref<1x128xf32, #tpu.memory_space<vmem>>, vector<1x128xf32>
    %7 = vector.broadcast %6 : vector<1x128xf32> to vector<64x128xf32>
    %8 = arith.addf %5, %7 : vector<64x128xf32>
    %cst_7 = arith.constant 0.000000e+00 : f32
    %9 = vector.broadcast %cst_7 : f32 to vector<64x128xf32>
    %10 = arith.maximumf %8, %9 : vector<64x128xf32>
    %cst_8 = arith.constant 0.000000e+00 : bf16
    %11 = vector.broadcast %cst_8 : bf16 to vector<1x16x128xbf16>
    %c0_9 = arith.constant 0 : index
    %c0_10 = arith.constant 0 : index
    %c0_11 = arith.constant 0 : index
    %12 = vector.load %arg9[%c0_9, %c0_10, %c0_11] : memref<10x16x128xbf16, #tpu.memory_space<vmem>>, vector<1x16x128xbf16>
    tpu.vector_store %arg9[%c0_9, %c0_10, %c0_11], %11 {strides = array<i32>} : memref<10x16x128xbf16, #tpu.memory_space<vmem>>, vector<1x16x128xbf16>,
    %c9 = arith.constant 9 : index
    %c0_12 = arith.constant 0 : index
    %c0_13 = arith.constant 0 : index
    %13 = vector.load %arg9[%c9, %c0_12, %c0_13] : memref<10x16x128xbf16, #tpu.memory_space<vmem>>, vector<1x16x128xbf16>
    tpu.vector_store %arg9[%c9, %c0_12, %c0_13], %11 {strides = array<i32>} : memref<10x16x128xbf16, #tpu.memory_space<vmem>>, vector<1x16x128xbf16>,
    %cst_14 = arith.constant 0.000000e+00 : bf16
    %14 = vector.broadcast %cst_14 : bf16 to vector<8x1x128xbf16>
    %c1 = arith.constant 1 : index
    %c0_15 = arith.constant 0 : index
    %c0_16 = arith.constant 0 : index
    %15 = vector.load %arg9[%c1, %c0_15, %c0_16] : memref<10x16x128xbf16, #tpu.memory_space<vmem>>, vector<8x1x128xbf16>
    tpu.vector_store %arg9[%c1, %c0_15, %c0_16], %14 {strides = array<i32>} : memref<10x16x128xbf16, #tpu.memory_space<vmem>>, vector<8x1x128xbf16>,
    %cst_17 = arith.constant 0.000000e+00 : bf16
    %16 = vector.broadcast %cst_17 : bf16 to vector<8x7x128xbf16>
    %c1_18 = arith.constant 1 : index
    %c9_19 = arith.constant 9 : index
    %c0_20 = arith.constant 0 : index
    %17 = vector.load %arg9[%c1_18, %c9_19, %c0_20] : memref<10x16x128xbf16, #tpu.memory_space<vmem>>, vector<8x7x128xbf16>
    tpu.vector_store %arg9[%c1_18, %c9_19, %c0_20], %16 {strides = array<i32>} : memref<10x16x128xbf16, #tpu.memory_space<vmem>>, vector<8x7x128xbf16>,
    %18 = arith.truncf %10 : vector<64x128xf32> to vector<64x128xbf16>
    %19 = vector.shape_cast %18 : vector<64x128xbf16> to vector<8x8x128xbf16>
    %c1_21 = arith.constant 1 : index
    %c1_22 = arith.constant 1 : index
    %c0_23 = arith.constant 0 : index
    %20 = vector.load %arg9[%c1_21, %c1_22, %c0_23] : memref<10x16x128xbf16, #tpu.memory_space<vmem>>, vector<8x8x128xbf16>
    tpu.vector_store %arg9[%c1_21, %c1_22, %c0_23], %19 {strides = array<i32>} : memref<10x16x128xbf16, #tpu.memory_space<vmem>>, vector<8x8x128xbf16>,
    %c0_24 = arith.constant 0 : index
    %c0_25 = arith.constant 0 : index
    %c0_26 = arith.constant 0 : index
    %21 = vector.load %arg9[%c0_24, %c0_25, %c0_26] : memref<10x16x128xbf16, #tpu.memory_space<vmem>>, vector<8x16x128xbf16>
    %22 = vector.shape_cast %21 : vector<8x16x128xbf16> to vector<128x128xbf16>
    %c0_27 = arith.constant 0 : index
    %c0_28 = arith.constant 0 : index
    %c0_29 = arith.constant 0 : index
    %c0_30 = arith.constant 0 : index
    %23 = vector.load %arg4[%c0_27, %c0_28, %c0_29, %c0_30] : memref<3x3x128x128xbf16, #tpu.memory_space<vmem>>, vector<1x1x128x128xbf16>
    %24 = vector.shape_cast %23 : vector<1x1x128x128xbf16> to vector<128x128xbf16>
    %cst_31 = arith.constant dense<0.000000e+00> : vector<128x128xf32>
    %25 = tpu.matmul %22, %24, %cst_31 {dimension_numbers = #tpu.dot_dimension_numbers<[1], [0], [0], [1], [0, 0, 1, 1], [], []>} : vector<128x128xbf16>, vector<128x128xbf16>, vector<128x128xf32> -> vector<128x128xf32>
    %c0_32 = arith.constant 0 : index
    %c1_33 = arith.constant 1 : index
    %c0_34 = arith.constant 0 : index
    %c0_35 = arith.constant 0 : index
    %26 = vector.load %arg4[%c0_32, %c1_33, %c0_34, %c0_35] : memref<3x3x128x128xbf16, #tpu.memory_space<vmem>>, vector<1x1x128x128xbf16>
    %27 = vector.shape_cast %26 : vector<1x1x128x128xbf16> to vector<128x128xbf16>
    %cst_36 = arith.constant dense<0.000000e+00> : vector<128x128xf32>
    %28 = tpu.matmul %22, %27, %cst_36 {dimension_numbers = #tpu.dot_dimension_numbers<[1], [0], [0], [1], [0, 0, 1, 1], [], []>} : vector<128x128xbf16>, vector<128x128xbf16>, vector<128x128xf32> -> vector<128x128xf32>
    %c127_i32 = arith.constant 127 : i32
    %29 = tpu.dynamic_rotate %28 by %c127_i32 dim 0 : vector<128x128xf32>, i32 -> vector<128x128xf32>
    %30 = arith.addf %25, %29 : vector<128x128xf32>
    %c0_37 = arith.constant 0 : index
    %c2 = arith.constant 2 : index
    %c0_38 = arith.constant 0 : index
    %c0_39 = arith.constant 0 : index
    %31 = vector.load %arg4[%c0_37, %c2, %c0_38, %c0_39] : memref<3x3x128x128xbf16, #tpu.memory_space<vmem>>, vector<1x1x128x128xbf16>
    %32 = vector.shape_cast %31 : vector<1x1x128x128xbf16> to vector<128x128xbf16>
    %cst_40 = arith.constant dense<0.000000e+00> : vector<128x128xf32>
    %33 = tpu.matmul %22, %32, %cst_40 {dimension_numbers = #tpu.dot_dimension_numbers<[1], [0], [0], [1], [0, 0, 1, 1], [], []>} : vector<128x128xbf16>, vector<128x128xbf16>, vector<128x128xf32> -> vector<128x128xf32>
    %c126_i32 = arith.constant 126 : i32
    %34 = tpu.dynamic_rotate %33 by %c126_i32 dim 0 : vector<128x128xf32>, i32 -> vector<128x128xf32>
    %35 = arith.addf %30, %34 : vector<128x128xf32>
    %c1_41 = arith.constant 1 : index
    %c0_42 = arith.constant 0 : index
    %c0_43 = arith.constant 0 : index
    %36 = vector.load %arg9[%c1_41, %c0_42, %c0_43] : memref<10x16x128xbf16, #tpu.memory_space<vmem>>, vector<8x16x128xbf16>
    %37 = vector.shape_cast %36 : vector<8x16x128xbf16> to vector<128x128xbf16>
    %c1_44 = arith.constant 1 : index
    %c0_45 = arith.constant 0 : index
    %c0_46 = arith.constant 0 : index
    %c0_47 = arith.constant 0 : index
    %38 = vector.load %arg4[%c1_44, %c0_45, %c0_46, %c0_47] : memref<3x3x128x128xbf16, #tpu.memory_space<vmem>>, vector<1x1x128x128xbf16>
    %39 = vector.shape_cast %38 : vector<1x1x128x128xbf16> to vector<128x128xbf16>
    %cst_48 = arith.constant dense<0.000000e+00> : vector<128x128xf32>
    %40 = tpu.matmul %37, %39, %cst_48 {dimension_numbers = #tpu.dot_dimension_numbers<[1], [0], [0], [1], [0, 0, 1, 1], [], []>} : vector<128x128xbf16>, vector<128x128xbf16>, vector<128x128xf32> -> vector<128x128xf32>
    %41 = arith.addf %35, %40 : vector<128x128xf32>
    %c1_49 = arith.constant 1 : index
    %c1_50 = arith.constant 1 : index
    %c0_51 = arith.constant 0 : index
    %c0_52 = arith.constant 0 : index
    %42 = vector.load %arg4[%c1_49, %c1_50, %c0_51, %c0_52] : memref<3x3x128x128xbf16, #tpu.memory_space<vmem>>, vector<1x1x128x128xbf16>
    %43 = vector.shape_cast %42 : vector<1x1x128x128xbf16> to vector<128x128xbf16>
    %cst_53 = arith.constant dense<0.000000e+00> : vector<128x128xf32>
    %44 = tpu.matmul %37, %43, %cst_53 {dimension_numbers = #tpu.dot_dimension_numbers<[1], [0], [0], [1], [0, 0, 1, 1], [], []>} : vector<128x128xbf16>, vector<128x128xbf16>, vector<128x128xf32> -> vector<128x128xf32>
    %c127_i32_54 = arith.constant 127 : i32
    %45 = tpu.dynamic_rotate %44 by %c127_i32_54 dim 0 : vector<128x128xf32>, i32 -> vector<128x128xf32>
    %46 = arith.addf %41, %45 : vector<128x128xf32>
    %c1_55 = arith.constant 1 : index
    %c2_56 = arith.constant 2 : index
    %c0_57 = arith.constant 0 : index
    %c0_58 = arith.constant 0 : index
    %47 = vector.load %arg4[%c1_55, %c2_56, %c0_57, %c0_58] : memref<3x3x128x128xbf16, #tpu.memory_space<vmem>>, vector<1x1x128x128xbf16>
    %48 = vector.shape_cast %47 : vector<1x1x128x128xbf16> to vector<128x128xbf16>
    %cst_59 = arith.constant dense<0.000000e+00> : vector<128x128xf32>
    %49 = tpu.matmul %37, %48, %cst_59 {dimension_numbers = #tpu.dot_dimension_numbers<[1], [0], [0], [1], [0, 0, 1, 1], [], []>} : vector<128x128xbf16>, vector<128x128xbf16>, vector<128x128xf32> -> vector<128x128xf32>
    %c126_i32_60 = arith.constant 126 : i32
    %50 = tpu.dynamic_rotate %49 by %c126_i32_60 dim 0 : vector<128x128xf32>, i32 -> vector<128x128xf32>
    %51 = arith.addf %46, %50 : vector<128x128xf32>
    %c2_61 = arith.constant 2 : index
    %c0_62 = arith.constant 0 : index
    %c0_63 = arith.constant 0 : index
    %52 = vector.load %arg9[%c2_61, %c0_62, %c0_63] : memref<10x16x128xbf16, #tpu.memory_space<vmem>>, vector<8x16x128xbf16>
    %53 = vector.shape_cast %52 : vector<8x16x128xbf16> to vector<128x128xbf16>
    %c2_64 = arith.constant 2 : index
    %c0_65 = arith.constant 0 : index
    %c0_66 = arith.constant 0 : index
    %c0_67 = arith.constant 0 : index
    %54 = vector.load %arg4[%c2_64, %c0_65, %c0_66, %c0_67] : memref<3x3x128x128xbf16, #tpu.memory_space<vmem>>, vector<1x1x128x128xbf16>
    %55 = vector.shape_cast %54 : vector<1x1x128x128xbf16> to vector<128x128xbf16>
    %cst_68 = arith.constant dense<0.000000e+00> : vector<128x128xf32>
    %56 = tpu.matmul %53, %55, %cst_68 {dimension_numbers = #tpu.dot_dimension_numbers<[1], [0], [0], [1], [0, 0, 1, 1], [], []>} : vector<128x128xbf16>, vector<128x128xbf16>, vector<128x128xf32> -> vector<128x128xf32>
    %57 = arith.addf %51, %56 : vector<128x128xf32>
    %c2_69 = arith.constant 2 : index
    %c1_70 = arith.constant 1 : index
    %c0_71 = arith.constant 0 : index
    %c0_72 = arith.constant 0 : index
    %58 = vector.load %arg4[%c2_69, %c1_70, %c0_71, %c0_72] : memref<3x3x128x128xbf16, #tpu.memory_space<vmem>>, vector<1x1x128x128xbf16>
    %59 = vector.shape_cast %58 : vector<1x1x128x128xbf16> to vector<128x128xbf16>
    %cst_73 = arith.constant dense<0.000000e+00> : vector<128x128xf32>
    %60 = tpu.matmul %53, %59, %cst_73 {dimension_numbers = #tpu.dot_dimension_numbers<[1], [0], [0], [1], [0, 0, 1, 1], [], []>} : vector<128x128xbf16>, vector<128x128xbf16>, vector<128x128xf32> -> vector<128x128xf32>
    %c127_i32_74 = arith.constant 127 : i32
    %61 = tpu.dynamic_rotate %60 by %c127_i32_74 dim 0 : vector<128x128xf32>, i32 -> vector<128x128xf32>
    %62 = arith.addf %57, %61 : vector<128x128xf32>
    %c2_75 = arith.constant 2 : index
    %c2_76 = arith.constant 2 : index
    %c0_77 = arith.constant 0 : index
    %c0_78 = arith.constant 0 : index
    %63 = vector.load %arg4[%c2_75, %c2_76, %c0_77, %c0_78] : memref<3x3x128x128xbf16, #tpu.memory_space<vmem>>, vector<1x1x128x128xbf16>
    %64 = vector.shape_cast %63 : vector<1x1x128x128xbf16> to vector<128x128xbf16>
    %cst_79 = arith.constant dense<0.000000e+00> : vector<128x128xf32>
    %65 = tpu.matmul %53, %64, %cst_79 {dimension_numbers = #tpu.dot_dimension_numbers<[1], [0], [0], [1], [0, 0, 1, 1], [], []>} : vector<128x128xbf16>, vector<128x128xbf16>, vector<128x128xf32> -> vector<128x128xf32>
    %c126_i32_80 = arith.constant 126 : i32
    %66 = tpu.dynamic_rotate %65 by %c126_i32_80 dim 0 : vector<128x128xf32>, i32 -> vector<128x128xf32>
    %67 = arith.addf %62, %66 : vector<128x128xf32>
    %c0_81 = arith.constant 0 : index
    %c0_82 = arith.constant 0 : index
    %68 = vector.load %arg5[%c0_81, %c0_82] : memref<1x128xf32, #tpu.memory_space<vmem>>, vector<1x128xf32>
    %69 = vector.broadcast %68 : vector<1x128xf32> to vector<128x128xf32>
    %70 = arith.addf %67, %69 : vector<128x128xf32>
    %cst_83 = arith.constant 0.000000e+00 : f32
    %71 = vector.broadcast %cst_83 : f32 to vector<128x128xf32>
    %72 = arith.maximumf %70, %71 : vector<128x128xf32>
    %73 = arith.truncf %72 : vector<128x128xf32> to vector<128x128xbf16>
    %c0_84 = arith.constant 0 : index
    %c0_85 = arith.constant 0 : index
    %74 = vector.load %arg6[%c0_84, %c0_85] : memref<128x16xbf16, #tpu.memory_space<vmem>>, vector<128x16xbf16>
    %cst_86 = arith.constant dense<0.000000e+00> : vector<128x16xf32>
    %75 = tpu.matmul %73, %74, %cst_86 {dimension_numbers = #tpu.dot_dimension_numbers<[1], [0], [0], [1], [0, 0, 1, 1], [], []>} : vector<128x128xbf16>, vector<128x16xbf16>, vector<128x16xf32> -> vector<128x16xf32>
    %76 = vector.shape_cast %75 : vector<128x16xf32> to vector<8x16x16xf32>
    %77 = vector.extract_strided_slice %76 {offsets = [0, 0, 0], sizes = [8, 8, 16], strides = [1, 1, 1]} : vector<8x16x16xf32> to vector<8x8x16xf32>
    %c0_87 = arith.constant 0 : index
    %c0_88 = arith.constant 0 : index
    %c0_89 = arith.constant 0 : index
    %c0_90 = arith.constant 0 : index
    %78 = vector.load %arg1[%c0_87, %c0_88, %c0_89, %c0_90] : memref<1x8x8x16xf32, #tpu.memory_space<vmem>>, vector<1x8x8x16xf32>
    %79 = vector.shape_cast %78 : vector<1x8x8x16xf32> to vector<8x8x16xf32>
    %c0_91 = arith.constant 0 : index
    %c0_92 = arith.constant 0 : index
    %80 = vector.load %arg7[%c0_91, %c0_92] : memref<1x16xf32, #tpu.memory_space<vmem>>, vector<1x16xf32>
    %81 = vector.shape_cast %80 : vector<1x16xf32> to vector<1x1x16xf32>
    %82 = vector.broadcast %81 : vector<1x1x16xf32> to vector<8x8x16xf32>
    %83 = arith.addf %77, %82 : vector<8x8x16xf32>
    %84 = arith.addf %83, %79 : vector<8x8x16xf32>
    %cst_93 = arith.constant 0.000000e+00 : f32
    %85 = vector.broadcast %cst_93 : f32 to vector<8x8x16xf32>
    %86 = arith.maximumf %84, %85 : vector<8x8x16xf32>
    %87 = vector.shape_cast %86 : vector<8x8x16xf32> to vector<1x8x8x16xf32>
    %c0_94 = arith.constant 0 : index
    %c0_95 = arith.constant 0 : index
    %c0_96 = arith.constant 0 : index
    %c0_97 = arith.constant 0 : index
    %88 = vector.load %arg8[%c0_94, %c0_95, %c0_96, %c0_97] : memref<1x8x8x16xf32, #tpu.memory_space<vmem>>, vector<1x8x8x16xf32>
    tpu.vector_store %arg8[%c0_94, %c0_95, %c0_96, %c0_97], %87 {strides = array<i32>} : memref<1x8x8x16xf32, #tpu.memory_space<vmem>>, vector<1x8x8x16xf32>,
    return
  }
  func.func @transform_0(%arg0: i32) -> (i32, i32, i32, i32) {
    %c0_i32 = arith.constant 0 : i32
    %c0_i32_0 = arith.constant 0 : i32
    %c0_i32_1 = arith.constant 0 : i32
    %c0_i32_2 = arith.constant 0 : i32
    return %arg0, %c0_i32, %c0_i32_0, %c0_i32_1 : i32, i32, i32, i32
  }
  func.func @transform_1(%arg0: i32) -> (i32, i32) {
    %c0_i32 = arith.constant 0 : i32
    %c0_i32_0 = arith.constant 0 : i32
    %c0_i32_1 = arith.constant 0 : i32
    return %c0_i32, %c0_i32_0 : i32, i32
  }
  func.func @transform_2(%arg0: i32) -> (i32, i32) {
    %c0_i32 = arith.constant 0 : i32
    %c0_i32_0 = arith.constant 0 : i32
    %c0_i32_1 = arith.constant 0 : i32
    return %c0_i32, %c0_i32_0 : i32, i32
  }
  func.func @transform_3(%arg0: i32) -> (i32, i32, i32, i32) {
    %c0_i32 = arith.constant 0 : i32
    %c0_i32_0 = arith.constant 0 : i32
    %c0_i32_1 = arith.constant 0 : i32
    %c0_i32_2 = arith.constant 0 : i32
    %c0_i32_3 = arith.constant 0 : i32
    return %c0_i32, %c0_i32_0, %c0_i32_1, %c0_i32_2 : i32, i32, i32, i32
  }
  func.func @transform_4(%arg0: i32) -> (i32, i32) {
    %c0_i32 = arith.constant 0 : i32
    %c0_i32_0 = arith.constant 0 : i32
    %c0_i32_1 = arith.constant 0 : i32
    return %c0_i32, %c0_i32_0 : i32, i32
  }
  func.func @transform_5(%arg0: i32) -> (i32, i32) {
    %c0_i32 = arith.constant 0 : i32
    %c0_i32_0 = arith.constant 0 : i32
    %c0_i32_1 = arith.constant 0 : i32
    return %c0_i32, %c0_i32_0 : i32, i32
  }
  func.func @transform_6(%arg0: i32) -> (i32, i32) {
    %c0_i32 = arith.constant 0 : i32
    %c0_i32_0 = arith.constant 0 : i32
    %c0_i32_1 = arith.constant 0 : i32
    return %c0_i32, %c0_i32_0 : i32, i32
  }
  func.func @transform_7(%arg0: i32) -> (i32, i32, i32, i32) {
    %c0_i32 = arith.constant 0 : i32
    %c0_i32_0 = arith.constant 0 : i32
    %c0_i32_1 = arith.constant 0 : i32
    %c0_i32_2 = arith.constant 0 : i32
    return %arg0, %c0_i32, %c0_i32_0, %c0_i32_1 : i32, i32, i32, i32
  }
}

module attributes {stable_mosaic.version = 11 : i64} {
  func.func @_bottleneck_kernel(%arg0: i32, %arg1: memref<1x8x8x16xf32, #tpu.memory_space<vmem>>, %arg2: memref<16x128xbf16, #tpu.memory_space<vmem>>, %arg3: memref<1x128xf32, #tpu.memory_space<vmem>>, %arg4: memref<3x3x128x128xbf16, #tpu.memory_space<vmem>>, %arg5: memref<1x128xf32, #tpu.memory_space<vmem>>, %arg6: memref<128x16xbf16, #tpu.memory_space<vmem>>, %arg7: memref<1x16xf32, #tpu.memory_space<vmem>>, %arg8: memref<1x8x8x16xf32, #tpu.memory_space<vmem>>, %arg9: memref<10x16x128xbf16, #tpu.memory_space<vmem>>) attributes {dimension_semantics = [#tpu.dimension_semantics<parallel>], iteration_bounds = array<i64: 2>, scalar_prefetch = 0 : i64, scratch_operands = 1 : i64, tpu.core_type = #tpu.core_type<tc>, window_params = [{transform_indices = @transform_0, window_bounds = array<i64: 1, 8, 8, 16>}, {pipeline_mode = #tpu.pipeline_mode<synchronous>, transform_indices = @transform_1, window_bounds = array<i64: 16, 128>}, {pipeline_mode = #tpu.pipeline_mode<synchronous>, transform_indices = @transform_2, window_bounds = array<i64: 1, 128>}, {pipeline_mode = #tpu.pipeline_mode<synchronous>, transform_indices = @transform_3, window_bounds = array<i64: 3, 3, 128, 128>}, {pipeline_mode = #tpu.pipeline_mode<synchronous>, transform_indices = @transform_4, window_bounds = array<i64: 1, 128>}, {pipeline_mode = #tpu.pipeline_mode<synchronous>, transform_indices = @transform_5, window_bounds = array<i64: 128, 16>}, {pipeline_mode = #tpu.pipeline_mode<synchronous>, transform_indices = @transform_6, window_bounds = array<i64: 1, 16>}, {transform_indices = @transform_7, window_bounds = array<i64: 1, 8, 8, 16>}]} {
    %c0 = arith.constant 0 : index
    %c0_0 = arith.constant 0 : index
    %c0_1 = arith.constant 0 : index
    %c0_2 = arith.constant 0 : index
    %0 = vector.load %arg1[%c0, %c0_0, %c0_1, %c0_2] : memref<1x8x8x16xf32, #tpu.memory_space<vmem>>, vector<1x8x8x16xf32>
    %1 = vector.shape_cast %0 : vector<1x8x8x16xf32> to vector<8x8x16xf32>
    %2 = vector.shape_cast %1 : vector<8x8x16xf32> to vector<64x16xf32>
    %3 = arith.truncf %2 : vector<64x16xf32> to vector<64x16xbf16>
    %c0_3 = arith.constant 0 : index
    %c0_4 = arith.constant 0 : index
    %4 = vector.load %arg2[%c0_3, %c0_4] : memref<16x128xbf16, #tpu.memory_space<vmem>>, vector<16x128xbf16>
    %cst = arith.constant dense<0.000000e+00> : vector<64x128xf32>
    %5 = tpu.matmul %3, %4, %cst {dimension_numbers = #tpu.dot_dimension_numbers<[1], [0], [0], [1], [0, 0, 1, 1], [], []>} : vector<64x16xbf16>, vector<16x128xbf16>, vector<64x128xf32> -> vector<64x128xf32>
    %c0_5 = arith.constant 0 : index
    %c0_6 = arith.constant 0 : index
    %6 = vector.load %arg3[%c0_5, %c0_6] : memref<1x128xf32, #tpu.memory_space<vmem>>, vector<1x128xf32>
    %7 = vector.broadcast %6 : vector<1x128xf32> to vector<64x128xf32>
    %8 = arith.addf %5, %7 : vector<64x128xf32>
    %cst_7 = arith.constant 0.000000e+00 : f32
    %9 = vector.broadcast %cst_7 : f32 to vector<64x128xf32>
    %10 = arith.maximumf %8, %9 : vector<64x128xf32>
    %cst_8 = arith.constant 0.000000e+00 : bf16
    %11 = vector.broadcast %cst_8 : bf16 to vector<1x16x128xbf16>
    %c0_9 = arith.constant 0 : index
    %c0_10 = arith.constant 0 : index
    %c0_11 = arith.constant 0 : index
    %12 = vector.load %arg9[%c0_9, %c0_10, %c0_11] : memref<10x16x128xbf16, #tpu.memory_space<vmem>>, vector<1x16x128xbf16>
    tpu.vector_store %arg9[%c0_9, %c0_10, %c0_11], %11 {strides = array<i32>} : memref<10x16x128xbf16, #tpu.memory_space<vmem>>, vector<1x16x128xbf16>,
    %c9 = arith.constant 9 : index
    %c0_12 = arith.constant 0 : index
    %c0_13 = arith.constant 0 : index
    %13 = vector.load %arg9[%c9, %c0_12, %c0_13] : memref<10x16x128xbf16, #tpu.memory_space<vmem>>, vector<1x16x128xbf16>
    tpu.vector_store %arg9[%c9, %c0_12, %c0_13], %11 {strides = array<i32>} : memref<10x16x128xbf16, #tpu.memory_space<vmem>>, vector<1x16x128xbf16>,
    %cst_14 = arith.constant 0.000000e+00 : bf16
    %14 = vector.broadcast %cst_14 : bf16 to vector<8x1x128xbf16>
    %c1 = arith.constant 1 : index
    %c0_15 = arith.constant 0 : index
    %c0_16 = arith.constant 0 : index
    %15 = vector.load %arg9[%c1, %c0_15, %c0_16] : memref<10x16x128xbf16, #tpu.memory_space<vmem>>, vector<8x1x128xbf16>
    tpu.vector_store %arg9[%c1, %c0_15, %c0_16], %14 {strides = array<i32>} : memref<10x16x128xbf16, #tpu.memory_space<vmem>>, vector<8x1x128xbf16>,
    %cst_17 = arith.constant 0.000000e+00 : bf16
    %16 = vector.broadcast %cst_17 : bf16 to vector<8x7x128xbf16>
    %c1_18 = arith.constant 1 : index
    %c9_19 = arith.constant 9 : index
    %c0_20 = arith.constant 0 : index
    %17 = vector.load %arg9[%c1_18, %c9_19, %c0_20] : memref<10x16x128xbf16, #tpu.memory_space<vmem>>, vector<8x7x128xbf16>
    tpu.vector_store %arg9[%c1_18, %c9_19, %c0_20], %16 {strides = array<i32>} : memref<10x16x128xbf16, #tpu.memory_space<vmem>>, vector<8x7x128xbf16>,
    %18 = arith.truncf %10 : vector<64x128xf32> to vector<64x128xbf16>
    %19 = vector.shape_cast %18 : vector<64x128xbf16> to vector<8x8x128xbf16>
    %c1_21 = arith.constant 1 : index
    %c1_22 = arith.constant 1 : index
    %c0_23 = arith.constant 0 : index
    %20 = vector.load %arg9[%c1_21, %c1_22, %c0_23] : memref<10x16x128xbf16, #tpu.memory_space<vmem>>, vector<8x8x128xbf16>
    tpu.vector_store %arg9[%c1_21, %c1_22, %c0_23], %19 {strides = array<i32>} : memref<10x16x128xbf16, #tpu.memory_space<vmem>>, vector<8x8x128xbf16>,
    %c0_24 = arith.constant 0 : index
    %c0_25 = arith.constant 0 : index
    %c0_26 = arith.constant 0 : index
    %21 = vector.load %arg9[%c0_24, %c0_25, %c0_26] : memref<10x16x128xbf16, #tpu.memory_space<vmem>>, vector<8x16x128xbf16>
    %22 = vector.shape_cast %21 : vector<8x16x128xbf16> to vector<128x128xbf16>
    %c0_27 = arith.constant 0 : index
    %c0_28 = arith.constant 0 : index
    %c0_29 = arith.constant 0 : index
    %c0_30 = arith.constant 0 : index
    %23 = vector.load %arg4[%c0_27, %c0_28, %c0_29, %c0_30] : memref<3x3x128x128xbf16, #tpu.memory_space<vmem>>, vector<1x1x128x128xbf16>
    %24 = vector.shape_cast %23 : vector<1x1x128x128xbf16> to vector<128x128xbf16>
    %cst_31 = arith.constant dense<0.000000e+00> : vector<128x128xf32>
    %25 = tpu.matmul %22, %24, %cst_31 {dimension_numbers = #tpu.dot_dimension_numbers<[1], [0], [0], [1], [0, 0, 1, 1], [], []>} : vector<128x128xbf16>, vector<128x128xbf16>, vector<128x128xf32> -> vector<128x128xf32>
    %c0_32 = arith.constant 0 : index
    %c1_33 = arith.constant 1 : index
    %c0_34 = arith.constant 0 : index
    %c0_35 = arith.constant 0 : index
    %26 = vector.load %arg4[%c0_32, %c1_33, %c0_34, %c0_35] : memref<3x3x128x128xbf16, #tpu.memory_space<vmem>>, vector<1x1x128x128xbf16>
    %27 = vector.shape_cast %26 : vector<1x1x128x128xbf16> to vector<128x128xbf16>
    %cst_36 = arith.constant dense<0.000000e+00> : vector<128x128xf32>
    %28 = tpu.matmul %22, %27, %cst_36 {dimension_numbers = #tpu.dot_dimension_numbers<[1], [0], [0], [1], [0, 0, 1, 1], [], []>} : vector<128x128xbf16>, vector<128x128xbf16>, vector<128x128xf32> -> vector<128x128xf32>
    %c127_i32 = arith.constant 127 : i32
    %29 = tpu.dynamic_rotate %28 by %c127_i32 dim 0 : vector<128x128xf32>, i32 -> vector<128x128xf32>
    %30 = arith.addf %25, %29 : vector<128x128xf32>
    %c0_37 = arith.constant 0 : index
    %c2 = arith.constant 2 : index
    %c0_38 = arith.constant 0 : index
    %c0_39 = arith.constant 0 : index
    %31 = vector.load %arg4[%c0_37, %c2, %c0_38, %c0_39] : memref<3x3x128x128xbf16, #tpu.memory_space<vmem>>, vector<1x1x128x128xbf16>
    %32 = vector.shape_cast %31 : vector<1x1x128x128xbf16> to vector<128x128xbf16>
    %cst_40 = arith.constant dense<0.000000e+00> : vector<128x128xf32>
    %33 = tpu.matmul %22, %32, %cst_40 {dimension_numbers = #tpu.dot_dimension_numbers<[1], [0], [0], [1], [0, 0, 1, 1], [], []>} : vector<128x128xbf16>, vector<128x128xbf16>, vector<128x128xf32> -> vector<128x128xf32>
    %c126_i32 = arith.constant 126 : i32
    %34 = tpu.dynamic_rotate %33 by %c126_i32 dim 0 : vector<128x128xf32>, i32 -> vector<128x128xf32>
    %35 = arith.addf %30, %34 : vector<128x128xf32>
    %c1_41 = arith.constant 1 : index
    %c0_42 = arith.constant 0 : index
    %c0_43 = arith.constant 0 : index
    %36 = vector.load %arg9[%c1_41, %c0_42, %c0_43] : memref<10x16x128xbf16, #tpu.memory_space<vmem>>, vector<8x16x128xbf16>
    %37 = vector.shape_cast %36 : vector<8x16x128xbf16> to vector<128x128xbf16>
    %c1_44 = arith.constant 1 : index
    %c0_45 = arith.constant 0 : index
    %c0_46 = arith.constant 0 : index
    %c0_47 = arith.constant 0 : index
    %38 = vector.load %arg4[%c1_44, %c0_45, %c0_46, %c0_47] : memref<3x3x128x128xbf16, #tpu.memory_space<vmem>>, vector<1x1x128x128xbf16>
    %39 = vector.shape_cast %38 : vector<1x1x128x128xbf16> to vector<128x128xbf16>
    %cst_48 = arith.constant dense<0.000000e+00> : vector<128x128xf32>
    %40 = tpu.matmul %37, %39, %cst_48 {dimension_numbers = #tpu.dot_dimension_numbers<[1], [0], [0], [1], [0, 0, 1, 1], [], []>} : vector<128x128xbf16>, vector<128x128xbf16>, vector<128x128xf32> -> vector<128x128xf32>
    %41 = arith.addf %35, %40 : vector<128x128xf32>
    %c1_49 = arith.constant 1 : index
    %c1_50 = arith.constant 1 : index
    %c0_51 = arith.constant 0 : index
    %c0_52 = arith.constant 0 : index
    %42 = vector.load %arg4[%c1_49, %c1_50, %c0_51, %c0_52] : memref<3x3x128x128xbf16, #tpu.memory_space<vmem>>, vector<1x1x128x128xbf16>
    %43 = vector.shape_cast %42 : vector<1x1x128x128xbf16> to vector<128x128xbf16>
    %cst_53 = arith.constant dense<0.000000e+00> : vector<128x128xf32>
    %44 = tpu.matmul %37, %43, %cst_53 {dimension_numbers = #tpu.dot_dimension_numbers<[1], [0], [0], [1], [0, 0, 1, 1], [], []>} : vector<128x128xbf16>, vector<128x128xbf16>, vector<128x128xf32> -> vector<128x128xf32>
    %c127_i32_54 = arith.constant 127 : i32
    %45 = tpu.dynamic_rotate %44 by %c127_i32_54 dim 0 : vector<128x128xf32>, i32 -> vector<128x128xf32>
    %46 = arith.addf %41, %45 : vector<128x128xf32>
    %c1_55 = arith.constant 1 : index
    %c2_56 = arith.constant 2 : index
    %c0_57 = arith.constant 0 : index
    %c0_58 = arith.constant 0 : index
    %47 = vector.load %arg4[%c1_55, %c2_56, %c0_57, %c0_58] : memref<3x3x128x128xbf16, #tpu.memory_space<vmem>>, vector<1x1x128x128xbf16>
    %48 = vector.shape_cast %47 : vector<1x1x128x128xbf16> to vector<128x128xbf16>
    %cst_59 = arith.constant dense<0.000000e+00> : vector<128x128xf32>
    %49 = tpu.matmul %37, %48, %cst_59 {dimension_numbers = #tpu.dot_dimension_numbers<[1], [0], [0], [1], [0, 0, 1, 1], [], []>} : vector<128x128xbf16>, vector<128x128xbf16>, vector<128x128xf32> -> vector<128x128xf32>
    %c126_i32_60 = arith.constant 126 : i32
    %50 = tpu.dynamic_rotate %49 by %c126_i32_60 dim 0 : vector<128x128xf32>, i32 -> vector<128x128xf32>
    %51 = arith.addf %46, %50 : vector<128x128xf32>
    %c2_61 = arith.constant 2 : index
    %c0_62 = arith.constant 0 : index
    %c0_63 = arith.constant 0 : index
    %52 = vector.load %arg9[%c2_61, %c0_62, %c0_63] : memref<10x16x128xbf16, #tpu.memory_space<vmem>>, vector<8x16x128xbf16>
    %53 = vector.shape_cast %52 : vector<8x16x128xbf16> to vector<128x128xbf16>
    %c2_64 = arith.constant 2 : index
    %c0_65 = arith.constant 0 : index
    %c0_66 = arith.constant 0 : index
    %c0_67 = arith.constant 0 : index
    %54 = vector.load %arg4[%c2_64, %c0_65, %c0_66, %c0_67] : memref<3x3x128x128xbf16, #tpu.memory_space<vmem>>, vector<1x1x128x128xbf16>
    %55 = vector.shape_cast %54 : vector<1x1x128x128xbf16> to vector<128x128xbf16>
    %cst_68 = arith.constant dense<0.000000e+00> : vector<128x128xf32>
    %56 = tpu.matmul %53, %55, %cst_68 {dimension_numbers = #tpu.dot_dimension_numbers<[1], [0], [0], [1], [0, 0, 1, 1], [], []>} : vector<128x128xbf16>, vector<128x128xbf16>, vector<128x128xf32> -> vector<128x128xf32>
    %57 = arith.addf %51, %56 : vector<128x128xf32>
    %c2_69 = arith.constant 2 : index
    %c1_70 = arith.constant 1 : index
    %c0_71 = arith.constant 0 : index
    %c0_72 = arith.constant 0 : index
    %58 = vector.load %arg4[%c2_69, %c1_70, %c0_71, %c0_72] : memref<3x3x128x128xbf16, #tpu.memory_space<vmem>>, vector<1x1x128x128xbf16>
    %59 = vector.shape_cast %58 : vector<1x1x128x128xbf16> to vector<128x128xbf16>
    %cst_73 = arith.constant dense<0.000000e+00> : vector<128x128xf32>
    %60 = tpu.matmul %53, %59, %cst_73 {dimension_numbers = #tpu.dot_dimension_numbers<[1], [0], [0], [1], [0, 0, 1, 1], [], []>} : vector<128x128xbf16>, vector<128x128xbf16>, vector<128x128xf32> -> vector<128x128xf32>
    %c127_i32_74 = arith.constant 127 : i32
    %61 = tpu.dynamic_rotate %60 by %c127_i32_74 dim 0 : vector<128x128xf32>, i32 -> vector<128x128xf32>
    %62 = arith.addf %57, %61 : vector<128x128xf32>
    %c2_75 = arith.constant 2 : index
    %c2_76 = arith.constant 2 : index
    %c0_77 = arith.constant 0 : index
    %c0_78 = arith.constant 0 : index
    %63 = vector.load %arg4[%c2_75, %c2_76, %c0_77, %c0_78] : memref<3x3x128x128xbf16, #tpu.memory_space<vmem>>, vector<1x1x128x128xbf16>
    %64 = vector.shape_cast %63 : vector<1x1x128x128xbf16> to vector<128x128xbf16>
    %cst_79 = arith.constant dense<0.000000e+00> : vector<128x128xf32>
    %65 = tpu.matmul %53, %64, %cst_79 {dimension_numbers = #tpu.dot_dimension_numbers<[1], [0], [0], [1], [0, 0, 1, 1], [], []>} : vector<128x128xbf16>, vector<128x128xbf16>, vector<128x128xf32> -> vector<128x128xf32>
    %c126_i32_80 = arith.constant 126 : i32
    %66 = tpu.dynamic_rotate %65 by %c126_i32_80 dim 0 : vector<128x128xf32>, i32 -> vector<128x128xf32>
    %67 = arith.addf %62, %66 : vector<128x128xf32>
    %c0_81 = arith.constant 0 : index
    %c0_82 = arith.constant 0 : index
    %68 = vector.load %arg5[%c0_81, %c0_82] : memref<1x128xf32, #tpu.memory_space<vmem>>, vector<1x128xf32>
    %69 = vector.broadcast %68 : vector<1x128xf32> to vector<128x128xf32>
    %70 = arith.addf %67, %69 : vector<128x128xf32>
    %cst_83 = arith.constant 0.000000e+00 : f32
    %71 = vector.broadcast %cst_83 : f32 to vector<128x128xf32>
    %72 = arith.maximumf %70, %71 : vector<128x128xf32>
    %73 = arith.truncf %72 : vector<128x128xf32> to vector<128x128xbf16>
    %c0_84 = arith.constant 0 : index
    %c0_85 = arith.constant 0 : index
    %74 = vector.load %arg6[%c0_84, %c0_85] : memref<128x16xbf16, #tpu.memory_space<vmem>>, vector<128x16xbf16>
    %cst_86 = arith.constant dense<0.000000e+00> : vector<128x16xf32>
    %75 = tpu.matmul %73, %74, %cst_86 {dimension_numbers = #tpu.dot_dimension_numbers<[1], [0], [0], [1], [0, 0, 1, 1], [], []>} : vector<128x128xbf16>, vector<128x16xbf16>, vector<128x16xf32> -> vector<128x16xf32>
    %76 = vector.shape_cast %75 : vector<128x16xf32> to vector<8x16x16xf32>
    %77 = vector.extract_strided_slice %76 {offsets = [0, 0, 0], sizes = [8, 8, 16], strides = [1, 1, 1]} : vector<8x16x16xf32> to vector<8x8x16xf32>
    %c0_87 = arith.constant 0 : index
    %c0_88 = arith.constant 0 : index
    %c0_89 = arith.constant 0 : index
    %c0_90 = arith.constant 0 : index
    %78 = vector.load %arg1[%c0_87, %c0_88, %c0_89, %c0_90] : memref<1x8x8x16xf32, #tpu.memory_space<vmem>>, vector<1x8x8x16xf32>
    %79 = vector.shape_cast %78 : vector<1x8x8x16xf32> to vector<8x8x16xf32>
    %c0_91 = arith.constant 0 : index
    %c0_92 = arith.constant 0 : index
    %80 = vector.load %arg7[%c0_91, %c0_92] : memref<1x16xf32, #tpu.memory_space<vmem>>, vector<1x16xf32>
    %81 = vector.shape_cast %80 : vector<1x16xf32> to vector<1x1x16xf32>
    %82 = vector.broadcast %81 : vector<1x1x16xf32> to vector<8x8x16xf32>
    %83 = arith.addf %77, %82 : vector<8x8x16xf32>
    %84 = arith.addf %83, %79 : vector<8x8x16xf32>
    %cst_93 = arith.constant 0.000000e+00 : f32
    %85 = vector.broadcast %cst_93 : f32 to vector<8x8x16xf32>
    %86 = arith.maximumf %84, %85 : vector<8x8x16xf32>
    %87 = vector.shape_cast %86 : vector<8x8x16xf32> to vector<1x8x8x16xf32>
    %c0_94 = arith.constant 0 : index
    %c0_95 = arith.constant 0 : index
    %c0_96 = arith.constant 0 : index
    %c0_97 = arith.constant 0 : index
    %88 = vector.load %arg8[%c0_94, %c0_95, %c0_96, %c0_97] : memref<1x8x8x16xf32, #tpu.memory_space<vmem>>, vector<1x8x8x16xf32>
    tpu.vector_store %arg8[%c0_94, %c0_95, %c0_96, %c0_97], %87 {strides = array<i32>} : memref<1x8x8x16xf32, #tpu.memory_space<vmem>>, vector<1x8x8x16xf32>,
    return
  }
  func.func @transform_0(%arg0: i32) -> (i32, i32, i32, i32) {
    %c0_i32 = arith.constant 0 : i32
    %c0_i32_0 = arith.constant 0 : i32
    %c0_i32_1 = arith.constant 0 : i32
    %c0_i32_2 = arith.constant 0 : i32
    return %arg0, %c0_i32, %c0_i32_0, %c0_i32_1 : i32, i32, i32, i32
  }
  func.func @transform_1(%arg0: i32) -> (i32, i32) {
    %c0_i32 = arith.constant 0 : i32
    %c0_i32_0 = arith.constant 0 : i32
    %c0_i32_1 = arith.constant 0 : i32
    return %c0_i32, %c0_i32_0 : i32, i32
  }
  func.func @transform_2(%arg0: i32) -> (i32, i32) {
    %c0_i32 = arith.constant 0 : i32
    %c0_i32_0 = arith.constant 0 : i32
    %c0_i32_1 = arith.constant 0 : i32
    return %c0_i32, %c0_i32_0 : i32, i32
  }
  func.func @transform_3(%arg0: i32) -> (i32, i32, i32, i32) {
    %c0_i32 = arith.constant 0 : i32
    %c0_i32_0 = arith.constant 0 : i32
    %c0_i32_1 = arith.constant 0 : i32
    %c0_i32_2 = arith.constant 0 : i32
    %c0_i32_3 = arith.constant 0 : i32
    return %c0_i32, %c0_i32_0, %c0_i32_1, %c0_i32_2 : i32, i32, i32, i32
  }
  func.func @transform_4(%arg0: i32) -> (i32, i32) {
    %c0_i32 = arith.constant 0 : i32
    %c0_i32_0 = arith.constant 0 : i32
    %c0_i32_1 = arith.constant 0 : i32
    return %c0_i32, %c0_i32_0 : i32, i32
  }
  func.func @transform_5(%arg0: i32) -> (i32, i32) {
    %c0_i32 = arith.constant 0 : i32
    %c0_i32_0 = arith.constant 0 : i32
    %c0_i32_1 = arith.constant 0 : i32
    return %c0_i32, %c0_i32_0 : i32, i32
  }
  func.func @transform_6(%arg0: i32) -> (i32, i32) {
    %c0_i32 = arith.constant 0 : i32
    %c0_i32_0 = arith.constant 0 : i32
    %c0_i32_1 = arith.constant 0 : i32
    return %c0_i32, %c0_i32_0 : i32, i32
  }
  func.func @transform_7(%arg0: i32) -> (i32, i32, i32, i32) {
    %c0_i32 = arith.constant 0 : i32
    %c0_i32_0 = arith.constant 0 : i32
    %c0_i32_1 = arith.constant 0 : i32
    %c0_i32_2 = arith.constant 0 : i32
    return %arg0, %c0_i32, %c0_i32_0, %c0_i32_1 : i32, i32, i32, i32
  }
}

</mosaic_0001>

<llo_original>
// kernel: tpu_custom_call.1
$region0: #{tpu_custom_call.1}
  #allocation0 [shape = 'u32[]', space=smem, size = 0x4, offset = 0x4, fixed_abs, tag = 'smem constant byte address 0x4 - core index']
  #allocation1 [shape = 'u32[144,128]{1,0:T(1,128)}', space=vmem, size = 0x12000, scoped, tag = 'internal scratch']
  #allocation2 [shape = 'bf16[10,16,128]{2,1,0:T(16,128)(2,1)}', space=vmem, size = 0xa000, scoped, tag = 'scratch operand']
  %s0 = inlined_call_operand.hbm [shape: f32[2,8,8,16], index: 0, kind: input, shape index: {}]
  %s1 = inlined_call_operand.vmem [shape: bf16[16,128], index: 1, kind: input, shape index: {}]
  %s2 = inlined_call_operand.vmem [shape: f32[1,128], index: 2, kind: input, shape index: {}]
  %s3 = inlined_call_operand.hbm [shape: bf16[3,3,128,128], index: 3, kind: input, shape index: {}]
  %s4 = inlined_call_operand.vmem [shape: f32[1,128], index: 4, kind: input, shape index: {}]
  %s5 = inlined_call_operand.vmem [shape: bf16[128,16], index: 5, kind: input, shape index: {}]
  %s6 = inlined_call_operand.vmem [shape: f32[1,16], index: 6, kind: input, shape index: {}]
  %s7 = inlined_call_operand.hbm [shape: f32[2,8,8,16], index: 7, kind: output, shape index: {}]
  %s8 = sld [smem:[#allocation0]]
  $region69: #{tpu_custom_call.1} parent=0
    _
  %s10 = ssub.s32 1, %s8
  %s11 = scalar_select 0, %s10, %s8
  $region1: #{tpu_custom_call.1} parent=0
    #allocation3 [shape = 'u8[65536]{0}', space=vmem, size = 0x10000, scoped, tag = 'input window, operand 0']
    #allocation4 [shape = 's32[2]{0}', space=sflag, size = 0x8, scoped, tag = 'scoped memory for tpu_custom_call.1']
    #allocation5 [shape = 's32[2]{0}', space=sflag, size = 0x8, scoped, tag = 'scoped memory for tpu_custom_call.1']
    #allocation6 [shape = 'u8[294912]{0}', space=vmem, size = 0x48000, scoped, tag = 'input window, operand 3, single buffered']
    #allocation7 [shape = 's32[1]{0}', space=sflag, size = 0x4, scoped, tag = 'scoped memory for tpu_custom_call.1']
    #allocation8 [shape = 'u8[65536]{0}', space=vmem, size = 0x10000, scoped, tag = 'output window, operand 0']
    %12 = vsyncpa [#allocation4], 0
    %s13 = scalar_lea.sflag [#allocation4], 1
    %14 = vsyncpa %s13, 0
    %15 = vsyncpa [#allocation7], 0
    %16 = vsyncpa [#allocation5], 0
    %s17 = scalar_lea.sflag [#allocation5], 1
    %18 = vsyncpa %s17, 0
    loop: start=0, step=1, limit=4
    $region2: #{tpu_custom_call.1} parent=1 // loop_pre_header
      _
    $region3: #{tpu_custom_call.1} parent=1 // loop_header
      %s20 = sphi 0, %s24
      %p21 = scmp.ge.s32.totalorder %s20, 4
      %s30 = sphi 0, %s32
      %s33 = sphi 0, %s30
      %s34 = sphi 0, %s33
      %s50 = sphi 0, %s34
      %s54 = sphi 0, %s54
      %s56 = sphi 0, %s54
      %s57 = sphi 0, %s56
      %s71 = sphi 0, %s57
      %s75 = sphi 0, %s75
      %s77 = sphi 0, %s75
      %s78 = sphi 0, %s77
      %s92 = sphi 0, %s78
      %s96 = sphi 0, %s96
      %s98 = sphi 0, %s96
      %s99 = sphi 0, %s98
      %s113 = sphi 0, %s99
      %s117 = sphi 0, %s117
      %s119 = sphi 0, %s117
      %s120 = sphi 0, %s119
      %s134 = sphi 0, %s120
      %s138 = sphi 0, %s138
      %s140 = sphi 0, %s138
      %s141 = sphi 0, %s140
      %s155 = sphi 0, %s141
      %s159 = sphi 0, %s159
      %s161 = sphi 0, %s159
      %s162 = sphi 0, %s161
      %s176 = sphi 0, %s162
      %s182 = sphi 0, %s184
      %s185 = sphi 0, %s182
      %s186 = sphi 0, %s185
      %s202 = sphi 0, %s186
    $region4: #{tpu_custom_call.1} parent=1 // loop_header_branch
      %23 = sbr.rel (%p21) target = $region8
    $region5: #{tpu_custom_call.1} parent=1 // loop_body
      %s25 = ssub.s32 %s20, 1
      %s26 = ssub.s32 %s20, 2
      %s27 = sadd.s32 %s20, 1
      %s28 = ssub.s32 %s20, %s27
      %p29 = scmp.eq.s32.totalorder %s28, 0
      %s31 = sadd.s32 %s30, 1
      %s32 = scalar_select %p29, %s30, %s31
      %p35 = pneg %p29
      %p36 = scmp.eq.s32.totalorder %s20, 1
      %p37 = por %p35, %p36
      %p38 = scmp.ne.s32.totalorder %s30, %s33
      %p39 = scmp.eq.s32.totalorder %s20, 0
      %p40 = por %p38, %p39
      %p41 = scmp.ne.s32.totalorder %s30, %s33
      %p42 = scmp.eq.s32.totalorder %s25, 1
      %p43 = por %p41, %p42
      %p44 = scmp.ne.s32.totalorder %s33, %s34
      %p45 = scmp.eq.s32.totalorder %s25, 0
      %p46 = por %p44, %p45
      %p47 = scmp.ne.s32.totalorder %s33, %s34
      %p48 = scmp.eq.s32.totalorder %s26, 1
      %p49 = por %p47, %p48
      %p51 = scmp.ne.s32.totalorder %s34, %s50
      %p52 = scmp.eq.s32.totalorder %s26, 0
      %p53 = por %p51, %p52
      %s55 = sadd.s32 %s54, 1
      %p58 = scmp.eq.s32.totalorder %s20, 1
      %p59 = scmp.ne.s32.totalorder %s54, %s56
      %p60 = scmp.eq.s32.totalorder %s20, 0
      %p61 = por %p59, %p60
      %p62 = scmp.ne.s32.totalorder %s54, %s56
      %p63 = scmp.eq.s32.totalorder %s25, 1
      %p64 = por %p62, %p63
      %p65 = scmp.ne.s32.totalorder %s56, %s57
      %p66 = scmp.eq.s32.totalorder %s25, 0
      %p67 = por %p65, %p66
      %p68 = scmp.ne.s32.totalorder %s56, %s57
      %p69 = scmp.eq.s32.totalorder %s26, 1
      %p70 = por %p68, %p69
      %p72 = scmp.ne.s32.totalorder %s57, %s71
      %p73 = scmp.eq.s32.totalorder %s26, 0
      %p74 = por %p72, %p73
      %s76 = sadd.s32 %s75, 1
      %p79 = scmp.eq.s32.totalorder %s20, 1
      %p80 = scmp.ne.s32.totalorder %s75, %s77
      %p81 = scmp.eq.s32.totalorder %s20, 0
      %p82 = por %p80, %p81
      %p83 = scmp.ne.s32.totalorder %s75, %s77
      %p84 = scmp.eq.s32.totalorder %s25, 1
      %p85 = por %p83, %p84
      %p86 = scmp.ne.s32.totalorder %s77, %s78
      %p87 = scmp.eq.s32.totalorder %s25, 0
      %p88 = por %p86, %p87
      %p89 = scmp.ne.s32.totalorder %s77, %s78
      %p90 = scmp.eq.s32.totalorder %s26, 1
      %p91 = por %p89, %p90
      %p93 = scmp.ne.s32.totalorder %s78, %s92
      %p94 = scmp.eq.s32.totalorder %s26, 0
      %p95 = por %p93, %p94
      %s97 = sadd.s32 %s96, 1
      %p100 = scmp.eq.s32.totalorder %s20, 1
      %p101 = scmp.ne.s32.totalorder %s96, %s98
      %p102 = scmp.eq.s32.totalorder %s20, 0
      %p103 = por %p101, %p102
      %p104 = scmp.ne.s32.totalorder %s96, %s98
      %p105 = scmp.eq.s32.totalorder %s25, 1
      %p106 = por %p104, %p105
      %p107 = scmp.ne.s32.totalorder %s98, %s99
      %p108 = scmp.eq.s32.totalorder %s25, 0
      %p109 = por %p107, %p108
      %p110 = scmp.ne.s32.totalorder %s98, %s99
      %p111 = scmp.eq.s32.totalorder %s26, 1
      %p112 = por %p110, %p111
      %p114 = scmp.ne.s32.totalorder %s99, %s113
      %p115 = scmp.eq.s32.totalorder %s26, 0
      %p116 = por %p114, %p115
      %s118 = sadd.s32 %s117, 1
      %p121 = scmp.eq.s32.totalorder %s20, 1
      %p122 = scmp.ne.s32.totalorder %s117, %s119
      %p123 = scmp.eq.s32.totalorder %s20, 0
      %p124 = por %p122, %p123
      %p125 = scmp.ne.s32.totalorder %s117, %s119
      %p126 = scmp.eq.s32.totalorder %s25, 1
      %p127 = por %p125, %p126
      %p128 = scmp.ne.s32.totalorder %s119, %s120
      %p129 = scmp.eq.s32.totalorder %s25, 0
      %p130 = por %p128, %p129
      %p131 = scmp.ne.s32.totalorder %s119, %s120
      %p132 = scmp.eq.s32.totalorder %s26, 1
      %p133 = por %p131, %p132
      %p135 = scmp.ne.s32.totalorder %s120, %s134
      %p136 = scmp.eq.s32.totalorder %s26, 0
      %p137 = por %p135, %p136
      %s139 = sadd.s32 %s138, 1
      %p142 = scmp.eq.s32.totalorder %s20, 1
      %p143 = scmp.ne.s32.totalorder %s138, %s140
      %p144 = scmp.eq.s32.totalorder %s20, 0
      %p145 = por %p143, %p144
      %p146 = scmp.ne.s32.totalorder %s138, %s140
      %p147 = scmp.eq.s32.totalorder %s25, 1
      %p148 = por %p146, %p147
      %p149 = scmp.ne.s32.totalorder %s140, %s141
      %p150 = scmp.eq.s32.totalorder %s25, 0
      %p151 = por %p149, %p150
      %p152 = scmp.ne.s32.totalorder %s140, %s141
      %p153 = scmp.eq.s32.totalorder %s26, 1
      %p154 = por %p152, %p153
      %p156 = scmp.ne.s32.totalorder %s141, %s155
      %p157 = scmp.eq.s32.totalorder %s26, 0
      %p158 = por %p156, %p157
      %s160 = sadd.s32 %s159, 1
      %p163 = scmp.eq.s32.totalorder %s20, 1
      %p164 = scmp.ne.s32.totalorder %s159, %s161
      %p165 = scmp.eq.s32.totalorder %s20, 0
      %p166 = por %p164, %p165
      %p167 = scmp.ne.s32.totalorder %s159, %s161
      %p168 = scmp.eq.s32.totalorder %s25, 1
      %p169 = por %p167, %p168
      %p170 = scmp.ne.s32.totalorder %s161, %s162
      %p171 = scmp.eq.s32.totalorder %s25, 0
      %p172 = por %p170, %p171
      %p173 = scmp.ne.s32.totalorder %s161, %s162
      %p174 = scmp.eq.s32.totalorder %s26, 1
      %p175 = por %p173, %p174
      %p177 = scmp.ne.s32.totalorder %s162, %s176
      %p178 = scmp.eq.s32.totalorder %s26, 0
      %p179 = por %p177, %p178
      %s180 = ssub.s32 %s20, %s27
      %p181 = scmp.eq.s32.totalorder %s180, 0
      %s183 = sadd.s32 %s182, 1
      %s184 = scalar_select %p181, %s182, %s183
      %p187 = pneg %p181
      %p188 = scmp.eq.s32.totalorder %s20, 1
      %p189 = por %p187, %p188
      %p190 = scmp.ne.s32.totalorder %s182, %s185
      %p191 = scmp.eq.s32.totalorder %s20, 0
      %p192 = por %p190, %p191
      %p193 = scmp.ne.s32.totalorder %s182, %s185
      %p194 = scmp.eq.s32.totalorder %s25, 1
      %p195 = por %p193, %p194
      %p196 = scmp.ne.s32.totalorder %s185, %s186
      %p197 = scmp.eq.s32.totalorder %s25, 0
      %p198 = por %p196, %p197
      %p199 = scmp.ne.s32.totalorder %s185, %s186
      %p200 = scmp.eq.s32.totalorder %s26, 1
      %p201 = por %p199, %p200
      %p203 = scmp.ne.s32.totalorder %s186, %s202
      %p204 = scmp.eq.s32.totalorder %s26, 0
      %p205 = por %p203, %p204
      %p206 = scmp.le.s32.totalorder 1, %s20
      %p207 = scmp.lt.s32.totalorder %s20, 3
      %p208 = pnand %p206, %p207
      %p209 = pneg %p208
      // Predicated region
      $region9: #{tpu_custom_call.1} parent=5 // pred_check
        _
      $region10: #{tpu_custom_call.1} parent=5 // pred_check_branch
        %211 = sbr.rel (%p208) target = $region12
      $region11: #{tpu_custom_call.1} parent=5 // pred_region
        %s212 = ssub.s32 %s20, 1
        // Predicated region
        $region13: #{tpu_custom_call.1} parent=11 // pred_check
          %p213 = pneg %p67
        $region14: #{tpu_custom_call.1} parent=11 // pred_check_branch
          %215 = sbr.rel (%p213) target = $region16
        $region15: #{tpu_custom_call.1} parent=11 // pred_region
          _
        $region16: #{tpu_custom_call.1} parent=11 // pred_fallthru
          _
        // Predicated region
        $region17: #{tpu_custom_call.1} parent=11 // pred_check
          %p216 = pneg %p88
        $region18: #{tpu_custom_call.1} parent=11 // pred_check_branch
          %218 = sbr.rel (%p216) target = $region20
        $region19: #{tpu_custom_call.1} parent=11 // pred_region
          _
        $region20: #{tpu_custom_call.1} parent=11 // pred_fallthru
          _
        // Predicated region
        $region21: #{tpu_custom_call.1} parent=11 // pred_check
          %p219 = pneg %p109
        $region22: #{tpu_custom_call.1} parent=11 // pred_check_branch
          %221 = sbr.rel (%p219) target = $region24
        $region23: #{tpu_custom_call.1} parent=11 // pred_region
          %s223 = ssub.s32 9216, 9216
          %224 = vsyncadd [#allocation7], %s223
          %s225 = sshll.u32 [#allocation6], 4
          %s226 = int_to_ptr.vmem [resolvable:$true] %s225
          %231 = dma.hbm_to_vmem [thread:$0]  %s3, 9216, %s226, [#allocation7], 64, 64, 4
        $region24: #{tpu_custom_call.1} parent=11 // pred_fallthru
          _
        // Predicated region
        $region25: #{tpu_custom_call.1} parent=11 // pred_check
          %p232 = pneg %p130
        $region26: #{tpu_custom_call.1} parent=11 // pred_check_branch
          %234 = sbr.rel (%p232) target = $region28
        $region27: #{tpu_custom_call.1} parent=11 // pred_region
          _
        $region28: #{tpu_custom_call.1} parent=11 // pred_fallthru
          _
        // Predicated region
        $region29: #{tpu_custom_call.1} parent=11 // pred_check
          %p235 = pneg %p151
        $region30: #{tpu_custom_call.1} parent=11 // pred_check_branch
          %237 = sbr.rel (%p235) target = $region32
        $region31: #{tpu_custom_call.1} parent=11 // pred_region
          _
        $region32: #{tpu_custom_call.1} parent=11 // pred_fallthru
          _
        // Predicated region
        $region33: #{tpu_custom_call.1} parent=11 // pred_check
          %p238 = pneg %p172
        $region34: #{tpu_custom_call.1} parent=11 // pred_check_branch
          %240 = sbr.rel (%p238) target = $region36
        $region35: #{tpu_custom_call.1} parent=11 // pred_region
          _
        $region36: #{tpu_custom_call.1} parent=11 // pred_fallthru
          _
      $region12: #{tpu_custom_call.1} parent=5 // pred_fallthru
        _
      %p241 = scmp.lt.s32.totalorder %s20, 2
      // Predicated region
      $region37: #{tpu_custom_call.1} parent=5 // pred_check
        %p242 = pneg %p241
      $region38: #{tpu_custom_call.1} parent=5 // pred_check_branch
        %244 = sbr.rel (%p242) target = $region40
      $region39: #{tpu_custom_call.1} parent=5 // pred_region
        // Predicated region
        $region41: #{tpu_custom_call.1} parent=39 // pred_check
          %p245 = pneg %p40
        $region42: #{tpu_custom_call.1} parent=39 // pred_check_branch
          %247 = sbr.rel (%p245) target = $region44
        $region43: #{tpu_custom_call.1} parent=39 // pred_region
          %s248 = sand.u32 %s30, 1
          %s249 = scalar_lea.sflag [#allocation4], %s248
          %s250 = sand.u32 %s30, 1
          %s251 = smul.addr %s250, 64
          %s252 = scalar_lea.vmem [#allocation3], %s251
          %s254 = ssub.s32 1024, 1024
          %255 = vsyncadd %s249, %s254
          %s256 = smul.addr %s20, 8
          %s257 = smul.addr %s256, 128
          %s258 = scalar_lea.hbm %s0, %s257
          %s259 = sshll.u32 %s252, 4
          %s260 = int_to_ptr.vmem [resolvable:$true] %s259
          %265 = dma.hbm_to_vmem [thread:$0]  %s258, 1024, %s260, %s249, 128, 128, 8
        $region44: #{tpu_custom_call.1} parent=39 // pred_fallthru
          _
      $region40: #{tpu_custom_call.1} parent=5 // pred_fallthru
        _
      %p266 = scmp.le.s32.totalorder 1, %s20
      %p267 = scmp.lt.s32.totalorder %s20, 3
      %p268 = pnand %p266, %p267
      %p269 = pneg %p268
      // Predicated region
      $region45: #{tpu_custom_call.1} parent=5 // pred_check
        _
      $region46: #{tpu_custom_call.1} parent=5 // pred_check_branch
        %271 = sbr.rel (%p268) target = $region48
      $region47: #{tpu_custom_call.1} parent=5 // pred_region
        %s272 = ssub.s32 %s20, 1
        %s273 = sand.u32 %s33, 1
        %s274 = scalar_lea.sflag [#allocation4], %s273
        %s275 = sand.u32 %s33, 1
        %s276 = smul.addr %s275, 64
        %s277 = scalar_lea.vmem [#allocation3], %s276
        // Predicated region
        $region49: #{tpu_custom_call.1} parent=47 // pred_check
          %p278 = pneg %p46
        $region50: #{tpu_custom_call.1} parent=47 // pred_check_branch
          %280 = sbr.rel (%p278) target = $region52
        $region51: #{tpu_custom_call.1} parent=47 // pred_region
          %281 = dma.done %s274, 1024
        $region52: #{tpu_custom_call.1} parent=47 // pred_fallthru
          _
        // Predicated region
        $region53: #{tpu_custom_call.1} parent=47 // pred_check
          %p282 = pneg %p109
        $region54: #{tpu_custom_call.1} parent=47 // pred_check_branch
          %284 = sbr.rel (%p282) target = $region56
        $region55: #{tpu_custom_call.1} parent=47 // pred_region
          %285 = dma.done [#allocation7], 9216
        $region56: #{tpu_custom_call.1} parent=47 // pred_fallthru
          _
        %s286 = sand.u32 %s33, 1
        %s287 = scalar_lea.sflag [#allocation4], %s286
        %s288 = sand.u32 %s33, 1
        %s289 = smul.addr %s288, 64
        %s290 = scalar_lea.vmem [#allocation3], %s289
        %p291 = pneg %p46
        %p292 = pneg %p43
        %p293 = pneg %p67
        %p294 = pneg %p64
        %p295 = pneg %p88
        %p296 = pneg %p85
        %p297 = pneg %p109
        %p298 = pneg %p106
        %p299 = pneg %p130
        %p300 = pneg %p127
        %p301 = pneg %p151
        %p302 = pneg %p148
        %p303 = pneg %p172
        %p304 = pneg %p169
        %p305 = pneg %p198
        %p306 = pneg %p195
        %s307 = sand.u32 %s185, 1
        %s308 = scalar_lea.sflag [#allocation5], %s307
        %s309 = sand.u32 %s185, 1
        %s310 = smul.addr %s309, 64
        %s311 = scalar_lea.vmem [#allocation8], %s310
        %v313 = vld [vmem:[%s277] sm:$0xff]
        %v314 = vld [vmem:[%s277 + $0x8] sm:$0xff]
        %v315 = vld [vmem:[%s277 + $0x10] sm:$0xff]
        %v316 = vld [vmem:[%s277 + $0x18] sm:$0xff]
        %v317 = vld [vmem:[%s277 + $0x20] sm:$0xff]
        %v318 = vld [vmem:[%s277 + $0x28] sm:$0xff]
        %v319 = vld [vmem:[%s277 + $0x30] sm:$0xff]
        %v320 = vld [vmem:[%s277 + $0x38] sm:$0xff]
        %v321 = vpack.c.bf16 %v314, %v313
        %v322 = vpack.c.bf16 %v316, %v315
        %v323 = vpack.c.bf16 %v318, %v317
        %v324 = vpack.c.bf16 %v320, %v319
        %v325 = vld [vmem:[%s1] sm:$0xf]
        %v326 = vld [vmem:[%s1 + $0x4] sm:$0xf]
        %v327 = vld [vmem:[%s2] sm:$0x1]
        %v329 = vlaneseq
        %v330 = vshrl.u32 %v329, 7
        %v331 = vsub.s32 0, %v330
        %v332 = vrot.slane %v327, %v331
        %v336 = vunpack.c.l.b16 %v325
        %v337 = vunpack.c.l.b16 %v326
        %v338 = vpack.c.b16 %v337, %v336
        %vm340 = vcmask 130048
        %v342 = vsel %vm340, %v321, 0
        %v345 = vsel %vm340, %v322, 0
        %v348 = vsel %vm340, %v323, 0
        %v351 = vsel %vm340, %v324, 0
        %353 = vmatprep.subr.bf16.mxu0 0
        %354 = vmatpush1.bf16.msra.mxu0 %v338
        %355 = vmatprep.subr.bf16.mxu0 0
        %356 = vmatpush1.bf16.msra.mxu0 0
        %357 = vmatprep.subr.bf16.mxu0 0
        %358 = vmatpush1.bf16.msra.mxu0 0
        %359 = vmatprep.subr.bf16.mxu0 0
        %360 = vmatpush1.bf16.msra.mxu0 0
        %361 = vmatprep.subr.bf16.mxu0 0
        %362 = vmatpush1.bf16.msra.mxu0 0
        %363 = vmatprep.subr.bf16.mxu0 0
        %364 = vmatpush1.bf16.msra.mxu0 0
        %365 = vmatprep.subr.bf16.mxu0 0
        %366 = vmatpush1.bf16.msra.mxu0 0
        %367 = vmatprep.subr.bf16.mxu0 0
        %368 = vmatpush1.bf16.msra.mxu0 0
        %369 = vmatprep.subr.bf16.mxu0 0
        %370 = vmatpush1.bf16.msra.mxu0 0
        %371 = vmatprep.subr.bf16.mxu0 0
        %372 = vmatpush1.bf16.msra.mxu0 0
        %373 = vmatprep.subr.bf16.mxu0 0
        %374 = vmatpush1.bf16.msra.mxu0 0
        %375 = vmatprep.subr.bf16.mxu0 0
        %376 = vmatpush1.bf16.msra.mxu0 0
        %377 = vmatprep.subr.bf16.mxu0 0
        %378 = vmatpush1.bf16.msra.mxu0 0
        %379 = vmatprep.subr.bf16.mxu0 0
        %380 = vmatpush1.bf16.msra.mxu0 0
        %381 = vmatprep.subr.bf16.mxu0 0
        %382 = vmatpush1.bf16.msra.mxu0 0
        %383 = vmatprep.subr.bf16.mxu0 0
        %384 = vmatpush1.bf16.msra.mxu0 0
        %385 = vmatprep.mubr.bf16.mxu0 0
        %386 = vmatmul.mubr.bf16.gmra.mrb[0].mxu0 %v342
        %v387 = vpop.f32.mrb[0].mxu0
        %v388 = vadd.f32 %v332, %v387
        %v389 = vpop.f32.mrb[0].mxu0
        %v390 = vpop.f32.mrb[0].mxu0
        %v391 = vadd.f32 %v332, %v390
        %v392 = vpop.f32.mrb[0].mxu0
        %393 = vmatprep.mubr.bf16.mxu0 0
        %394 = vmatmul.mubr.bf16.gmra.mrb[0].mxu0 %v345
        %v395 = vpop.f32.mrb[0].mxu0
        %v396 = vadd.f32 %v332, %v395
        %v397 = vpop.f32.mrb[0].mxu0
        %v398 = vpop.f32.mrb[0].mxu0
        %v399 = vadd.f32 %v332, %v398
        %v400 = vpop.f32.mrb[0].mxu0
        %401 = vmatprep.mubr.bf16.mxu0 0
        %402 = vmatmul.mubr.bf16.gmra.mrb[0].mxu0 %v348
        %v403 = vpop.f32.mrb[0].mxu0
        %v404 = vadd.f32 %v332, %v403
        %v405 = vpop.f32.mrb[0].mxu0
        %v406 = vpop.f32.mrb[0].mxu0
        %v407 = vadd.f32 %v332, %v406
        %v408 = vpop.f32.mrb[0].mxu0
        %409 = vmatprep.mubr.bf16.mxu0 0
        %410 = vmatmul.mubr.bf16.gmra.mrb[0].mxu0 %v351
        %v411 = vpop.f32.mrb[0].mxu0
        %v412 = vadd.f32 %v332, %v411
        %v413 = vpop.f32.mrb[0].mxu0
        %v414 = vpop.f32.mrb[0].mxu0
        %v415 = vadd.f32 %v332, %v414
        %v416 = vpop.f32.mrb[0].mxu0
        %417 = vdwg.mxu0
        %v418 = vmax.f32 %v388, 0.0
        %v419 = vmax.f32 %v391, 0.0
        %v420 = vmax.f32 %v396, 0.0
        %v421 = vmax.f32 %v399, 0.0
        %v422 = vmax.f32 %v404, 0.0
        %v423 = vmax.f32 %v407, 0.0
        %v424 = vmax.f32 %v412, 0.0
        %v425 = vmax.f32 %v415, 0.0
        %426 = vst [vmem:[#allocation2] sm:$0xff] 0
        %s427 = scalar_lea.vmem [#allocation2], 72
        %428 = vst [vmem:[%s427] sm:$0xff] 0
        %s429 = scalar_lea.vmem [#allocation2], 8
        %vm430 = vcmask 1040384
        %vm431 = vsmask.f32 256
        %vm432 = vmand %vm430, %vm431
        %v433 = vld [vmem:[%s429] sm:$0x1]
        %v434 = vsel %vm432, 0, %v433
        %435 = vst [vmem:[%s429] sm:$0x1] %v434
        %v436 = vld [vmem:[%s429 + $0x8] sm:$0x1]
        %v437 = vsel %vm432, 0, %v436
        %438 = vst [vmem:[%s429 + $0x8] sm:$0x1] %v437
        %v439 = vld [vmem:[%s429 + $0x10] sm:$0x1]
        %v440 = vsel %vm432, 0, %v439
        %441 = vst [vmem:[%s429 + $0x10] sm:$0x1] %v440
        %v442 = vld [vmem:[%s429 + $0x18] sm:$0x1]
        %v443 = vsel %vm432, 0, %v442
        %444 = vst [vmem:[%s429 + $0x18] sm:$0x1] %v443
        %v445 = vld [vmem:[%s429 + $0x20] sm:$0x1]
        %v446 = vsel %vm432, 0, %v445
        %447 = vst [vmem:[%s429 + $0x20] sm:$0x1] %v446
        %v448 = vld [vmem:[%s429 + $0x28] sm:$0x1]
        %v449 = vsel %vm432, 0, %v448
        %450 = vst [vmem:[%s429 + $0x28] sm:$0x1] %v449
        %v451 = vld [vmem:[%s429 + $0x30] sm:$0x1]
        %v452 = vsel %vm432, 0, %v451
        %453 = vst [vmem:[%s429 + $0x30] sm:$0x1] %v452
        %v454 = vld [vmem:[%s429 + $0x38] sm:$0x1]
        %v455 = vsel %vm432, 0, %v454
        %456 = vst [vmem:[%s429 + $0x38] sm:$0x1] %v455
        %vm457 = vcmask 1047556
        %vm458 = vsmask.f32 7954
        %vm459 = vmand %vm457, %vm458
        %v460 = vld [vmem:[%s429] sm:$0xf0]
        %v461 = vsel %vm459, 0, %v460
        %462 = vst [vmem:[%s429] sm:$0xf0] %v461
        %v463 = vld [vmem:[%s429 + $0x8] sm:$0xf0]
        %v464 = vsel %vm459, 0, %v463
        %465 = vst [vmem:[%s429 + $0x8] sm:$0xf0] %v464
        %v466 = vld [vmem:[%s429 + $0x10] sm:$0xf0]
        %v467 = vsel %vm459, 0, %v466
        %468 = vst [vmem:[%s429 + $0x10] sm:$0xf0] %v467
        %v469 = vld [vmem:[%s429 + $0x18] sm:$0xf0]
        %v470 = vsel %vm459, 0, %v469
        %471 = vst [vmem:[%s429 + $0x18] sm:$0xf0] %v470
        %v472 = vld [vmem:[%s429 + $0x20] sm:$0xf0]
        %v473 = vsel %vm459, 0, %v472
        %474 = vst [vmem:[%s429 + $0x20] sm:$0xf0] %v473
        %v475 = vld [vmem:[%s429 + $0x28] sm:$0xf0]
        %v476 = vsel %vm459, 0, %v475
        %477 = vst [vmem:[%s429 + $0x28] sm:$0xf0] %v476
        %v478 = vld [vmem:[%s429 + $0x30] sm:$0xf0]
        %v479 = vsel %vm459, 0, %v478
        %480 = vst [vmem:[%s429 + $0x30] sm:$0xf0] %v479
        %v481 = vld [vmem:[%s429 + $0x38] sm:$0xf0]
        %v482 = vsel %vm459, 0, %v481
        %483 = vst [vmem:[%s429 + $0x38] sm:$0xf0] %v482
        %v484 = vpack.c.bf16 %v419, %v418
        %v485 = vpack.c.bf16 %v421, %v420
        %v486 = vpack.c.bf16 %v423, %v422
        %v487 = vpack.c.bf16 %v425, %v424
        %v492 = vunpack.c.l.b16 %v484
        %v493 = vunpack.c.h.b16 %v484
        %v494 = vunpack.c.l.b16 %v485
        %v495 = vunpack.c.h.b16 %v485
        %v496 = vunpack.c.l.b16 %v486
        %v497 = vunpack.c.h.b16 %v486
        %v498 = vunpack.c.l.b16 %v487
        %v499 = vunpack.c.h.b16 %v487
        %v500 = vpack.c.b16 %v492, %v492
        %v501 = vpack.c.b16 %v493, %v493
        %v502 = vpack.c.b16 %v494, %v494
        %v503 = vpack.c.b16 %v495, %v495
        %v504 = vpack.c.b16 %v496, %v496
        %v505 = vpack.c.b16 %v497, %v497
        %v506 = vpack.c.b16 %v498, %v498
        %v507 = vpack.c.b16 %v499, %v499
        %v509 = vshrl.u32 %v500, 16
        %v511 = vrot.slane %v509, 7
        %v512 = vshll.u32 %v500, 16
        %v514 = vor.u32 %v511, %v512
        %v516 = vshrl.u32 %v501, 16
        %v518 = vrot.slane %v516, 7
        %v519 = vshll.u32 %v501, 16
        %v521 = vor.u32 %v518, %v519
        %v523 = vshrl.u32 %v502, 16
        %v525 = vrot.slane %v523, 7
        %v526 = vshll.u32 %v502, 16
        %v528 = vor.u32 %v525, %v526
        %v530 = vshrl.u32 %v503, 16
        %v532 = vrot.slane %v530, 7
        %v533 = vshll.u32 %v503, 16
        %v535 = vor.u32 %v532, %v533
        %v537 = vshrl.u32 %v504, 16
        %v539 = vrot.slane %v537, 7
        %v540 = vshll.u32 %v504, 16
        %v542 = vor.u32 %v539, %v540
        %v544 = vshrl.u32 %v505, 16
        %v546 = vrot.slane %v544, 7
        %v547 = vshll.u32 %v505, 16
        %v549 = vor.u32 %v546, %v547
        %v551 = vshrl.u32 %v506, 16
        %v553 = vrot.slane %v551, 7
        %v554 = vshll.u32 %v506, 16
        %v556 = vor.u32 %v553, %v554
        %v558 = vshrl.u32 %v507, 16
        %v560 = vrot.slane %v558, 7
        %v561 = vshll.u32 %v507, 16
        %v563 = vor.u32 %v560, %v561
        %vm572 = vcmask 1044480
        %vm573 = vsmask.f32 4354
        %vm574 = vmand %vm572, %vm573
        %v575 = vld [vmem:[%s429] sm:$0x1f]
        %v576 = vsel %vm574, %v514, %v575
        %577 = vst [vmem:[%s429] sm:$0x1f] %v576
        %v578 = vld [vmem:[%s429 + $0x8] sm:$0x1f]
        %v579 = vsel %vm574, %v521, %v578
        %580 = vst [vmem:[%s429 + $0x8] sm:$0x1f] %v579
        %v581 = vld [vmem:[%s429 + $0x10] sm:$0x1f]
        %v582 = vsel %vm574, %v528, %v581
        %583 = vst [vmem:[%s429 + $0x10] sm:$0x1f] %v582
        %v584 = vld [vmem:[%s429 + $0x18] sm:$0x1f]
        %v585 = vsel %vm574, %v535, %v584
        %586 = vst [vmem:[%s429 + $0x18] sm:$0x1f] %v585
        %v587 = vld [vmem:[%s429 + $0x20] sm:$0x1f]
        %v588 = vsel %vm574, %v542, %v587
        %589 = vst [vmem:[%s429 + $0x20] sm:$0x1f] %v588
        %v590 = vld [vmem:[%s429 + $0x28] sm:$0x1f]
        %v591 = vsel %vm574, %v549, %v590
        %592 = vst [vmem:[%s429 + $0x28] sm:$0x1f] %v591
        %v593 = vld [vmem:[%s429 + $0x30] sm:$0x1f]
        %v594 = vsel %vm574, %v556, %v593
        %595 = vst [vmem:[%s429 + $0x30] sm:$0x1f] %v594
        %v596 = vld [vmem:[%s429 + $0x38] sm:$0x1f]
        %v597 = vsel %vm574, %v563, %v596
        %598 = vst [vmem:[%s429 + $0x38] sm:$0x1f] %v597
        %v599 = vld [vmem:[#allocation2] sm:$0xff]
        %v600 = vld [vmem:[#allocation2 + $0x8] sm:$0xff]
        %v601 = vld [vmem:[#allocation2 + $0x10] sm:$0xff]
        %v602 = vld [vmem:[#allocation2 + $0x18] sm:$0xff]
        %v603 = vld [vmem:[#allocation2 + $0x20] sm:$0xff]
        %v604 = vld [vmem:[#allocation2 + $0x28] sm:$0xff]
        %v605 = vld [vmem:[#allocation2 + $0x30] sm:$0xff]
        %v606 = vld [vmem:[#allocation2 + $0x38] sm:$0xff]
        %v607 = vld [vmem:[#allocation6] sm:$0xf]
        %v608 = vld [vmem:[#allocation6 + $0x4] sm:$0xf]
        %v609 = vld [vmem:[#allocation6 + $0x8] sm:$0xf]
        %v610 = vld [vmem:[#allocation6 + $0xc] sm:$0xf]
        %v611 = vld [vmem:[#allocation6 + $0x10] sm:$0xf]
        %v612 = vld [vmem:[#allocation6 + $0x14] sm:$0xf]
        %v613 = vld [vmem:[#allocation6 + $0x18] sm:$0xf]
        %v614 = vld [vmem:[#allocation6 + $0x1c] sm:$0xf]
        %v615 = vld [vmem:[#allocation6 + $0x20] sm:$0xf]
        %v616 = vld [vmem:[#allocation6 + $0x24] sm:$0xf]
        %v617 = vld [vmem:[#allocation6 + $0x28] sm:$0xf]
        %v618 = vld [vmem:[#allocation6 + $0x2c] sm:$0xf]
        %v619 = vld [vmem:[#allocation6 + $0x30] sm:$0xf]
        %v620 = vld [vmem:[#allocation6 + $0x34] sm:$0xf]
        %v621 = vld [vmem:[#allocation6 + $0x38] sm:$0xf]
        %v622 = vld [vmem:[#allocation6 + $0x3c] sm:$0xf]
        %s623 = scalar_lea.vmem [#allocation6], 64
        %v624 = vld [vmem:[%s623] sm:$0xf]
        %v625 = vld [vmem:[%s623 + $0x4] sm:$0xf]
        %v626 = vld [vmem:[%s623 + $0x8] sm:$0xf]
        %v627 = vld [vmem:[%s623 + $0xc] sm:$0xf]
        %v628 = vld [vmem:[%s623 + $0x10] sm:$0xf]
        %v629 = vld [vmem:[%s623 + $0x14] sm:$0xf]
        %v630 = vld [vmem:[%s623 + $0x18] sm:$0xf]
        %v631 = vld [vmem:[%s623 + $0x1c] sm:$0xf]
        %v632 = vld [vmem:[%s623 + $0x20] sm:$0xf]
        %v633 = vld [vmem:[%s623 + $0x24] sm:$0xf]
        %v634 = vld [vmem:[%s623 + $0x28] sm:$0xf]
        %v635 = vld [vmem:[%s623 + $0x2c] sm:$0xf]
        %v636 = vld [vmem:[%s623 + $0x30] sm:$0xf]
        %v637 = vld [vmem:[%s623 + $0x34] sm:$0xf]
        %v638 = vld [vmem:[%s623 + $0x38] sm:$0xf]
        %v639 = vld [vmem:[%s623 + $0x3c] sm:$0xf]
        %v656 = vunpack.c.l.b16 %v624
        %v657 = vunpack.c.l.b16 %v625
        %v658 = vunpack.c.l.b16 %v626
        %v659 = vunpack.c.l.b16 %v627
        %v660 = vunpack.c.l.b16 %v628
        %v661 = vunpack.c.l.b16 %v629
        %v662 = vunpack.c.l.b16 %v630
        %v663 = vunpack.c.l.b16 %v631
        %v664 = vunpack.c.l.b16 %v632
        %v665 = vunpack.c.l.b16 %v633
        %v666 = vunpack.c.l.b16 %v634
        %v667 = vunpack.c.l.b16 %v635
        %v668 = vunpack.c.l.b16 %v636
        %v669 = vunpack.c.l.b16 %v637
        %v670 = vunpack.c.l.b16 %v638
        %v671 = vunpack.c.l.b16 %v639
        %v672 = vpack.c.b16 %v657, %v656
        %v673 = vpack.c.b16 %v659, %v658
        %v674 = vpack.c.b16 %v661, %v660
        %v675 = vpack.c.b16 %v663, %v662
        %v676 = vpack.c.b16 %v665, %v664
        %v677 = vpack.c.b16 %v667, %v666
        %v678 = vpack.c.b16 %v669, %v668
        %v679 = vpack.c.b16 %v671, %v670
        %688 = vmatprep.subr.bf16.mxu0 0
        %689 = vmatpush1.bf16.msra.mxu0 %v672
        %690 = vmatprep.subr.bf16.mxu0 0
        %691 = vmatpush1.bf16.msra.mxu0 %v673
        %692 = vmatprep.subr.bf16.mxu0 0
        %693 = vmatpush1.bf16.msra.mxu0 %v674
        %694 = vmatprep.subr.bf16.mxu0 0
        %695 = vmatpush1.bf16.msra.mxu0 %v675
        %696 = vmatprep.subr.bf16.mxu0 0
        %697 = vmatpush1.bf16.msra.mxu0 %v676
        %698 = vmatprep.subr.bf16.mxu0 0
        %699 = vmatpush1.bf16.msra.mxu0 %v677
        %700 = vmatprep.subr.bf16.mxu0 0
        %701 = vmatpush1.bf16.msra.mxu0 %v678
        %702 = vmatprep.subr.bf16.mxu0 0
        %703 = vmatpush1.bf16.msra.mxu0 %v679
        %704 = vmatprep.subr.bf16.mxu0 0
        %705 = vmatpush1.bf16.msra.mxu0 0
        %706 = vmatprep.subr.bf16.mxu0 0
        %707 = vmatpush1.bf16.msra.mxu0 0
        %708 = vmatprep.subr.bf16.mxu0 0
        %709 = vmatpush1.bf16.msra.mxu0 0
        %710 = vmatprep.subr.bf16.mxu0 0
        %711 = vmatpush1.bf16.msra.mxu0 0
        %712 = vmatprep.subr.bf16.mxu0 0
        %713 = vmatpush1.bf16.msra.mxu0 0
        %714 = vmatprep.subr.bf16.mxu0 0
        %715 = vmatpush1.bf16.msra.mxu0 0
        %716 = vmatprep.subr.bf16.mxu0 0
        %717 = vmatpush1.bf16.msra.mxu0 0
        %718 = vmatprep.subr.bf16.mxu0 0
        %719 = vmatpush1.bf16.msra.mxu0 0
        %720 = vmatprep.mubr.bf16.mxu0 0
        %721 = vmatmul.mubr.bf16.gmra.mrb[0].mxu0 %v599
        %v722 = vpop.f32.mrb[0].mxu0
        %v723 = vadd.f32 0.0, %v722
        %v724 = vpop.f32.mrb[0].mxu0
        %v725 = vpop.f32.mrb[0].mxu0
        %v726 = vadd.f32 0.0, %v725
        %v727 = vpop.f32.mrb[0].mxu0
        %728 = vmatprep.mubr.bf16.mxu0 0
        %729 = vmatmul.mubr.bf16.gmra.mrb[0].mxu0 %v600
        %v730 = vpop.f32.mrb[0].mxu0
        %v731 = vadd.f32 0.0, %v730
        %v732 = vpop.f32.mrb[0].mxu0
        %v733 = vpop.f32.mrb[0].mxu0
        %v734 = vadd.f32 0.0, %v733
        %v735 = vpop.f32.mrb[0].mxu0
        %736 = vmatprep.mubr.bf16.mxu0 0
        %737 = vmatmul.mubr.bf16.gmra.mrb[0].mxu0 %v601
        %v738 = vpop.f32.mrb[0].mxu0
        %v739 = vadd.f32 0.0, %v738
        %v740 = vpop.f32.mrb[0].mxu0
        %v741 = vpop.f32.mrb[0].mxu0
        %v742 = vadd.f32 0.0, %v741
        %v743 = vpop.f32.mrb[0].mxu0
        %744 = vmatprep.mubr.bf16.mxu0 0
        %745 = vmatmul.mubr.bf16.gmra.mrb[0].mxu0 %v602
        %v746 = vpop.f32.mrb[0].mxu0
        %v747 = vadd.f32 0.0, %v746
        %v748 = vpop.f32.mrb[0].mxu0
        %v749 = vpop.f32.mrb[0].mxu0
        %v750 = vadd.f32 0.0, %v749
        %v751 = vpop.f32.mrb[0].mxu0
        %752 = vmatprep.mubr.bf16.mxu0 0
        %753 = vmatmul.mubr.bf16.gmra.mrb[0].mxu0 %v603
        %v754 = vpop.f32.mrb[0].mxu0
        %v755 = vadd.f32 0.0, %v754
        %v756 = vpop.f32.mrb[0].mxu0
        %v757 = vpop.f32.mrb[0].mxu0
        %v758 = vadd.f32 0.0, %v757
        %v759 = vpop.f32.mrb[0].mxu0
        %760 = vmatprep.mubr.bf16.mxu0 0
        %761 = vmatmul.mubr.bf16.gmra.mrb[0].mxu0 %v604
        %v762 = vpop.f32.mrb[0].mxu0
        %v763 = vadd.f32 0.0, %v762
        %v764 = vpop.f32.mrb[0].mxu0
        %v765 = vpop.f32.mrb[0].mxu0
        %v766 = vadd.f32 0.0, %v765
        %v767 = vpop.f32.mrb[0].mxu0
        %768 = vmatprep.mubr.bf16.mxu0 0
        %769 = vmatmul.mubr.bf16.gmra.mrb[0].mxu0 %v605
        %v770 = vpop.f32.mrb[0].mxu0
        %v771 = vadd.f32 0.0, %v770
        %v772 = vpop.f32.mrb[0].mxu0
        %v773 = vpop.f32.mrb[0].mxu0
        %v774 = vadd.f32 0.0, %v773
        %v775 = vpop.f32.mrb[0].mxu0
        %776 = vmatprep.mubr.bf16.mxu0 0
        %777 = vmatmul.mubr.bf16.gmra.mrb[0].mxu0 %v606
        %v778 = vpop.f32.mrb[0].mxu0
        %v779 = vadd.f32 0.0, %v778
        %v780 = vpop.f32.mrb[0].mxu0
        %v781 = vpop.f32.mrb[0].mxu0
        %v782 = vadd.f32 0.0, %v781
        %v783 = vpop.f32.mrb[0].mxu0
        %784 = vdwg.mxu0
        %v785 = vrot.slane %v723, 1
        %v786 = vrot.slane %v726, 1
        %v787 = vrot.slane %v731, 1
        %v788 = vrot.slane %v734, 1
        %v789 = vrot.slane %v739, 1
        %v790 = vrot.slane %v742, 1
        %v791 = vrot.slane %v747, 1
        %v792 = vrot.slane %v750, 1
        %v793 = vrot.slane %v755, 1
        %v794 = vrot.slane %v758, 1
        %v795 = vrot.slane %v763, 1
        %v796 = vrot.slane %v766, 1
        %v797 = vrot.slane %v771, 1
        %v798 = vrot.slane %v774, 1
        %v799 = vrot.slane %v779, 1
        %v800 = vrot.slane %v782, 1
        %v801 = vlaneseq
        %v802 = vshrl.u32 %v801, 7
        %vm803 = vcmp.lt.s32.totalorder %v802, 7
        %v804 = vsel %vm803, %v799, %v800
        %v805 = vsel %vm803, %v798, %v799
        %v806 = vsel %vm803, %v797, %v798
        %v807 = vsel %vm803, %v796, %v797
        %v808 = vsel %vm803, %v795, %v796
        %v809 = vsel %vm803, %v794, %v795
        %v810 = vsel %vm803, %v793, %v794
        %v811 = vsel %vm803, %v792, %v793
        %v812 = vsel %vm803, %v791, %v792
        %v813 = vsel %vm803, %v790, %v791
        %v814 = vsel %vm803, %v789, %v790
        %v815 = vsel %vm803, %v788, %v789
        %v816 = vsel %vm803, %v787, %v788
        %v817 = vsel %vm803, %v786, %v787
        %v818 = vsel %vm803, %v785, %v786
        %v819 = vsel %vm803, %v800, %v785
        %v836 = vunpack.c.l.b16 %v607
        %v837 = vunpack.c.l.b16 %v608
        %v838 = vunpack.c.l.b16 %v609
        %v839 = vunpack.c.l.b16 %v610
        %v840 = vunpack.c.l.b16 %v611
        %v841 = vunpack.c.l.b16 %v612
        %v842 = vunpack.c.l.b16 %v613
        %v843 = vunpack.c.l.b16 %v614
        %v844 = vunpack.c.l.b16 %v615
        %v845 = vunpack.c.l.b16 %v616
        %v846 = vunpack.c.l.b16 %v617
        %v847 = vunpack.c.l.b16 %v618
        %v848 = vunpack.c.l.b16 %v619
        %v849 = vunpack.c.l.b16 %v620
        %v850 = vunpack.c.l.b16 %v621
        %v851 = vunpack.c.l.b16 %v622
        %v852 = vpack.c.b16 %v837, %v836
        %v853 = vpack.c.b16 %v839, %v838
        %v854 = vpack.c.b16 %v841, %v840
        %v855 = vpack.c.b16 %v843, %v842
        %v856 = vpack.c.b16 %v845, %v844
        %v857 = vpack.c.b16 %v847, %v846
        %v858 = vpack.c.b16 %v849, %v848
        %v859 = vpack.c.b16 %v851, %v850
        %868 = vmatprep.subr.bf16.mxu0 0
        %869 = vmatpush1.bf16.msra.mxu0 %v852
        %870 = vmatprep.subr.bf16.mxu0 0
        %871 = vmatpush1.bf16.msra.mxu0 %v853
        %872 = vmatprep.subr.bf16.mxu0 0
        %873 = vmatpush1.bf16.msra.mxu0 %v854
        %874 = vmatprep.subr.bf16.mxu0 0
        %875 = vmatpush1.bf16.msra.mxu0 %v855
        %876 = vmatprep.subr.bf16.mxu0 0
        %877 = vmatpush1.bf16.msra.mxu0 %v856
        %878 = vmatprep.subr.bf16.mxu0 0
        %879 = vmatpush1.bf16.msra.mxu0 %v857
        %880 = vmatprep.subr.bf16.mxu0 0
        %881 = vmatpush1.bf16.msra.mxu0 %v858
        %882 = vmatprep.subr.bf16.mxu0 0
        %883 = vmatpush1.bf16.msra.mxu0 %v859
        %884 = vmatprep.subr.bf16.mxu0 0
        %885 = vmatpush1.bf16.msra.mxu0 0
        %886 = vmatprep.subr.bf16.mxu0 0
        %887 = vmatpush1.bf16.msra.mxu0 0
        %888 = vmatprep.subr.bf16.mxu0 0
        %889 = vmatpush1.bf16.msra.mxu0 0
        %890 = vmatprep.subr.bf16.mxu0 0
        %891 = vmatpush1.bf16.msra.mxu0 0
        %892 = vmatprep.subr.bf16.mxu0 0
        %893 = vmatpush1.bf16.msra.mxu0 0
        %894 = vmatprep.subr.bf16.mxu0 0
        %895 = vmatpush1.bf16.msra.mxu0 0
        %896 = vmatprep.subr.bf16.mxu0 0
        %897 = vmatpush1.bf16.msra.mxu0 0
        %898 = vmatprep.subr.bf16.mxu0 0
        %899 = vmatpush1.bf16.msra.mxu0 0
        %900 = vmatprep.mubr.bf16.mxu0 0
        %901 = vmatmul.mubr.bf16.gmra.mrb[0].mxu0 %v599
        %v902 = vpop.f32.mrb[0].mxu0
        %v903 = vadd.f32 %v818, %v902
        %v904 = vpop.f32.mrb[0].mxu0
        %v905 = vpop.f32.mrb[0].mxu0
        %v906 = vadd.f32 %v817, %v905
        %v907 = vpop.f32.mrb[0].mxu0
        %908 = vmatprep.mubr.bf16.mxu0 0
        %909 = vmatmul.mubr.bf16.gmra.mrb[0].mxu0 %v600
        %v910 = vpop.f32.mrb[0].mxu0
        %v911 = vadd.f32 %v816, %v910
        %v912 = vpop.f32.mrb[0].mxu0
        %v913 = vpop.f32.mrb[0].mxu0
        %v914 = vadd.f32 %v815, %v913
        %v915 = vpop.f32.mrb[0].mxu0
        %916 = vmatprep.mubr.bf16.mxu0 0
        %917 = vmatmul.mubr.bf16.gmra.mrb[0].mxu0 %v601
        %v918 = vpop.f32.mrb[0].mxu0
        %v919 = vadd.f32 %v814, %v918
        %v920 = vpop.f32.mrb[0].mxu0
        %v921 = vpop.f32.mrb[0].mxu0
        %v922 = vadd.f32 %v813, %v921
        %v923 = vpop.f32.mrb[0].mxu0
        %924 = vmatprep.mubr.bf16.mxu0 0
        %925 = vmatmul.mubr.bf16.gmra.mrb[0].mxu0 %v602
        %v926 = vpop.f32.mrb[0].mxu0
        %v927 = vadd.f32 %v812, %v926
        %v928 = vpop.f32.mrb[0].mxu0
        %v929 = vpop.f32.mrb[0].mxu0
        %v930 = vadd.f32 %v811, %v929
        %v931 = vpop.f32.mrb[0].mxu0
        %932 = vmatprep.mubr.bf16.mxu0 0
        %933 = vmatmul.mubr.bf16.gmra.mrb[0].mxu0 %v603
        %v934 = vpop.f32.mrb[0].mxu0
        %v935 = vadd.f32 %v810, %v934
        %v936 = vpop.f32.mrb[0].mxu0
        %v937 = vpop.f32.mrb[0].mxu0
        %v938 = vadd.f32 %v809, %v937
        %v939 = vpop.f32.mrb[0].mxu0
        %940 = vmatprep.mubr.bf16.mxu0 0
        %941 = vmatmul.mubr.bf16.gmra.mrb[0].mxu0 %v604
        %v942 = vpop.f32.mrb[0].mxu0
        %v943 = vadd.f32 %v808, %v942
        %v944 = vpop.f32.mrb[0].mxu0
        %v945 = vpop.f32.mrb[0].mxu0
        %v946 = vadd.f32 %v807, %v945
        %v947 = vpop.f32.mrb[0].mxu0
        %948 = vmatprep.mubr.bf16.mxu0 0
        %949 = vmatmul.mubr.bf16.gmra.mrb[0].mxu0 %v605
        %v950 = vpop.f32.mrb[0].mxu0
        %v951 = vadd.f32 %v806, %v950
        %v952 = vpop.f32.mrb[0].mxu0
        %v953 = vpop.f32.mrb[0].mxu0
        %v954 = vadd.f32 %v805, %v953
        %v955 = vpop.f32.mrb[0].mxu0
        %956 = vmatprep.mubr.bf16.mxu0 0
        %957 = vmatmul.mubr.bf16.gmra.mrb[0].mxu0 %v606
        %v958 = vpop.f32.mrb[0].mxu0
        %v959 = vadd.f32 %v804, %v958
        %v960 = vpop.f32.mrb[0].mxu0
        %v961 = vpop.f32.mrb[0].mxu0
        %v962 = vadd.f32 %v819, %v961
        %v963 = vpop.f32.mrb[0].mxu0
        %964 = vdwg.mxu0
        %s965 = scalar_lea.vmem [#allocation6], 128
        %v966 = vld [vmem:[%s965] sm:$0xf]
        %v967 = vld [vmem:[%s965 + $0x4] sm:$0xf]
        %v968 = vld [vmem:[%s965 + $0x8] sm:$0xf]
        %v969 = vld [vmem:[%s965 + $0xc] sm:$0xf]
        %v970 = vld [vmem:[%s965 + $0x10] sm:$0xf]
        %v971 = vld [vmem:[%s965 + $0x14] sm:$0xf]
        %v972 = vld [vmem:[%s965 + $0x18] sm:$0xf]
        %v973 = vld [vmem:[%s965 + $0x1c] sm:$0xf]
        %v974 = vld [vmem:[%s965 + $0x20] sm:$0xf]
        %v975 = vld [vmem:[%s965 + $0x24] sm:$0xf]
        %v976 = vld [vmem:[%s965 + $0x28] sm:$0xf]
        %v977 = vld [vmem:[%s965 + $0x2c] sm:$0xf]
        %v978 = vld [vmem:[%s965 + $0x30] sm:$0xf]
        %v979 = vld [vmem:[%s965 + $0x34] sm:$0xf]
        %v980 = vld [vmem:[%s965 + $0x38] sm:$0xf]
        %v981 = vld [vmem:[%s965 + $0x3c] sm:$0xf]
        %v998 = vunpack.c.l.b16 %v966
        %v999 = vunpack.c.l.b16 %v967
        %v1000 = vunpack.c.l.b16 %v968
        %v1001 = vunpack.c.l.b16 %v969
        %v1002 = vunpack.c.l.b16 %v970
        %v1003 = vunpack.c.l.b16 %v971
        %v1004 = vunpack.c.l.b16 %v972
        %v1005 = vunpack.c.l.b16 %v973
        %v1006 = vunpack.c.l.b16 %v974
        %v1007 = vunpack.c.l.b16 %v975
        %v1008 = vunpack.c.l.b16 %v976
        %v1009 = vunpack.c.l.b16 %v977
        %v1010 = vunpack.c.l.b16 %v978
        %v1011 = vunpack.c.l.b16 %v979
        %v1012 = vunpack.c.l.b16 %v980
        %v1013 = vunpack.c.l.b16 %v981
        %v1014 = vpack.c.b16 %v999, %v998
        %v1015 = vpack.c.b16 %v1001, %v1000
        %v1016 = vpack.c.b16 %v1003, %v1002
        %v1017 = vpack.c.b16 %v1005, %v1004
        %v1018 = vpack.c.b16 %v1007, %v1006
        %v1019 = vpack.c.b16 %v1009, %v1008
        %v1020 = vpack.c.b16 %v1011, %v1010
        %v1021 = vpack.c.b16 %v1013, %v1012
        %1030 = vmatprep.subr.bf16.mxu0 0
        %1031 = vmatpush1.bf16.msra.mxu0 %v1014
        %1032 = vmatprep.subr.bf16.mxu0 0
        %1033 = vmatpush1.bf16.msra.mxu0 %v1015
        %1034 = vmatprep.subr.bf16.mxu0 0
        %1035 = vmatpush1.bf16.msra.mxu0 %v1016
        %1036 = vmatprep.subr.bf16.mxu0 0
        %1037 = vmatpush1.bf16.msra.mxu0 %v1017
        %1038 = vmatprep.subr.bf16.mxu0 0
        %1039 = vmatpush1.bf16.msra.mxu0 %v1018
        %1040 = vmatprep.subr.bf16.mxu0 0
        %1041 = vmatpush1.bf16.msra.mxu0 %v1019
        %1042 = vmatprep.subr.bf16.mxu0 0
        %1043 = vmatpush1.bf16.msra.mxu0 %v1020
        %1044 = vmatprep.subr.bf16.mxu0 0
        %1045 = vmatpush1.bf16.msra.mxu0 %v1021
        %1046 = vmatprep.subr.bf16.mxu0 0
        %1047 = vmatpush1.bf16.msra.mxu0 0
        %1048 = vmatprep.subr.bf16.mxu0 0
        %1049 = vmatpush1.bf16.msra.mxu0 0
        %1050 = vmatprep.subr.bf16.mxu0 0
        %1051 = vmatpush1.bf16.msra.mxu0 0
        %1052 = vmatprep.subr.bf16.mxu0 0
        %1053 = vmatpush1.bf16.msra.mxu0 0
        %1054 = vmatprep.subr.bf16.mxu0 0
        %1055 = vmatpush1.bf16.msra.mxu0 0
        %1056 = vmatprep.subr.bf16.mxu0 0
        %1057 = vmatpush1.bf16.msra.mxu0 0
        %1058 = vmatprep.subr.bf16.mxu0 0
        %1059 = vmatpush1.bf16.msra.mxu0 0
        %1060 = vmatprep.subr.bf16.mxu0 0
        %1061 = vmatpush1.bf16.msra.mxu0 0
        %1062 = vmatprep.mubr.bf16.mxu0 0
        %1063 = vmatmul.mubr.bf16.gmra.mrb[0].mxu0 %v599
        %v1064 = vpop.f32.mrb[0].mxu0
        %v1065 = vadd.f32 0.0, %v1064
        %v1066 = vpop.f32.mrb[0].mxu0
        %v1067 = vpop.f32.mrb[0].mxu0
        %v1068 = vadd.f32 0.0, %v1067
        %v1069 = vpop.f32.mrb[0].mxu0
        %1070 = vmatprep.mubr.bf16.mxu0 0
        %1071 = vmatmul.mubr.bf16.gmra.mrb[0].mxu0 %v600
        %v1072 = vpop.f32.mrb[0].mxu0
        %v1073 = vadd.f32 0.0, %v1072
        %v1074 = vpop.f32.mrb[0].mxu0
        %v1075 = vpop.f32.mrb[0].mxu0
        %v1076 = vadd.f32 0.0, %v1075
        %v1077 = vpop.f32.mrb[0].mxu0
        %1078 = vmatprep.mubr.bf16.mxu0 0
        %1079 = vmatmul.mubr.bf16.gmra.mrb[0].mxu0 %v601
        %v1080 = vpop.f32.mrb[0].mxu0
        %v1081 = vadd.f32 0.0, %v1080
        %v1082 = vpop.f32.mrb[0].mxu0
        %v1083 = vpop.f32.mrb[0].mxu0
        %v1084 = vadd.f32 0.0, %v1083
        %v1085 = vpop.f32.mrb[0].mxu0
        %1086 = vmatprep.mubr.bf16.mxu0 0
        %1087 = vmatmul.mubr.bf16.gmra.mrb[0].mxu0 %v602
        %v1088 = vpop.f32.mrb[0].mxu0
        %v1089 = vadd.f32 0.0, %v1088
        %v1090 = vpop.f32.mrb[0].mxu0
        %v1091 = vpop.f32.mrb[0].mxu0
        %v1092 = vadd.f32 0.0, %v1091
        %v1093 = vpop.f32.mrb[0].mxu0
        %1094 = vmatprep.mubr.bf16.mxu0 0
        %1095 = vmatmul.mubr.bf16.gmra.mrb[0].mxu0 %v603
        %v1096 = vpop.f32.mrb[0].mxu0
        %v1097 = vadd.f32 0.0, %v1096
        %v1098 = vpop.f32.mrb[0].mxu0
        %v1099 = vpop.f32.mrb[0].mxu0
        %v1100 = vadd.f32 0.0, %v1099
        %v1101 = vpop.f32.mrb[0].mxu0
        %1102 = vmatprep.mubr.bf16.mxu0 0
        %1103 = vmatmul.mubr.bf16.gmra.mrb[0].mxu0 %v604
        %v1104 = vpop.f32.mrb[0].mxu0
        %v1105 = vadd.f32 0.0, %v1104
        %v1106 = vpop.f32.mrb[0].mxu0
        %v1107 = vpop.f32.mrb[0].mxu0
        %v1108 = vadd.f32 0.0, %v1107
        %v1109 = vpop.f32.mrb[0].mxu0
        %1110 = vmatprep.mubr.bf16.mxu0 0
        %1111 = vmatmul.mubr.bf16.gmra.mrb[0].mxu0 %v605
        %v1112 = vpop.f32.mrb[0].mxu0
        %v1113 = vadd.f32 0.0, %v1112
        %v1114 = vpop.f32.mrb[0].mxu0
        %v1115 = vpop.f32.mrb[0].mxu0
        %v1116 = vadd.f32 0.0, %v1115
        %v1117 = vpop.f32.mrb[0].mxu0
        %1118 = vmatprep.mubr.bf16.mxu0 0
        %1119 = vmatmul.mubr.bf16.gmra.mrb[0].mxu0 %v606
        %v1120 = vpop.f32.mrb[0].mxu0
        %v1121 = vadd.f32 0.0, %v1120
        %v1122 = vpop.f32.mrb[0].mxu0
        %v1123 = vpop.f32.mrb[0].mxu0
        %v1124 = vadd.f32 0.0, %v1123
        %v1125 = vpop.f32.mrb[0].mxu0
        %1126 = vdwg.mxu0
        %v1127 = vrot.slane %v1065, 2
        %v1128 = vrot.slane %v1068, 2
        %v1129 = vrot.slane %v1073, 2
        %v1130 = vrot.slane %v1076, 2
        %v1131 = vrot.slane %v1081, 2
        %v1132 = vrot.slane %v1084, 2
        %v1133 = vrot.slane %v1089, 2
        %v1134 = vrot.slane %v1092, 2
        %v1135 = vrot.slane %v1097, 2
        %v1136 = vrot.slane %v1100, 2
        %v1137 = vrot.slane %v1105, 2
        %v1138 = vrot.slane %v1108, 2
        %v1139 = vrot.slane %v1113, 2
        %v1140 = vrot.slane %v1116, 2
        %v1141 = vrot.slane %v1121, 2
        %v1142 = vrot.slane %v1124, 2
        %vm1143 = vcmp.lt.s32.totalorder %v802, 6
        %v1144 = vsel %vm1143, %v1141, %v1142
        %v1145 = vsel %vm1143, %v1140, %v1141
        %v1146 = vsel %vm1143, %v1139, %v1140
        %v1147 = vsel %vm1143, %v1138, %v1139
        %v1148 = vsel %vm1143, %v1137, %v1138
        %v1149 = vsel %vm1143, %v1136, %v1137
        %v1150 = vsel %vm1143, %v1135, %v1136
        %v1151 = vsel %vm1143, %v1134, %v1135
        %v1152 = vsel %vm1143, %v1133, %v1134
        %v1153 = vsel %vm1143, %v1132, %v1133
        %v1154 = vsel %vm1143, %v1131, %v1132
        %v1155 = vsel %vm1143, %v1130, %v1131
        %v1156 = vsel %vm1143, %v1129, %v1130
        %v1157 = vsel %vm1143, %v1128, %v1129
        %v1158 = vsel %vm1143, %v1127, %v1128
        %v1159 = vsel %vm1143, %v1142, %v1127
        %v1160 = vadd.f32 %v903, %v1158
        %v1161 = vadd.f32 %v906, %v1157
        %v1162 = vadd.f32 %v911, %v1156
        %v1163 = vadd.f32 %v914, %v1155
        %v1164 = vadd.f32 %v919, %v1154
        %v1165 = vadd.f32 %v922, %v1153
        %v1166 = vadd.f32 %v927, %v1152
        %v1167 = vadd.f32 %v930, %v1151
        %v1168 = vadd.f32 %v935, %v1150
        %v1169 = vadd.f32 %v938, %v1149
        %v1170 = vadd.f32 %v943, %v1148
        %v1171 = vadd.f32 %v946, %v1147
        %v1172 = vadd.f32 %v951, %v1146
        %v1173 = vadd.f32 %v954, %v1145
        %v1174 = vadd.f32 %v959, %v1144
        %v1175 = vadd.f32 %v962, %v1159
        %v1176 = vld [vmem:[%s429] sm:$0xff]
        %v1177 = vld [vmem:[%s429 + $0x8] sm:$0xff]
        %v1178 = vld [vmem:[%s429 + $0x10] sm:$0xff]
        %v1179 = vld [vmem:[%s429 + $0x18] sm:$0xff]
        %v1180 = vld [vmem:[%s429 + $0x20] sm:$0xff]
        %v1181 = vld [vmem:[%s429 + $0x28] sm:$0xff]
        %v1182 = vld [vmem:[%s429 + $0x30] sm:$0xff]
        %v1183 = vld [vmem:[%s429 + $0x38] sm:$0xff]
        %s1184 = scalar_lea.vmem [#allocation6], 192
        %v1185 = vld [vmem:[%s1184] sm:$0xf]
        %v1186 = vld [vmem:[%s1184 + $0x4] sm:$0xf]
        %v1187 = vld [vmem:[%s1184 + $0x8] sm:$0xf]
        %v1188 = vld [vmem:[%s1184 + $0xc] sm:$0xf]
        %v1189 = vld [vmem:[%s1184 + $0x10] sm:$0xf]
        %v1190 = vld [vmem:[%s1184 + $0x14] sm:$0xf]
        %v1191 = vld [vmem:[%s1184 + $0x18] sm:$0xf]
        %v1192 = vld [vmem:[%s1184 + $0x1c] sm:$0xf]
        %v1193 = vld [vmem:[%s1184 + $0x20] sm:$0xf]
        %v1194 = vld [vmem:[%s1184 + $0x24] sm:$0xf]
        %v1195 = vld [vmem:[%s1184 + $0x28] sm:$0xf]
        %v1196 = vld [vmem:[%s1184 + $0x2c] sm:$0xf]
        %v1197 = vld [vmem:[%s1184 + $0x30] sm:$0xf]
        %v1198 = vld [vmem:[%s1184 + $0x34] sm:$0xf]
        %v1199 = vld [vmem:[%s1184 + $0x38] sm:$0xf]
        %v1200 = vld [vmem:[%s1184 + $0x3c] sm:$0xf]
        %v1217 = vunpack.c.l.b16 %v1185
        %v1218 = vunpack.c.l.b16 %v1186
        %v1219 = vunpack.c.l.b16 %v1187
        %v1220 = vunpack.c.l.b16 %v1188
        %v1221 = vunpack.c.l.b16 %v1189
        %v1222 = vunpack.c.l.b16 %v1190
        %v1223 = vunpack.c.l.b16 %v1191
        %v1224 = vunpack.c.l.b16 %v1192
        %v1225 = vunpack.c.l.b16 %v1193
        %v1226 = vunpack.c.l.b16 %v1194
        %v1227 = vunpack.c.l.b16 %v1195
        %v1228 = vunpack.c.l.b16 %v1196
        %v1229 = vunpack.c.l.b16 %v1197
        %v1230 = vunpack.c.l.b16 %v1198
        %v1231 = vunpack.c.l.b16 %v1199
        %v1232 = vunpack.c.l.b16 %v1200
        %v1233 = vpack.c.b16 %v1218, %v1217
        %v1234 = vpack.c.b16 %v1220, %v1219
        %v1235 = vpack.c.b16 %v1222, %v1221
        %v1236 = vpack.c.b16 %v1224, %v1223
        %v1237 = vpack.c.b16 %v1226, %v1225
        %v1238 = vpack.c.b16 %v1228, %v1227
        %v1239 = vpack.c.b16 %v1230, %v1229
        %v1240 = vpack.c.b16 %v1232, %v1231
        %1249 = vmatprep.subr.bf16.mxu0 0
        %1250 = vmatpush1.bf16.msra.mxu0 %v1233
        %1251 = vmatprep.subr.bf16.mxu0 0
        %1252 = vmatpush1.bf16.msra.mxu0 %v1234
        %1253 = vmatprep.subr.bf16.mxu0 0
        %1254 = vmatpush1.bf16.msra.mxu0 %v1235
        %1255 = vmatprep.subr.bf16.mxu0 0
        %1256 = vmatpush1.bf16.msra.mxu0 %v1236
        %1257 = vmatprep.subr.bf16.mxu0 0
        %1258 = vmatpush1.bf16.msra.mxu0 %v1237
        %1259 = vmatprep.subr.bf16.mxu0 0
        %1260 = vmatpush1.bf16.msra.mxu0 %v1238
        %1261 = vmatprep.subr.bf16.mxu0 0
        %1262 = vmatpush1.bf16.msra.mxu0 %v1239
        %1263 = vmatprep.subr.bf16.mxu0 0
        %1264 = vmatpush1.bf16.msra.mxu0 %v1240
        %1265 = vmatprep.subr.bf16.mxu0 0
        %1266 = vmatpush1.bf16.msra.mxu0 0
        %1267 = vmatprep.subr.bf16.mxu0 0
        %1268 = vmatpush1.bf16.msra.mxu0 0
        %1269 = vmatprep.subr.bf16.mxu0 0
        %1270 = vmatpush1.bf16.msra.mxu0 0
        %1271 = vmatprep.subr.bf16.mxu0 0
        %1272 = vmatpush1.bf16.msra.mxu0 0
        %1273 = vmatprep.subr.bf16.mxu0 0
        %1274 = vmatpush1.bf16.msra.mxu0 0
        %1275 = vmatprep.subr.bf16.mxu0 0
        %1276 = vmatpush1.bf16.msra.mxu0 0
        %1277 = vmatprep.subr.bf16.mxu0 0
        %1278 = vmatpush1.bf16.msra.mxu0 0
        %1279 = vmatprep.subr.bf16.mxu0 0
        %1280 = vmatpush1.bf16.msra.mxu0 0
        %1281 = vmatprep.mubr.bf16.mxu0 0
        %1282 = vmatmul.mubr.bf16.gmra.mrb[0].mxu0 %v1176
        %v1283 = vpop.f32.mrb[0].mxu0
        %v1284 = vadd.f32 0.0, %v1283
        %v1285 = vpop.f32.mrb[0].mxu0
        %v1286 = vpop.f32.mrb[0].mxu0
        %v1287 = vadd.f32 0.0, %v1286
        %v1288 = vpop.f32.mrb[0].mxu0
        %1289 = vmatprep.mubr.bf16.mxu0 0
        %1290 = vmatmul.mubr.bf16.gmra.mrb[0].mxu0 %v1177
        %v1291 = vpop.f32.mrb[0].mxu0
        %v1292 = vadd.f32 0.0, %v1291
        %v1293 = vpop.f32.mrb[0].mxu0
        %v1294 = vpop.f32.mrb[0].mxu0
        %v1295 = vadd.f32 0.0, %v1294
        %v1296 = vpop.f32.mrb[0].mxu0
        %1297 = vmatprep.mubr.bf16.mxu0 0
        %1298 = vmatmul.mubr.bf16.gmra.mrb[0].mxu0 %v1178
        %v1299 = vpop.f32.mrb[0].mxu0
        %v1300 = vadd.f32 0.0, %v1299
        %v1301 = vpop.f32.mrb[0].mxu0
        %v1302 = vpop.f32.mrb[0].mxu0
        %v1303 = vadd.f32 0.0, %v1302
        %v1304 = vpop.f32.mrb[0].mxu0
        %1305 = vmatprep.mubr.bf16.mxu0 0
        %1306 = vmatmul.mubr.bf16.gmra.mrb[0].mxu0 %v1179
        %v1307 = vpop.f32.mrb[0].mxu0
        %v1308 = vadd.f32 0.0, %v1307
        %v1309 = vpop.f32.mrb[0].mxu0
        %v1310 = vpop.f32.mrb[0].mxu0
        %v1311 = vadd.f32 0.0, %v1310
        %v1312 = vpop.f32.mrb[0].mxu0
        %1313 = vmatprep.mubr.bf16.mxu0 0
        %1314 = vmatmul.mubr.bf16.gmra.mrb[0].mxu0 %v1180
        %v1315 = vpop.f32.mrb[0].mxu0
        %v1316 = vadd.f32 0.0, %v1315
        %v1317 = vpop.f32.mrb[0].mxu0
        %v1318 = vpop.f32.mrb[0].mxu0
        %v1319 = vadd.f32 0.0, %v1318
        %v1320 = vpop.f32.mrb[0].mxu0
        %1321 = vmatprep.mubr.bf16.mxu0 0
        %1322 = vmatmul.mubr.bf16.gmra.mrb[0].mxu0 %v1181
        %v1323 = vpop.f32.mrb[0].mxu0
        %v1324 = vadd.f32 0.0, %v1323
        %v1325 = vpop.f32.mrb[0].mxu0
        %v1326 = vpop.f32.mrb[0].mxu0
        %v1327 = vadd.f32 0.0, %v1326
        %v1328 = vpop.f32.mrb[0].mxu0
        %1329 = vmatprep.mubr.bf16.mxu0 0
        %1330 = vmatmul.mubr.bf16.gmra.mrb[0].mxu0 %v1182
        %v1331 = vpop.f32.mrb[0].mxu0
        %v1332 = vadd.f32 0.0, %v1331
        %v1333 = vpop.f32.mrb[0].mxu0
        %v1334 = vpop.f32.mrb[0].mxu0
        %v1335 = vadd.f32 0.0, %v1334
        %v1336 = vpop.f32.mrb[0].mxu0
        %1337 = vmatprep.mubr.bf16.mxu0 0
        %1338 = vmatmul.mubr.bf16.gmra.mrb[0].mxu0 %v1183
        %v1339 = vpop.f32.mrb[0].mxu0
        %v1340 = vadd.f32 0.0, %v1339
        %v1341 = vpop.f32.mrb[0].mxu0
        %v1342 = vpop.f32.mrb[0].mxu0
        %v1343 = vadd.f32 0.0, %v1342
        %v1344 = vpop.f32.mrb[0].mxu0
        %1345 = vdwg.mxu0
        %v1346 = vadd.f32 %v1160, %v1284
        %v1347 = vadd.f32 %v1161, %v1287
        %v1348 = vadd.f32 %v1162, %v1292
        %v1349 = vadd.f32 %v1163, %v1295
        %v1350 = vadd.f32 %v1164, %v1300
        %v1351 = vadd.f32 %v1165, %v1303
        %v1352 = vadd.f32 %v1166, %v1308
        %v1353 = vadd.f32 %v1167, %v1311
        %v1354 = vadd.f32 %v1168, %v1316
        %v1355 = vadd.f32 %v1169, %v1319
        %v1356 = vadd.f32 %v1170, %v1324
        %v1357 = vadd.f32 %v1171, %v1327
        %v1358 = vadd.f32 %v1172, %v1332
        %v1359 = vadd.f32 %v1173, %v1335
        %v1360 = vadd.f32 %v1174, %v1340
        %v1361 = vadd.f32 %v1175, %v1343
        %s1362 = scalar_lea.vmem [#allocation6], 256
        %v1363 = vld [vmem:[%s1362] sm:$0xf]
        %v1364 = vld [vmem:[%s1362 + $0x4] sm:$0xf]
        %v1365 = vld [vmem:[%s1362 + $0x8] sm:$0xf]
        %v1366 = vld [vmem:[%s1362 + $0xc] sm:$0xf]
        %v1367 = vld [vmem:[%s1362 + $0x10] sm:$0xf]
        %v1368 = vld [vmem:[%s1362 + $0x14] sm:$0xf]
        %v1369 = vld [vmem:[%s1362 + $0x18] sm:$0xf]
        %v1370 = vld [vmem:[%s1362 + $0x1c] sm:$0xf]
        %v1371 = vld [vmem:[%s1362 + $0x20] sm:$0xf]
        %v1372 = vld [vmem:[%s1362 + $0x24] sm:$0xf]
        %v1373 = vld [vmem:[%s1362 + $0x28] sm:$0xf]
        %v1374 = vld [vmem:[%s1362 + $0x2c] sm:$0xf]
        %v1375 = vld [vmem:[%s1362 + $0x30] sm:$0xf]
        %v1376 = vld [vmem:[%s1362 + $0x34] sm:$0xf]
        %v1377 = vld [vmem:[%s1362 + $0x38] sm:$0xf]
        %v1378 = vld [vmem:[%s1362 + $0x3c] sm:$0xf]
        %v1395 = vunpack.c.l.b16 %v1363
        %v1396 = vunpack.c.l.b16 %v1364
        %v1397 = vunpack.c.l.b16 %v1365
        %v1398 = vunpack.c.l.b16 %v1366
        %v1399 = vunpack.c.l.b16 %v1367
        %v1400 = vunpack.c.l.b16 %v1368
        %v1401 = vunpack.c.l.b16 %v1369
        %v1402 = vunpack.c.l.b16 %v1370
        %v1403 = vunpack.c.l.b16 %v1371
        %v1404 = vunpack.c.l.b16 %v1372
        %v1405 = vunpack.c.l.b16 %v1373
        %v1406 = vunpack.c.l.b16 %v1374
        %v1407 = vunpack.c.l.b16 %v1375
        %v1408 = vunpack.c.l.b16 %v1376
        %v1409 = vunpack.c.l.b16 %v1377
        %v1410 = vunpack.c.l.b16 %v1378
        %v1411 = vpack.c.b16 %v1396, %v1395
        %v1412 = vpack.c.b16 %v1398, %v1397
        %v1413 = vpack.c.b16 %v1400, %v1399
        %v1414 = vpack.c.b16 %v1402, %v1401
        %v1415 = vpack.c.b16 %v1404, %v1403
        %v1416 = vpack.c.b16 %v1406, %v1405
        %v1417 = vpack.c.b16 %v1408, %v1407
        %v1418 = vpack.c.b16 %v1410, %v1409
        %1427 = vmatprep.subr.bf16.mxu0 0
        %1428 = vmatpush1.bf16.msra.mxu0 %v1411
        %1429 = vmatprep.subr.bf16.mxu0 0
        %1430 = vmatpush1.bf16.msra.mxu0 %v1412
        %1431 = vmatprep.subr.bf16.mxu0 0
        %1432 = vmatpush1.bf16.msra.mxu0 %v1413
        %1433 = vmatprep.subr.bf16.mxu0 0
        %1434 = vmatpush1.bf16.msra.mxu0 %v1414
        %1435 = vmatprep.subr.bf16.mxu0 0
        %1436 = vmatpush1.bf16.msra.mxu0 %v1415
        %1437 = vmatprep.subr.bf16.mxu0 0
        %1438 = vmatpush1.bf16.msra.mxu0 %v1416
        %1439 = vmatprep.subr.bf16.mxu0 0
        %1440 = vmatpush1.bf16.msra.mxu0 %v1417
        %1441 = vmatprep.subr.bf16.mxu0 0
        %1442 = vmatpush1.bf16.msra.mxu0 %v1418
        %1443 = vmatprep.subr.bf16.mxu0 0
        %1444 = vmatpush1.bf16.msra.mxu0 0
        %1445 = vmatprep.subr.bf16.mxu0 0
        %1446 = vmatpush1.bf16.msra.mxu0 0
        %1447 = vmatprep.subr.bf16.mxu0 0
        %1448 = vmatpush1.bf16.msra.mxu0 0
        %1449 = vmatprep.subr.bf16.mxu0 0
        %1450 = vmatpush1.bf16.msra.mxu0 0
        %1451 = vmatprep.subr.bf16.mxu0 0
        %1452 = vmatpush1.bf16.msra.mxu0 0
        %1453 = vmatprep.subr.bf16.mxu0 0
        %1454 = vmatpush1.bf16.msra.mxu0 0
        %1455 = vmatprep.subr.bf16.mxu0 0
        %1456 = vmatpush1.bf16.msra.mxu0 0
        %1457 = vmatprep.subr.bf16.mxu0 0
        %1458 = vmatpush1.bf16.msra.mxu0 0
        %1459 = vmatprep.mubr.bf16.mxu0 0
        %1460 = vmatmul.mubr.bf16.gmra.mrb[0].mxu0 %v1176
        %v1461 = vpop.f32.mrb[0].mxu0
        %v1462 = vadd.f32 0.0, %v1461
        %v1463 = vpop.f32.mrb[0].mxu0
        %v1464 = vpop.f32.mrb[0].mxu0
        %v1465 = vadd.f32 0.0, %v1464
        %v1466 = vpop.f32.mrb[0].mxu0
        %1467 = vmatprep.mubr.bf16.mxu0 0
        %1468 = vmatmul.mubr.bf16.gmra.mrb[0].mxu0 %v1177
        %v1469 = vpop.f32.mrb[0].mxu0
        %v1470 = vadd.f32 0.0, %v1469
        %v1471 = vpop.f32.mrb[0].mxu0
        %v1472 = vpop.f32.mrb[0].mxu0
        %v1473 = vadd.f32 0.0, %v1472
        %v1474 = vpop.f32.mrb[0].mxu0
        %1475 = vmatprep.mubr.bf16.mxu0 0
        %1476 = vmatmul.mubr.bf16.gmra.mrb[0].mxu0 %v1178
        %v1477 = vpop.f32.mrb[0].mxu0
        %v1478 = vadd.f32 0.0, %v1477
        %v1479 = vpop.f32.mrb[0].mxu0
        %v1480 = vpop.f32.mrb[0].mxu0
        %v1481 = vadd.f32 0.0, %v1480
        %v1482 = vpop.f32.mrb[0].mxu0
        %1483 = vmatprep.mubr.bf16.mxu0 0
        %1484 = vmatmul.mubr.bf16.gmra.mrb[0].mxu0 %v1179
        %v1485 = vpop.f32.mrb[0].mxu0
        %v1486 = vadd.f32 0.0, %v1485
        %v1487 = vpop.f32.mrb[0].mxu0
        %v1488 = vpop.f32.mrb[0].mxu0
        %v1489 = vadd.f32 0.0, %v1488
        %v1490 = vpop.f32.mrb[0].mxu0
        %1491 = vmatprep.mubr.bf16.mxu0 0
        %1492 = vmatmul.mubr.bf16.gmra.mrb[0].mxu0 %v1180
        %v1493 = vpop.f32.mrb[0].mxu0
        %v1494 = vadd.f32 0.0, %v1493
        %v1495 = vpop.f32.mrb[0].mxu0
        %v1496 = vpop.f32.mrb[0].mxu0
        %v1497 = vadd.f32 0.0, %v1496
        %v1498 = vpop.f32.mrb[0].mxu0
        %1499 = vmatprep.mubr.bf16.mxu0 0
        %1500 = vmatmul.mubr.bf16.gmra.mrb[0].mxu0 %v1181
        %v1501 = vpop.f32.mrb[0].mxu0
        %v1502 = vadd.f32 0.0, %v1501
        %v1503 = vpop.f32.mrb[0].mxu0
        %v1504 = vpop.f32.mrb[0].mxu0
        %v1505 = vadd.f32 0.0, %v1504
        %v1506 = vpop.f32.mrb[0].mxu0
        %1507 = vmatprep.mubr.bf16.mxu0 0
        %1508 = vmatmul.mubr.bf16.gmra.mrb[0].mxu0 %v1182
        %v1509 = vpop.f32.mrb[0].mxu0
        %v1510 = vadd.f32 0.0, %v1509
        %v1511 = vpop.f32.mrb[0].mxu0
        %v1512 = vpop.f32.mrb[0].mxu0
        %v1513 = vadd.f32 0.0, %v1512
        %v1514 = vpop.f32.mrb[0].mxu0
        %1515 = vmatprep.mubr.bf16.mxu0 0
        %1516 = vmatmul.mubr.bf16.gmra.mrb[0].mxu0 %v1183
        %v1517 = vpop.f32.mrb[0].mxu0
        %v1518 = vadd.f32 0.0, %v1517
        %v1519 = vpop.f32.mrb[0].mxu0
        %v1520 = vpop.f32.mrb[0].mxu0
        %v1521 = vadd.f32 0.0, %v1520
        %v1522 = vpop.f32.mrb[0].mxu0
        %1523 = vdwg.mxu0
        %v1524 = vrot.slane %v1462, 1
        %v1525 = vrot.slane %v1465, 1
        %v1526 = vrot.slane %v1470, 1
        %v1527 = vrot.slane %v1473, 1
        %v1528 = vrot.slane %v1478, 1
        %v1529 = vrot.slane %v1481, 1
        %v1530 = vrot.slane %v1486, 1
        %v1531 = vrot.slane %v1489, 1
        %v1532 = vrot.slane %v1494, 1
        %v1533 = vrot.slane %v1497, 1
        %v1534 = vrot.slane %v1502, 1
        %v1535 = vrot.slane %v1505, 1
        %v1536 = vrot.slane %v1510, 1
        %v1537 = vrot.slane %v1513, 1
        %v1538 = vrot.slane %v1518, 1
        %v1539 = vrot.slane %v1521, 1
        %v1540 = vsel %vm803, %v1538, %v1539
        %v1541 = vsel %vm803, %v1537, %v1538
        %v1542 = vsel %vm803, %v1536, %v1537
        %v1543 = vsel %vm803, %v1535, %v1536
        %v1544 = vsel %vm803, %v1534, %v1535
        %v1545 = vsel %vm803, %v1533, %v1534
        %v1546 = vsel %vm803, %v1532, %v1533
        %v1547 = vsel %vm803, %v1531, %v1532
        %v1548 = vsel %vm803, %v1530, %v1531
        %v1549 = vsel %vm803, %v1529, %v1530
        %v1550 = vsel %vm803, %v1528, %v1529
        %v1551 = vsel %vm803, %v1527, %v1528
        %v1552 = vsel %vm803, %v1526, %v1527
        %v1553 = vsel %vm803, %v1525, %v1526
        %v1554 = vsel %vm803, %v1524, %v1525
        %v1555 = vsel %vm803, %v1539, %v1524
        %v1556 = vadd.f32 %v1346, %v1554
        %v1557 = vadd.f32 %v1347, %v1553
        %v1558 = vadd.f32 %v1348, %v1552
        %v1559 = vadd.f32 %v1349, %v1551
        %v1560 = vadd.f32 %v1350, %v1550
        %v1561 = vadd.f32 %v1351, %v1549
        %v1562 = vadd.f32 %v1352, %v1548
        %v1563 = vadd.f32 %v1353, %v1547
        %v1564 = vadd.f32 %v1354, %v1546
        %v1565 = vadd.f32 %v1355, %v1545
        %v1566 = vadd.f32 %v1356, %v1544
        %v1567 = vadd.f32 %v1357, %v1543
        %v1568 = vadd.f32 %v1358, %v1542
        %v1569 = vadd.f32 %v1359, %v1541
        %v1570 = vadd.f32 %v1360, %v1540
        %v1571 = vadd.f32 %v1361, %v1555
        %s1572 = scalar_lea.vmem [#allocation6], 320
        %v1573 = vld [vmem:[%s1572] sm:$0xf]
        %v1574 = vld [vmem:[%s1572 + $0x4] sm:$0xf]
        %v1575 = vld [vmem:[%s1572 + $0x8] sm:$0xf]
        %v1576 = vld [vmem:[%s1572 + $0xc] sm:$0xf]
        %v1577 = vld [vmem:[%s1572 + $0x10] sm:$0xf]
        %v1578 = vld [vmem:[%s1572 + $0x14] sm:$0xf]
        %v1579 = vld [vmem:[%s1572 + $0x18] sm:$0xf]
        %v1580 = vld [vmem:[%s1572 + $0x1c] sm:$0xf]
        %v1581 = vld [vmem:[%s1572 + $0x20] sm:$0xf]
        %v1582 = vld [vmem:[%s1572 + $0x24] sm:$0xf]
        %v1583 = vld [vmem:[%s1572 + $0x28] sm:$0xf]
        %v1584 = vld [vmem:[%s1572 + $0x2c] sm:$0xf]
        %v1585 = vld [vmem:[%s1572 + $0x30] sm:$0xf]
        %v1586 = vld [vmem:[%s1572 + $0x34] sm:$0xf]
        %v1587 = vld [vmem:[%s1572 + $0x38] sm:$0xf]
        %v1588 = vld [vmem:[%s1572 + $0x3c] sm:$0xf]
        %v1605 = vunpack.c.l.b16 %v1573
        %v1606 = vunpack.c.l.b16 %v1574
        %v1607 = vunpack.c.l.b16 %v1575
        %v1608 = vunpack.c.l.b16 %v1576
        %v1609 = vunpack.c.l.b16 %v1577
        %v1610 = vunpack.c.l.b16 %v1578
        %v1611 = vunpack.c.l.b16 %v1579
        %v1612 = vunpack.c.l.b16 %v1580
        %v1613 = vunpack.c.l.b16 %v1581
        %v1614 = vunpack.c.l.b16 %v1582
        %v1615 = vunpack.c.l.b16 %v1583
        %v1616 = vunpack.c.l.b16 %v1584
        %v1617 = vunpack.c.l.b16 %v1585
        %v1618 = vunpack.c.l.b16 %v1586
        %v1619 = vunpack.c.l.b16 %v1587
        %v1620 = vunpack.c.l.b16 %v1588
        %v1621 = vpack.c.b16 %v1606, %v1605
        %v1622 = vpack.c.b16 %v1608, %v1607
        %v1623 = vpack.c.b16 %v1610, %v1609
        %v1624 = vpack.c.b16 %v1612, %v1611
        %v1625 = vpack.c.b16 %v1614, %v1613
        %v1626 = vpack.c.b16 %v1616, %v1615
        %v1627 = vpack.c.b16 %v1618, %v1617
        %v1628 = vpack.c.b16 %v1620, %v1619
        %1637 = vmatprep.subr.bf16.mxu0 0
        %1638 = vmatpush1.bf16.msra.mxu0 %v1621
        %1639 = vmatprep.subr.bf16.mxu0 0
        %1640 = vmatpush1.bf16.msra.mxu0 %v1622
        %1641 = vmatprep.subr.bf16.mxu0 0
        %1642 = vmatpush1.bf16.msra.mxu0 %v1623
        %1643 = vmatprep.subr.bf16.mxu0 0
        %1644 = vmatpush1.bf16.msra.mxu0 %v1624
        %1645 = vmatprep.subr.bf16.mxu0 0
        %1646 = vmatpush1.bf16.msra.mxu0 %v1625
        %1647 = vmatprep.subr.bf16.mxu0 0
        %1648 = vmatpush1.bf16.msra.mxu0 %v1626
        %1649 = vmatprep.subr.bf16.mxu0 0
        %1650 = vmatpush1.bf16.msra.mxu0 %v1627
        %1651 = vmatprep.subr.bf16.mxu0 0
        %1652 = vmatpush1.bf16.msra.mxu0 %v1628
        %1653 = vmatprep.subr.bf16.mxu0 0
        %1654 = vmatpush1.bf16.msra.mxu0 0
        %1655 = vmatprep.subr.bf16.mxu0 0
        %1656 = vmatpush1.bf16.msra.mxu0 0
        %1657 = vmatprep.subr.bf16.mxu0 0
        %1658 = vmatpush1.bf16.msra.mxu0 0
        %1659 = vmatprep.subr.bf16.mxu0 0
        %1660 = vmatpush1.bf16.msra.mxu0 0
        %1661 = vmatprep.subr.bf16.mxu0 0
        %1662 = vmatpush1.bf16.msra.mxu0 0
        %1663 = vmatprep.subr.bf16.mxu0 0
        %1664 = vmatpush1.bf16.msra.mxu0 0
        %1665 = vmatprep.subr.bf16.mxu0 0
        %1666 = vmatpush1.bf16.msra.mxu0 0
        %1667 = vmatprep.subr.bf16.mxu0 0
        %1668 = vmatpush1.bf16.msra.mxu0 0
        %1669 = vmatprep.mubr.bf16.mxu0 0
        %1670 = vmatmul.mubr.bf16.gmra.mrb[0].mxu0 %v1176
        %v1671 = vpop.f32.mrb[0].mxu0
        %v1672 = vadd.f32 0.0, %v1671
        %v1673 = vpop.f32.mrb[0].mxu0
        %v1674 = vpop.f32.mrb[0].mxu0
        %v1675 = vadd.f32 0.0, %v1674
        %v1676 = vpop.f32.mrb[0].mxu0
        %1677 = vmatprep.mubr.bf16.mxu0 0
        %1678 = vmatmul.mubr.bf16.gmra.mrb[0].mxu0 %v1177
        %v1679 = vpop.f32.mrb[0].mxu0
        %v1680 = vadd.f32 0.0, %v1679
        %v1681 = vpop.f32.mrb[0].mxu0
        %v1682 = vpop.f32.mrb[0].mxu0
        %v1683 = vadd.f32 0.0, %v1682
        %v1684 = vpop.f32.mrb[0].mxu0
        %1685 = vmatprep.mubr.bf16.mxu0 0
        %1686 = vmatmul.mubr.bf16.gmra.mrb[0].mxu0 %v1178
        %v1687 = vpop.f32.mrb[0].mxu0
        %v1688 = vadd.f32 0.0, %v1687
        %v1689 = vpop.f32.mrb[0].mxu0
        %v1690 = vpop.f32.mrb[0].mxu0
        %v1691 = vadd.f32 0.0, %v1690
        %v1692 = vpop.f32.mrb[0].mxu0
        %1693 = vmatprep.mubr.bf16.mxu0 0
        %1694 = vmatmul.mubr.bf16.gmra.mrb[0].mxu0 %v1179
        %v1695 = vpop.f32.mrb[0].mxu0
        %v1696 = vadd.f32 0.0, %v1695
        %v1697 = vpop.f32.mrb[0].mxu0
        %v1698 = vpop.f32.mrb[0].mxu0
        %v1699 = vadd.f32 0.0, %v1698
        %v1700 = vpop.f32.mrb[0].mxu0
        %1701 = vmatprep.mubr.bf16.mxu0 0
        %1702 = vmatmul.mubr.bf16.gmra.mrb[0].mxu0 %v1180
        %v1703 = vpop.f32.mrb[0].mxu0
        %v1704 = vadd.f32 0.0, %v1703
        %v1705 = vpop.f32.mrb[0].mxu0
        %v1706 = vpop.f32.mrb[0].mxu0
        %v1707 = vadd.f32 0.0, %v1706
        %v1708 = vpop.f32.mrb[0].mxu0
        %1709 = vmatprep.mubr.bf16.mxu0 0
        %1710 = vmatmul.mubr.bf16.gmra.mrb[0].mxu0 %v1181
        %v1711 = vpop.f32.mrb[0].mxu0
        %v1712 = vadd.f32 0.0, %v1711
        %v1713 = vpop.f32.mrb[0].mxu0
        %v1714 = vpop.f32.mrb[0].mxu0
        %v1715 = vadd.f32 0.0, %v1714
        %v1716 = vpop.f32.mrb[0].mxu0
        %1717 = vmatprep.mubr.bf16.mxu0 0
        %1718 = vmatmul.mubr.bf16.gmra.mrb[0].mxu0 %v1182
        %v1719 = vpop.f32.mrb[0].mxu0
        %v1720 = vadd.f32 0.0, %v1719
        %v1721 = vpop.f32.mrb[0].mxu0
        %v1722 = vpop.f32.mrb[0].mxu0
        %v1723 = vadd.f32 0.0, %v1722
        %v1724 = vpop.f32.mrb[0].mxu0
        %1725 = vmatprep.mubr.bf16.mxu0 0
        %1726 = vmatmul.mubr.bf16.gmra.mrb[0].mxu0 %v1183
        %v1727 = vpop.f32.mrb[0].mxu0
        %v1728 = vadd.f32 0.0, %v1727
        %v1729 = vpop.f32.mrb[0].mxu0
        %v1730 = vpop.f32.mrb[0].mxu0
        %v1731 = vadd.f32 0.0, %v1730
        %v1732 = vpop.f32.mrb[0].mxu0
        %1733 = vdwg.mxu0
        %v1734 = vrot.slane %v1672, 2
        %v1735 = vrot.slane %v1675, 2
        %v1736 = vrot.slane %v1680, 2
        %v1737 = vrot.slane %v1683, 2
        %v1738 = vrot.slane %v1688, 2
        %v1739 = vrot.slane %v1691, 2
        %v1740 = vrot.slane %v1696, 2
        %v1741 = vrot.slane %v1699, 2
        %v1742 = vrot.slane %v1704, 2
        %v1743 = vrot.slane %v1707, 2
        %v1744 = vrot.slane %v1712, 2
        %v1745 = vrot.slane %v1715, 2
        %v1746 = vrot.slane %v1720, 2
        %v1747 = vrot.slane %v1723, 2
        %v1748 = vrot.slane %v1728, 2
        %v1749 = vrot.slane %v1731, 2
        %v1750 = vsel %vm1143, %v1748, %v1749
        %v1751 = vsel %vm1143, %v1747, %v1748
        %v1752 = vsel %vm1143, %v1746, %v1747
        %v1753 = vsel %vm1143, %v1745, %v1746
        %v1754 = vsel %vm1143, %v1744, %v1745
        %v1755 = vsel %vm1143, %v1743, %v1744
        %v1756 = vsel %vm1143, %v1742, %v1743
        %v1757 = vsel %vm1143, %v1741, %v1742
        %v1758 = vsel %vm1143, %v1740, %v1741
        %v1759 = vsel %vm1143, %v1739, %v1740
        %v1760 = vsel %vm1143, %v1738, %v1739
        %v1761 = vsel %vm1143, %v1737, %v1738
        %v1762 = vsel %vm1143, %v1736, %v1737
        %v1763 = vsel %vm1143, %v1735, %v1736
        %v1764 = vsel %vm1143, %v1734, %v1735
        %v1765 = vsel %vm1143, %v1749, %v1734
        %v1766 = vadd.f32 %v1556, %v1764
        %v1767 = vadd.f32 %v1557, %v1763
        %v1768 = vadd.f32 %v1558, %v1762
        %v1769 = vadd.f32 %v1559, %v1761
        %v1770 = vadd.f32 %v1560, %v1760
        %v1771 = vadd.f32 %v1561, %v1759
        %v1772 = vadd.f32 %v1562, %v1758
        %v1773 = vadd.f32 %v1563, %v1757
        %v1774 = vadd.f32 %v1564, %v1756
        %v1775 = vadd.f32 %v1565, %v1755
        %v1776 = vadd.f32 %v1566, %v1754
        %v1777 = vadd.f32 %v1567, %v1753
        %v1778 = vadd.f32 %v1568, %v1752
        %v1779 = vadd.f32 %v1569, %v1751
        %v1780 = vadd.f32 %v1570, %v1750
        %v1781 = vadd.f32 %v1571, %v1765
        %s1782 = scalar_lea.vmem [#allocation2], 16
        %v1783 = vld [vmem:[%s1782] sm:$0xff]
        %v1784 = vld [vmem:[%s1782 + $0x8] sm:$0xff]
        %v1785 = vld [vmem:[%s1782 + $0x10] sm:$0xff]
        %v1786 = vld [vmem:[%s1782 + $0x18] sm:$0xff]
        %v1787 = vld [vmem:[%s1782 + $0x20] sm:$0xff]
        %v1788 = vld [vmem:[%s1782 + $0x28] sm:$0xff]
        %v1789 = vld [vmem:[%s1782 + $0x30] sm:$0xff]
        %v1790 = vld [vmem:[%s1782 + $0x38] sm:$0xff]
        %s1791 = scalar_lea.vmem [#allocation6], 384
        %v1792 = vld [vmem:[%s1791] sm:$0xf]
        %v1793 = vld [vmem:[%s1791 + $0x4] sm:$0xf]
        %v1794 = vld [vmem:[%s1791 + $0x8] sm:$0xf]
        %v1795 = vld [vmem:[%s1791 + $0xc] sm:$0xf]
        %v1796 = vld [vmem:[%s1791 + $0x10] sm:$0xf]
        %v1797 = vld [vmem:[%s1791 + $0x14] sm:$0xf]
        %v1798 = vld [vmem:[%s1791 + $0x18] sm:$0xf]
        %v1799 = vld [vmem:[%s1791 + $0x1c] sm:$0xf]
        %v1800 = vld [vmem:[%s1791 + $0x20] sm:$0xf]
        %v1801 = vld [vmem:[%s1791 + $0x24] sm:$0xf]
        %v1802 = vld [vmem:[%s1791 + $0x28] sm:$0xf]
        %v1803 = vld [vmem:[%s1791 + $0x2c] sm:$0xf]
        %v1804 = vld [vmem:[%s1791 + $0x30] sm:$0xf]
        %v1805 = vld [vmem:[%s1791 + $0x34] sm:$0xf]
        %v1806 = vld [vmem:[%s1791 + $0x38] sm:$0xf]
        %v1807 = vld [vmem:[%s1791 + $0x3c] sm:$0xf]
        %v1824 = vunpack.c.l.b16 %v1792
        %v1825 = vunpack.c.l.b16 %v1793
        %v1826 = vunpack.c.l.b16 %v1794
        %v1827 = vunpack.c.l.b16 %v1795
        %v1828 = vunpack.c.l.b16 %v1796
        %v1829 = vunpack.c.l.b16 %v1797
        %v1830 = vunpack.c.l.b16 %v1798
        %v1831 = vunpack.c.l.b16 %v1799
        %v1832 = vunpack.c.l.b16 %v1800
        %v1833 = vunpack.c.l.b16 %v1801
        %v1834 = vunpack.c.l.b16 %v1802
        %v1835 = vunpack.c.l.b16 %v1803
        %v1836 = vunpack.c.l.b16 %v1804
        %v1837 = vunpack.c.l.b16 %v1805
        %v1838 = vunpack.c.l.b16 %v1806
        %v1839 = vunpack.c.l.b16 %v1807
        %v1840 = vpack.c.b16 %v1825, %v1824
        %v1841 = vpack.c.b16 %v1827, %v1826
        %v1842 = vpack.c.b16 %v1829, %v1828
        %v1843 = vpack.c.b16 %v1831, %v1830
        %v1844 = vpack.c.b16 %v1833, %v1832
        %v1845 = vpack.c.b16 %v1835, %v1834
        %v1846 = vpack.c.b16 %v1837, %v1836
        %v1847 = vpack.c.b16 %v1839, %v1838
        %1856 = vmatprep.subr.bf16.mxu0 0
        %1857 = vmatpush1.bf16.msra.mxu0 %v1840
        %1858 = vmatprep.subr.bf16.mxu0 0
        %1859 = vmatpush1.bf16.msra.mxu0 %v1841
        %1860 = vmatprep.subr.bf16.mxu0 0
        %1861 = vmatpush1.bf16.msra.mxu0 %v1842
        %1862 = vmatprep.subr.bf16.mxu0 0
        %1863 = vmatpush1.bf16.msra.mxu0 %v1843
        %1864 = vmatprep.subr.bf16.mxu0 0
        %1865 = vmatpush1.bf16.msra.mxu0 %v1844
        %1866 = vmatprep.subr.bf16.mxu0 0
        %1867 = vmatpush1.bf16.msra.mxu0 %v1845
        %1868 = vmatprep.subr.bf16.mxu0 0
        %1869 = vmatpush1.bf16.msra.mxu0 %v1846
        %1870 = vmatprep.subr.bf16.mxu0 0
        %1871 = vmatpush1.bf16.msra.mxu0 %v1847
        %1872 = vmatprep.subr.bf16.mxu0 0
        %1873 = vmatpush1.bf16.msra.mxu0 0
        %1874 = vmatprep.subr.bf16.mxu0 0
        %1875 = vmatpush1.bf16.msra.mxu0 0
        %1876 = vmatprep.subr.bf16.mxu0 0
        %1877 = vmatpush1.bf16.msra.mxu0 0
        %1878 = vmatprep.subr.bf16.mxu0 0
        %1879 = vmatpush1.bf16.msra.mxu0 0
        %1880 = vmatprep.subr.bf16.mxu0 0
        %1881 = vmatpush1.bf16.msra.mxu0 0
        %1882 = vmatprep.subr.bf16.mxu0 0
        %1883 = vmatpush1.bf16.msra.mxu0 0
        %1884 = vmatprep.subr.bf16.mxu0 0
        %1885 = vmatpush1.bf16.msra.mxu0 0
        %1886 = vmatprep.subr.bf16.mxu0 0
        %1887 = vmatpush1.bf16.msra.mxu0 0
        %1888 = vmatprep.mubr.bf16.mxu0 0
        %1889 = vmatmul.mubr.bf16.gmra.mrb[0].mxu0 %v1783
        %v1890 = vpop.f32.mrb[0].mxu0
        %v1891 = vadd.f32 0.0, %v1890
        %v1892 = vpop.f32.mrb[0].mxu0
        %v1893 = vpop.f32.mrb[0].mxu0
        %v1894 = vadd.f32 0.0, %v1893
        %v1895 = vpop.f32.mrb[0].mxu0
        %1896 = vmatprep.mubr.bf16.mxu0 0
        %1897 = vmatmul.mubr.bf16.gmra.mrb[0].mxu0 %v1784
        %v1898 = vpop.f32.mrb[0].mxu0
        %v1899 = vadd.f32 0.0, %v1898
        %v1900 = vpop.f32.mrb[0].mxu0
        %v1901 = vpop.f32.mrb[0].mxu0
        %v1902 = vadd.f32 0.0, %v1901
        %v1903 = vpop.f32.mrb[0].mxu0
        %1904 = vmatprep.mubr.bf16.mxu0 0
        %1905 = vmatmul.mubr.bf16.gmra.mrb[0].mxu0 %v1785
        %v1906 = vpop.f32.mrb[0].mxu0
        %v1907 = vadd.f32 0.0, %v1906
        %v1908 = vpop.f32.mrb[0].mxu0
        %v1909 = vpop.f32.mrb[0].mxu0
        %v1910 = vadd.f32 0.0, %v1909
        %v1911 = vpop.f32.mrb[0].mxu0
        %1912 = vmatprep.mubr.bf16.mxu0 0
        %1913 = vmatmul.mubr.bf16.gmra.mrb[0].mxu0 %v1786
        %v1914 = vpop.f32.mrb[0].mxu0
        %v1915 = vadd.f32 0.0, %v1914
        %v1916 = vpop.f32.mrb[0].mxu0
        %v1917 = vpop.f32.mrb[0].mxu0
        %v1918 = vadd.f32 0.0, %v1917
        %v1919 = vpop.f32.mrb[0].mxu0
        %1920 = vmatprep.mubr.bf16.mxu0 0
        %1921 = vmatmul.mubr.bf16.gmra.mrb[0].mxu0 %v1787
        %v1922 = vpop.f32.mrb[0].mxu0
        %v1923 = vadd.f32 0.0, %v1922
        %v1924 = vpop.f32.mrb[0].mxu0
        %v1925 = vpop.f32.mrb[0].mxu0
        %v1926 = vadd.f32 0.0, %v1925
        %v1927 = vpop.f32.mrb[0].mxu0
        %1928 = vmatprep.mubr.bf16.mxu0 0
        %1929 = vmatmul.mubr.bf16.gmra.mrb[0].mxu0 %v1788
        %v1930 = vpop.f32.mrb[0].mxu0
        %v1931 = vadd.f32 0.0, %v1930
        %v1932 = vpop.f32.mrb[0].mxu0
        %v1933 = vpop.f32.mrb[0].mxu0
        %v1934 = vadd.f32 0.0, %v1933
        %v1935 = vpop.f32.mrb[0].mxu0
        %1936 = vmatprep.mubr.bf16.mxu0 0
        %1937 = vmatmul.mubr.bf16.gmra.mrb[0].mxu0 %v1789
        %v1938 = vpop.f32.mrb[0].mxu0
        %v1939 = vadd.f32 0.0, %v1938
        %v1940 = vpop.f32.mrb[0].mxu0
        %v1941 = vpop.f32.mrb[0].mxu0
        %v1942 = vadd.f32 0.0, %v1941
        %v1943 = vpop.f32.mrb[0].mxu0
        %1944 = vmatprep.mubr.bf16.mxu0 0
        %1945 = vmatmul.mubr.bf16.gmra.mrb[0].mxu0 %v1790
        %v1946 = vpop.f32.mrb[0].mxu0
        %v1947 = vadd.f32 0.0, %v1946
        %v1948 = vpop.f32.mrb[0].mxu0
        %v1949 = vpop.f32.mrb[0].mxu0
        %v1950 = vadd.f32 0.0, %v1949
        %v1951 = vpop.f32.mrb[0].mxu0
        %1952 = vdwg.mxu0
        %v1953 = vadd.f32 %v1766, %v1891
        %v1954 = vadd.f32 %v1767, %v1894
        %v1955 = vadd.f32 %v1768, %v1899
        %v1956 = vadd.f32 %v1769, %v1902
        %v1957 = vadd.f32 %v1770, %v1907
        %v1958 = vadd.f32 %v1771, %v1910
        %v1959 = vadd.f32 %v1772, %v1915
        %v1960 = vadd.f32 %v1773, %v1918
        %v1961 = vadd.f32 %v1774, %v1923
        %v1962 = vadd.f32 %v1775, %v1926
        %v1963 = vadd.f32 %v1776, %v1931
        %v1964 = vadd.f32 %v1777, %v1934
        %v1965 = vadd.f32 %v1778, %v1939
        %v1966 = vadd.f32 %v1779, %v1942
        %v1967 = vadd.f32 %v1780, %v1947
        %v1968 = vadd.f32 %v1781, %v1950
        %s1969 = scalar_lea.vmem [#allocation6], 448
        %v1970 = vld [vmem:[%s1969] sm:$0xf]
        %v1971 = vld [vmem:[%s1969 + $0x4] sm:$0xf]
        %v1972 = vld [vmem:[%s1969 + $0x8] sm:$0xf]
        %v1973 = vld [vmem:[%s1969 + $0xc] sm:$0xf]
        %v1974 = vld [vmem:[%s1969 + $0x10] sm:$0xf]
        %v1975 = vld [vmem:[%s1969 + $0x14] sm:$0xf]
        %v1976 = vld [vmem:[%s1969 + $0x18] sm:$0xf]
        %v1977 = vld [vmem:[%s1969 + $0x1c] sm:$0xf]
        %v1978 = vld [vmem:[%s1969 + $0x20] sm:$0xf]
        %v1979 = vld [vmem:[%s1969 + $0x24] sm:$0xf]
        %v1980 = vld [vmem:[%s1969 + $0x28] sm:$0xf]
        %v1981 = vld [vmem:[%s1969 + $0x2c] sm:$0xf]
        %v1982 = vld [vmem:[%s1969 + $0x30] sm:$0xf]
        %v1983 = vld [vmem:[%s1969 + $0x34] sm:$0xf]
        %v1984 = vld [vmem:[%s1969 + $0x38] sm:$0xf]
        %v1985 = vld [vmem:[%s1969 + $0x3c] sm:$0xf]
        %v2002 = vunpack.c.l.b16 %v1970
        %v2003 = vunpack.c.l.b16 %v1971
        %v2004 = vunpack.c.l.b16 %v1972
        %v2005 = vunpack.c.l.b16 %v1973
        %v2006 = vunpack.c.l.b16 %v1974
        %v2007 = vunpack.c.l.b16 %v1975
        %v2008 = vunpack.c.l.b16 %v1976
        %v2009 = vunpack.c.l.b16 %v1977
        %v2010 = vunpack.c.l.b16 %v1978
        %v2011 = vunpack.c.l.b16 %v1979
        %v2012 = vunpack.c.l.b16 %v1980
        %v2013 = vunpack.c.l.b16 %v1981
        %v2014 = vunpack.c.l.b16 %v1982
        %v2015 = vunpack.c.l.b16 %v1983
        %v2016 = vunpack.c.l.b16 %v1984
        %v2017 = vunpack.c.l.b16 %v1985
        %v2018 = vpack.c.b16 %v2003, %v2002
        %v2019 = vpack.c.b16 %v2005, %v2004
        %v2020 = vpack.c.b16 %v2007, %v2006
        %v2021 = vpack.c.b16 %v2009, %v2008
        %v2022 = vpack.c.b16 %v2011, %v2010
        %v2023 = vpack.c.b16 %v2013, %v2012
        %v2024 = vpack.c.b16 %v2015, %v2014
        %v2025 = vpack.c.b16 %v2017, %v2016
        %2034 = vmatprep.subr.bf16.mxu0 0
        %2035 = vmatpush1.bf16.msra.mxu0 %v2018
        %2036 = vmatprep.subr.bf16.mxu0 0
        %2037 = vmatpush1.bf16.msra.mxu0 %v2019
        %2038 = vmatprep.subr.bf16.mxu0 0
        %2039 = vmatpush1.bf16.msra.mxu0 %v2020
        %2040 = vmatprep.subr.bf16.mxu0 0
        %2041 = vmatpush1.bf16.msra.mxu0 %v2021
        %2042 = vmatprep.subr.bf16.mxu0 0
        %2043 = vmatpush1.bf16.msra.mxu0 %v2022
        %2044 = vmatprep.subr.bf16.mxu0 0
        %2045 = vmatpush1.bf16.msra.mxu0 %v2023
        %2046 = vmatprep.subr.bf16.mxu0 0
        %2047 = vmatpush1.bf16.msra.mxu0 %v2024
        %2048 = vmatprep.subr.bf16.mxu0 0
        %2049 = vmatpush1.bf16.msra.mxu0 %v2025
        %2050 = vmatprep.subr.bf16.mxu0 0
        %2051 = vmatpush1.bf16.msra.mxu0 0
        %2052 = vmatprep.subr.bf16.mxu0 0
        %2053 = vmatpush1.bf16.msra.mxu0 0
        %2054 = vmatprep.subr.bf16.mxu0 0
        %2055 = vmatpush1.bf16.msra.mxu0 0
        %2056 = vmatprep.subr.bf16.mxu0 0
        %2057 = vmatpush1.bf16.msra.mxu0 0
        %2058 = vmatprep.subr.bf16.mxu0 0
        %2059 = vmatpush1.bf16.msra.mxu0 0
        %2060 = vmatprep.subr.bf16.mxu0 0
        %2061 = vmatpush1.bf16.msra.mxu0 0
        %2062 = vmatprep.subr.bf16.mxu0 0
        %2063 = vmatpush1.bf16.msra.mxu0 0
        %2064 = vmatprep.subr.bf16.mxu0 0
        %2065 = vmatpush1.bf16.msra.mxu0 0
        %2066 = vmatprep.mubr.bf16.mxu0 0
        %2067 = vmatmul.mubr.bf16.gmra.mrb[0].mxu0 %v1783
        %v2068 = vpop.f32.mrb[0].mxu0
        %v2069 = vadd.f32 0.0, %v2068
        %v2070 = vpop.f32.mrb[0].mxu0
        %v2071 = vpop.f32.mrb[0].mxu0
        %v2072 = vadd.f32 0.0, %v2071
        %v2073 = vpop.f32.mrb[0].mxu0
        %2074 = vmatprep.mubr.bf16.mxu0 0
        %2075 = vmatmul.mubr.bf16.gmra.mrb[0].mxu0 %v1784
        %v2076 = vpop.f32.mrb[0].mxu0
        %v2077 = vadd.f32 0.0, %v2076
        %v2078 = vpop.f32.mrb[0].mxu0
        %v2079 = vpop.f32.mrb[0].mxu0
        %v2080 = vadd.f32 0.0, %v2079
        %v2081 = vpop.f32.mrb[0].mxu0
        %2082 = vmatprep.mubr.bf16.mxu0 0
        %2083 = vmatmul.mubr.bf16.gmra.mrb[0].mxu0 %v1785
        %v2084 = vpop.f32.mrb[0].mxu0
        %v2085 = vadd.f32 0.0, %v2084
        %v2086 = vpop.f32.mrb[0].mxu0
        %v2087 = vpop.f32.mrb[0].mxu0
        %v2088 = vadd.f32 0.0, %v2087
        %v2089 = vpop.f32.mrb[0].mxu0
        %2090 = vmatprep.mubr.bf16.mxu0 0
        %2091 = vmatmul.mubr.bf16.gmra.mrb[0].mxu0 %v1786
        %v2092 = vpop.f32.mrb[0].mxu0
        %v2093 = vadd.f32 0.0, %v2092
        %v2094 = vpop.f32.mrb[0].mxu0
        %v2095 = vpop.f32.mrb[0].mxu0
        %v2096 = vadd.f32 0.0, %v2095
        %v2097 = vpop.f32.mrb[0].mxu0
        %2098 = vmatprep.mubr.bf16.mxu0 0
        %2099 = vmatmul.mubr.bf16.gmra.mrb[0].mxu0 %v1787
        %v2100 = vpop.f32.mrb[0].mxu0
        %v2101 = vadd.f32 0.0, %v2100
        %v2102 = vpop.f32.mrb[0].mxu0
        %v2103 = vpop.f32.mrb[0].mxu0
        %v2104 = vadd.f32 0.0, %v2103
        %v2105 = vpop.f32.mrb[0].mxu0
        %2106 = vmatprep.mubr.bf16.mxu0 0
        %2107 = vmatmul.mubr.bf16.gmra.mrb[0].mxu0 %v1788
        %v2108 = vpop.f32.mrb[0].mxu0
        %v2109 = vadd.f32 0.0, %v2108
        %v2110 = vpop.f32.mrb[0].mxu0
        %v2111 = vpop.f32.mrb[0].mxu0
        %v2112 = vadd.f32 0.0, %v2111
        %v2113 = vpop.f32.mrb[0].mxu0
        %2114 = vmatprep.mubr.bf16.mxu0 0
        %2115 = vmatmul.mubr.bf16.gmra.mrb[0].mxu0 %v1789
        %v2116 = vpop.f32.mrb[0].mxu0
        %v2117 = vadd.f32 0.0, %v2116
        %v2118 = vpop.f32.mrb[0].mxu0
        %v2119 = vpop.f32.mrb[0].mxu0
        %v2120 = vadd.f32 0.0, %v2119
        %v2121 = vpop.f32.mrb[0].mxu0
        %2122 = vmatprep.mubr.bf16.mxu0 0
        %2123 = vmatmul.mubr.bf16.gmra.mrb[0].mxu0 %v1790
        %v2124 = vpop.f32.mrb[0].mxu0
        %v2125 = vadd.f32 0.0, %v2124
        %v2126 = vpop.f32.mrb[0].mxu0
        %v2127 = vpop.f32.mrb[0].mxu0
        %v2128 = vadd.f32 0.0, %v2127
        %v2129 = vpop.f32.mrb[0].mxu0
        %2130 = vdwg.mxu0
        %v2131 = vrot.slane %v2069, 1
        %v2132 = vrot.slane %v2072, 1
        %v2133 = vrot.slane %v2077, 1
        %v2134 = vrot.slane %v2080, 1
        %v2135 = vrot.slane %v2085, 1
        %v2136 = vrot.slane %v2088, 1
        %v2137 = vrot.slane %v2093, 1
        %v2138 = vrot.slane %v2096, 1
        %v2139 = vrot.slane %v2101, 1
        %v2140 = vrot.slane %v2104, 1
        %v2141 = vrot.slane %v2109, 1
        %v2142 = vrot.slane %v2112, 1
        %v2143 = vrot.slane %v2117, 1
        %v2144 = vrot.slane %v2120, 1
        %v2145 = vrot.slane %v2125, 1
        %v2146 = vrot.slane %v2128, 1
        %v2147 = vsel %vm803, %v2145, %v2146
        %v2148 = vsel %vm803, %v2144, %v2145
        %v2149 = vsel %vm803, %v2143, %v2144
        %v2150 = vsel %vm803, %v2142, %v2143
        %v2151 = vsel %vm803, %v2141, %v2142
        %v2152 = vsel %vm803, %v2140, %v2141
        %v2153 = vsel %vm803, %v2139, %v2140
        %v2154 = vsel %vm803, %v2138, %v2139
        %v2155 = vsel %vm803, %v2137, %v2138
        %v2156 = vsel %vm803, %v2136, %v2137
        %v2157 = vsel %vm803, %v2135, %v2136
        %v2158 = vsel %vm803, %v2134, %v2135
        %v2159 = vsel %vm803, %v2133, %v2134
        %v2160 = vsel %vm803, %v2132, %v2133
        %v2161 = vsel %vm803, %v2131, %v2132
        %v2162 = vsel %vm803, %v2146, %v2131
        %v2163 = vadd.f32 %v1953, %v2161
        %v2164 = vadd.f32 %v1954, %v2160
        %v2165 = vadd.f32 %v1955, %v2159
        %v2166 = vadd.f32 %v1956, %v2158
        %v2167 = vadd.f32 %v1957, %v2157
        %v2168 = vadd.f32 %v1958, %v2156
        %v2169 = vadd.f32 %v1959, %v2155
        %v2170 = vadd.f32 %v1960, %v2154
        %v2171 = vadd.f32 %v1961, %v2153
        %v2172 = vadd.f32 %v1962, %v2152
        %v2173 = vadd.f32 %v1963, %v2151
        %v2174 = vadd.f32 %v1964, %v2150
        %v2175 = vadd.f32 %v1965, %v2149
        %v2176 = vadd.f32 %v1966, %v2148
        %v2177 = vadd.f32 %v1967, %v2147
        %v2178 = vadd.f32 %v1968, %v2162
        %s2179 = scalar_lea.vmem [#allocation6], 512
        %v2180 = vld [vmem:[%s2179] sm:$0xf]
        %v2181 = vld [vmem:[%s2179 + $0x4] sm:$0xf]
        %v2182 = vld [vmem:[%s2179 + $0x8] sm:$0xf]
        %v2183 = vld [vmem:[%s2179 + $0xc] sm:$0xf]
        %v2184 = vld [vmem:[%s2179 + $0x10] sm:$0xf]
        %v2185 = vld [vmem:[%s2179 + $0x14] sm:$0xf]
        %v2186 = vld [vmem:[%s2179 + $0x18] sm:$0xf]
        %v2187 = vld [vmem:[%s2179 + $0x1c] sm:$0xf]
        %v2188 = vld [vmem:[%s2179 + $0x20] sm:$0xf]
        %v2189 = vld [vmem:[%s2179 + $0x24] sm:$0xf]
        %v2190 = vld [vmem:[%s2179 + $0x28] sm:$0xf]
        %v2191 = vld [vmem:[%s2179 + $0x2c] sm:$0xf]
        %v2192 = vld [vmem:[%s2179 + $0x30] sm:$0xf]
        %v2193 = vld [vmem:[%s2179 + $0x34] sm:$0xf]
        %v2194 = vld [vmem:[%s2179 + $0x38] sm:$0xf]
        %v2195 = vld [vmem:[%s2179 + $0x3c] sm:$0xf]
        %v2212 = vunpack.c.l.b16 %v2180
        %v2213 = vunpack.c.l.b16 %v2181
        %v2214 = vunpack.c.l.b16 %v2182
        %v2215 = vunpack.c.l.b16 %v2183
        %v2216 = vunpack.c.l.b16 %v2184
        %v2217 = vunpack.c.l.b16 %v2185
        %v2218 = vunpack.c.l.b16 %v2186
        %v2219 = vunpack.c.l.b16 %v2187
        %v2220 = vunpack.c.l.b16 %v2188
        %v2221 = vunpack.c.l.b16 %v2189
        %v2222 = vunpack.c.l.b16 %v2190
        %v2223 = vunpack.c.l.b16 %v2191
        %v2224 = vunpack.c.l.b16 %v2192
        %v2225 = vunpack.c.l.b16 %v2193
        %v2226 = vunpack.c.l.b16 %v2194
        %v2227 = vunpack.c.l.b16 %v2195
        %v2228 = vpack.c.b16 %v2213, %v2212
        %v2229 = vpack.c.b16 %v2215, %v2214
        %v2230 = vpack.c.b16 %v2217, %v2216
        %v2231 = vpack.c.b16 %v2219, %v2218
        %v2232 = vpack.c.b16 %v2221, %v2220
        %v2233 = vpack.c.b16 %v2223, %v2222
        %v2234 = vpack.c.b16 %v2225, %v2224
        %v2235 = vpack.c.b16 %v2227, %v2226
        %2244 = vmatprep.subr.bf16.mxu0 0
        %2245 = vmatpush1.bf16.msra.mxu0 %v2228
        %2246 = vmatprep.subr.bf16.mxu0 0
        %2247 = vmatpush1.bf16.msra.mxu0 %v2229
        %2248 = vmatprep.subr.bf16.mxu0 0
        %2249 = vmatpush1.bf16.msra.mxu0 %v2230
        %2250 = vmatprep.subr.bf16.mxu0 0
        %2251 = vmatpush1.bf16.msra.mxu0 %v2231
        %2252 = vmatprep.subr.bf16.mxu0 0
        %2253 = vmatpush1.bf16.msra.mxu0 %v2232
        %2254 = vmatprep.subr.bf16.mxu0 0
        %2255 = vmatpush1.bf16.msra.mxu0 %v2233
        %2256 = vmatprep.subr.bf16.mxu0 0
        %2257 = vmatpush1.bf16.msra.mxu0 %v2234
        %2258 = vmatprep.subr.bf16.mxu0 0
        %2259 = vmatpush1.bf16.msra.mxu0 %v2235
        %2260 = vmatprep.subr.bf16.mxu0 0
        %2261 = vmatpush1.bf16.msra.mxu0 0
        %2262 = vmatprep.subr.bf16.mxu0 0
        %2263 = vmatpush1.bf16.msra.mxu0 0
        %2264 = vmatprep.subr.bf16.mxu0 0
        %2265 = vmatpush1.bf16.msra.mxu0 0
        %2266 = vmatprep.subr.bf16.mxu0 0
        %2267 = vmatpush1.bf16.msra.mxu0 0
        %2268 = vmatprep.subr.bf16.mxu0 0
        %2269 = vmatpush1.bf16.msra.mxu0 0
        %2270 = vmatprep.subr.bf16.mxu0 0
        %2271 = vmatpush1.bf16.msra.mxu0 0
        %2272 = vmatprep.subr.bf16.mxu0 0
        %2273 = vmatpush1.bf16.msra.mxu0 0
        %2274 = vmatprep.subr.bf16.mxu0 0
        %2275 = vmatpush1.bf16.msra.mxu0 0
        %2276 = vmatprep.mubr.bf16.mxu0 0
        %2277 = vmatmul.mubr.bf16.gmra.mrb[0].mxu0 %v1783
        %v2278 = vpop.f32.mrb[0].mxu0
        %v2279 = vadd.f32 0.0, %v2278
        %v2280 = vpop.f32.mrb[0].mxu0
        %v2281 = vpop.f32.mrb[0].mxu0
        %v2282 = vadd.f32 0.0, %v2281
        %v2283 = vpop.f32.mrb[0].mxu0
        %2284 = vmatprep.mubr.bf16.mxu0 0
        %2285 = vmatmul.mubr.bf16.gmra.mrb[0].mxu0 %v1784
        %v2286 = vpop.f32.mrb[0].mxu0
        %v2287 = vadd.f32 0.0, %v2286
        %v2288 = vpop.f32.mrb[0].mxu0
        %v2289 = vpop.f32.mrb[0].mxu0
        %v2290 = vadd.f32 0.0, %v2289
        %v2291 = vpop.f32.mrb[0].mxu0
        %2292 = vmatprep.mubr.bf16.mxu0 0
        %2293 = vmatmul.mubr.bf16.gmra.mrb[0].mxu0 %v1785
        %v2294 = vpop.f32.mrb[0].mxu0
        %v2295 = vadd.f32 0.0, %v2294
        %v2296 = vpop.f32.mrb[0].mxu0
        %v2297 = vpop.f32.mrb[0].mxu0
        %v2298 = vadd.f32 0.0, %v2297
        %v2299 = vpop.f32.mrb[0].mxu0
        %2300 = vmatprep.mubr.bf16.mxu0 0
        %2301 = vmatmul.mubr.bf16.gmra.mrb[0].mxu0 %v1786
        %v2302 = vpop.f32.mrb[0].mxu0
        %v2303 = vadd.f32 0.0, %v2302
        %v2304 = vpop.f32.mrb[0].mxu0
        %v2305 = vpop.f32.mrb[0].mxu0
        %v2306 = vadd.f32 0.0, %v2305
        %v2307 = vpop.f32.mrb[0].mxu0
        %2308 = vmatprep.mubr.bf16.mxu0 0
        %2309 = vmatmul.mubr.bf16.gmra.mrb[0].mxu0 %v1787
        %v2310 = vpop.f32.mrb[0].mxu0
        %v2311 = vadd.f32 0.0, %v2310
        %v2312 = vpop.f32.mrb[0].mxu0
        %v2313 = vpop.f32.mrb[0].mxu0
        %v2314 = vadd.f32 0.0, %v2313
        %v2315 = vpop.f32.mrb[0].mxu0
        %2316 = vmatprep.mubr.bf16.mxu0 0
        %2317 = vmatmul.mubr.bf16.gmra.mrb[0].mxu0 %v1788
        %v2318 = vpop.f32.mrb[0].mxu0
        %v2319 = vadd.f32 0.0, %v2318
        %v2320 = vpop.f32.mrb[0].mxu0
        %v2321 = vpop.f32.mrb[0].mxu0
        %v2322 = vadd.f32 0.0, %v2321
        %v2323 = vpop.f32.mrb[0].mxu0
        %2324 = vmatprep.mubr.bf16.mxu0 0
        %2325 = vmatmul.mubr.bf16.gmra.mrb[0].mxu0 %v1789
        %v2326 = vpop.f32.mrb[0].mxu0
        %v2327 = vadd.f32 0.0, %v2326
        %v2328 = vpop.f32.mrb[0].mxu0
        %v2329 = vpop.f32.mrb[0].mxu0
        %v2330 = vadd.f32 0.0, %v2329
        %v2331 = vpop.f32.mrb[0].mxu0
        %2332 = vmatprep.mubr.bf16.mxu0 0
        %2333 = vmatmul.mubr.bf16.gmra.mrb[0].mxu0 %v1790
        %v2334 = vpop.f32.mrb[0].mxu0
        %v2335 = vadd.f32 0.0, %v2334
        %v2336 = vpop.f32.mrb[0].mxu0
        %v2337 = vpop.f32.mrb[0].mxu0
        %v2338 = vadd.f32 0.0, %v2337
        %v2339 = vpop.f32.mrb[0].mxu0
        %2340 = vdwg.mxu0
        %v2341 = vrot.slane %v2279, 2
        %v2342 = vrot.slane %v2282, 2
        %v2343 = vrot.slane %v2287, 2
        %v2344 = vrot.slane %v2290, 2
        %v2345 = vrot.slane %v2295, 2
        %v2346 = vrot.slane %v2298, 2
        %v2347 = vrot.slane %v2303, 2
        %v2348 = vrot.slane %v2306, 2
        %v2349 = vrot.slane %v2311, 2
        %v2350 = vrot.slane %v2314, 2
        %v2351 = vrot.slane %v2319, 2
        %v2352 = vrot.slane %v2322, 2
        %v2353 = vrot.slane %v2327, 2
        %v2354 = vrot.slane %v2330, 2
        %v2355 = vrot.slane %v2335, 2
        %v2356 = vrot.slane %v2338, 2
        %v2357 = vsel %vm1143, %v2355, %v2356
        %v2358 = vsel %vm1143, %v2354, %v2355
        %v2359 = vsel %vm1143, %v2353, %v2354
        %v2360 = vsel %vm1143, %v2352, %v2353
        %v2361 = vsel %vm1143, %v2351, %v2352
        %v2362 = vsel %vm1143, %v2350, %v2351
        %v2363 = vsel %vm1143, %v2349, %v2350
        %v2364 = vsel %vm1143, %v2348, %v2349
        %v2365 = vsel %vm1143, %v2347, %v2348
        %v2366 = vsel %vm1143, %v2346, %v2347
        %v2367 = vsel %vm1143, %v2345, %v2346
        %v2368 = vsel %vm1143, %v2344, %v2345
        %v2369 = vsel %vm1143, %v2343, %v2344
        %v2370 = vsel %vm1143, %v2342, %v2343
        %v2371 = vsel %vm1143, %v2341, %v2342
        %v2372 = vsel %vm1143, %v2356, %v2341
        %v2373 = vadd.f32 %v2163, %v2371
        %v2374 = vadd.f32 %v2164, %v2370
        %v2375 = vadd.f32 %v2165, %v2369
        %v2376 = vadd.f32 %v2166, %v2368
        %v2377 = vadd.f32 %v2167, %v2367
        %v2378 = vadd.f32 %v2168, %v2366
        %v2379 = vadd.f32 %v2169, %v2365
        %v2380 = vadd.f32 %v2170, %v2364
        %v2381 = vadd.f32 %v2171, %v2363
        %v2382 = vadd.f32 %v2172, %v2362
        %v2383 = vadd.f32 %v2173, %v2361
        %v2384 = vadd.f32 %v2174, %v2360
        %v2385 = vadd.f32 %v2175, %v2359
        %v2386 = vadd.f32 %v2176, %v2358
        %v2387 = vadd.f32 %v2177, %v2357
        %v2388 = vadd.f32 %v2178, %v2372
        %v2389 = vld [vmem:[%s4] sm:$0x1]
        %v2391 = vlaneseq
        %v2392 = vshrl.u32 %v2391, 7
        %v2393 = vsub.s32 0, %v2392
        %v2394 = vrot.slane %v2389, %v2393
        %v2396 = vadd.f32 %v2373, %v2394
        %v2397 = vadd.f32 %v2374, %v2394
        %v2398 = vadd.f32 %v2375, %v2394
        %v2399 = vadd.f32 %v2376, %v2394
        %v2400 = vadd.f32 %v2377, %v2394
        %v2401 = vadd.f32 %v2378, %v2394
        %v2402 = vadd.f32 %v2379, %v2394
        %v2403 = vadd.f32 %v2380, %v2394
        %v2404 = vadd.f32 %v2381, %v2394
        %v2405 = vadd.f32 %v2382, %v2394
        %v2406 = vadd.f32 %v2383, %v2394
        %v2407 = vadd.f32 %v2384, %v2394
        %v2408 = vadd.f32 %v2385, %v2394
        %v2409 = vadd.f32 %v2386, %v2394
        %v2410 = vadd.f32 %v2387, %v2394
        %v2411 = vadd.f32 %v2388, %v2394
        %v2412 = vmax.f32 %v2396, 0.0
        %v2413 = vmax.f32 %v2397, 0.0
        %v2414 = vmax.f32 %v2398, 0.0
        %v2415 = vmax.f32 %v2399, 0.0
        %v2416 = vmax.f32 %v2400, 0.0
        %v2417 = vmax.f32 %v2401, 0.0
        %v2418 = vmax.f32 %v2402, 0.0
        %v2419 = vmax.f32 %v2403, 0.0
        %v2420 = vmax.f32 %v2404, 0.0
        %v2421 = vmax.f32 %v2405, 0.0
        %v2422 = vmax.f32 %v2406, 0.0
        %v2423 = vmax.f32 %v2407, 0.0
        %v2424 = vmax.f32 %v2408, 0.0
        %v2425 = vmax.f32 %v2409, 0.0
        %v2426 = vmax.f32 %v2410, 0.0
        %v2427 = vmax.f32 %v2411, 0.0
        %v2428 = vpack.c.bf16 %v2413, %v2412
        %v2429 = vpack.c.bf16 %v2415, %v2414
        %v2430 = vpack.c.bf16 %v2417, %v2416
        %v2431 = vpack.c.bf16 %v2419, %v2418
        %v2432 = vpack.c.bf16 %v2421, %v2420
        %v2433 = vpack.c.bf16 %v2423, %v2422
        %v2434 = vpack.c.bf16 %v2425, %v2424
        %v2435 = vpack.c.bf16 %v2427, %v2426
        %v2436 = vld [vmem:[%s5] sm:$0xf]
        %v2437 = vld [vmem:[%s5 + $0x4] sm:$0xf]
        %v2438 = vld [vmem:[%s5 + $0x8] sm:$0xf]
        %v2439 = vld [vmem:[%s5 + $0xc] sm:$0xf]
        %v2440 = vld [vmem:[%s5 + $0x10] sm:$0xf]
        %v2441 = vld [vmem:[%s5 + $0x14] sm:$0xf]
        %v2442 = vld [vmem:[%s5 + $0x18] sm:$0xf]
        %v2443 = vld [vmem:[%s5 + $0x1c] sm:$0xf]
        %v2444 = vld [vmem:[%s5 + $0x20] sm:$0xf]
        %v2445 = vld [vmem:[%s5 + $0x24] sm:$0xf]
        %v2446 = vld [vmem:[%s5 + $0x28] sm:$0xf]
        %v2447 = vld [vmem:[%s5 + $0x2c] sm:$0xf]
        %v2448 = vld [vmem:[%s5 + $0x30] sm:$0xf]
        %v2449 = vld [vmem:[%s5 + $0x34] sm:$0xf]
        %v2450 = vld [vmem:[%s5 + $0x38] sm:$0xf]
        %v2451 = vld [vmem:[%s5 + $0x3c] sm:$0xf]
        %v2468 = vunpack.c.l.b16 %v2436
        %v2469 = vunpack.c.l.b16 %v2437
        %v2470 = vunpack.c.l.b16 %v2438
        %v2471 = vunpack.c.l.b16 %v2439
        %v2472 = vunpack.c.l.b16 %v2440
        %v2473 = vunpack.c.l.b16 %v2441
        %v2474 = vunpack.c.l.b16 %v2442
        %v2475 = vunpack.c.l.b16 %v2443
        %v2476 = vunpack.c.l.b16 %v2444
        %v2477 = vunpack.c.l.b16 %v2445
        %v2478 = vunpack.c.l.b16 %v2446
        %v2479 = vunpack.c.l.b16 %v2447
        %v2480 = vunpack.c.l.b16 %v2448
        %v2481 = vunpack.c.l.b16 %v2449
        %v2482 = vunpack.c.l.b16 %v2450
        %v2483 = vunpack.c.l.b16 %v2451
        %v2484 = vpack.c.b16 %v2469, %v2468
        %v2485 = vpack.c.b16 %v2471, %v2470
        %v2486 = vpack.c.b16 %v2473, %v2472
        %v2487 = vpack.c.b16 %v2475, %v2474
        %v2488 = vpack.c.b16 %v2477, %v2476
        %v2489 = vpack.c.b16 %v2479, %v2478
        %v2490 = vpack.c.b16 %v2481, %v2480
        %v2491 = vpack.c.b16 %v2483, %v2482
        %2500 = vmatprep.subr.bf16.mxu0 0
        %2501 = vmatpush1.bf16.msra.mxu0 %v2484
        %2502 = vmatprep.subr.bf16.mxu0 0
        %2503 = vmatpush1.bf16.msra.mxu0 %v2485
        %2504 = vmatprep.subr.bf16.mxu0 0
        %2505 = vmatpush1.bf16.msra.mxu0 %v2486
        %2506 = vmatprep.subr.bf16.mxu0 0
        %2507 = vmatpush1.bf16.msra.mxu0 %v2487
        %2508 = vmatprep.subr.bf16.mxu0 0
        %2509 = vmatpush1.bf16.msra.mxu0 %v2488
        %2510 = vmatprep.subr.bf16.mxu0 0
        %2511 = vmatpush1.bf16.msra.mxu0 %v2489
        %2512 = vmatprep.subr.bf16.mxu0 0
        %2513 = vmatpush1.bf16.msra.mxu0 %v2490
        %2514 = vmatprep.subr.bf16.mxu0 0
        %2515 = vmatpush1.bf16.msra.mxu0 %v2491
        %2516 = vmatprep.subr.bf16.mxu0 0
        %2517 = vmatpush1.bf16.msra.mxu0 0
        %2518 = vmatprep.subr.bf16.mxu0 0
        %2519 = vmatpush1.bf16.msra.mxu0 0
        %2520 = vmatprep.subr.bf16.mxu0 0
        %2521 = vmatpush1.bf16.msra.mxu0 0
        %2522 = vmatprep.subr.bf16.mxu0 0
        %2523 = vmatpush1.bf16.msra.mxu0 0
        %2524 = vmatprep.subr.bf16.mxu0 0
        %2525 = vmatpush1.bf16.msra.mxu0 0
        %2526 = vmatprep.subr.bf16.mxu0 0
        %2527 = vmatpush1.bf16.msra.mxu0 0
        %2528 = vmatprep.subr.bf16.mxu0 0
        %2529 = vmatpush1.bf16.msra.mxu0 0
        %2530 = vmatprep.subr.bf16.mxu0 0
        %2531 = vmatpush1.bf16.msra.mxu0 0
        %2532 = vmatprep.mubr.bf16.mxu0 0
        %2533 = vmatmul.mubr.bf16.gmra.mrb[0].mxu0 %v2428
        %v2534 = vpop.f32.mrb[0].mxu0
        %v2535 = vadd.f32 0.0, %v2534
        %v2536 = vpop.f32.mrb[0].mxu0
        %v2537 = vpop.f32.mrb[0].mxu0
        %v2538 = vpop.f32.mrb[0].mxu0
        %2539 = vmatprep.mubr.bf16.mxu0 0
        %2540 = vmatmul.mubr.bf16.gmra.mrb[0].mxu0 %v2429
        %v2541 = vpop.f32.mrb[0].mxu0
        %v2542 = vadd.f32 0.0, %v2541
        %v2543 = vpop.f32.mrb[0].mxu0
        %v2544 = vpop.f32.mrb[0].mxu0
        %v2545 = vpop.f32.mrb[0].mxu0
        %2546 = vmatprep.mubr.bf16.mxu0 0
        %2547 = vmatmul.mubr.bf16.gmra.mrb[0].mxu0 %v2430
        %v2548 = vpop.f32.mrb[0].mxu0
        %v2549 = vadd.f32 0.0, %v2548
        %v2550 = vpop.f32.mrb[0].mxu0
        %v2551 = vpop.f32.mrb[0].mxu0
        %v2552 = vpop.f32.mrb[0].mxu0
        %2553 = vmatprep.mubr.bf16.mxu0 0
        %2554 = vmatmul.mubr.bf16.gmra.mrb[0].mxu0 %v2431
        %v2555 = vpop.f32.mrb[0].mxu0
        %v2556 = vadd.f32 0.0, %v2555
        %v2557 = vpop.f32.mrb[0].mxu0
        %v2558 = vpop.f32.mrb[0].mxu0
        %v2559 = vpop.f32.mrb[0].mxu0
        %2560 = vmatprep.mubr.bf16.mxu0 0
        %2561 = vmatmul.mubr.bf16.gmra.mrb[0].mxu0 %v2432
        %v2562 = vpop.f32.mrb[0].mxu0
        %v2563 = vadd.f32 0.0, %v2562
        %v2564 = vpop.f32.mrb[0].mxu0
        %v2565 = vpop.f32.mrb[0].mxu0
        %v2566 = vpop.f32.mrb[0].mxu0
        %2567 = vmatprep.mubr.bf16.mxu0 0
        %2568 = vmatmul.mubr.bf16.gmra.mrb[0].mxu0 %v2433
        %v2569 = vpop.f32.mrb[0].mxu0
        %v2570 = vadd.f32 0.0, %v2569
        %v2571 = vpop.f32.mrb[0].mxu0
        %v2572 = vpop.f32.mrb[0].mxu0
        %v2573 = vpop.f32.mrb[0].mxu0
        %2574 = vmatprep.mubr.bf16.mxu0 0
        %2575 = vmatmul.mubr.bf16.gmra.mrb[0].mxu0 %v2434
        %v2576 = vpop.f32.mrb[0].mxu0
        %v2577 = vadd.f32 0.0, %v2576
        %v2578 = vpop.f32.mrb[0].mxu0
        %v2579 = vpop.f32.mrb[0].mxu0
        %v2580 = vpop.f32.mrb[0].mxu0
        %2581 = vmatprep.mubr.bf16.mxu0 0
        %2582 = vmatmul.mubr.bf16.gmra.mrb[0].mxu0 %v2435
        %v2583 = vpop.f32.mrb[0].mxu0
        %v2584 = vadd.f32 0.0, %v2583
        %v2585 = vpop.f32.mrb[0].mxu0
        %v2586 = vpop.f32.mrb[0].mxu0
        %v2587 = vpop.f32.mrb[0].mxu0
        %2588 = vdwg.mxu0
        %v2589 = vld [vmem:[%s277] sm:$0xff]
        %v2590 = vld [vmem:[%s277 + $0x8] sm:$0xff]
        %v2591 = vld [vmem:[%s277 + $0x10] sm:$0xff]
        %v2592 = vld [vmem:[%s277 + $0x18] sm:$0xff]
        %v2593 = vld [vmem:[%s277 + $0x20] sm:$0xff]
        %v2594 = vld [vmem:[%s277 + $0x28] sm:$0xff]
        %v2595 = vld [vmem:[%s277 + $0x30] sm:$0xff]
        %v2596 = vld [vmem:[%s277 + $0x38] sm:$0xff]
        %v2597 = vld [vmem:[%s6] sm:$0x1]
        %v2599 = vlaneseq
        %v2600 = vshrl.u32 %v2599, 7
        %v2601 = vsub.s32 0, %v2600
        %v2602 = vrot.slane %v2597, %v2601
        %v2604 = vadd.f32 %v2535, %v2602
        %v2605 = vadd.f32 %v2542, %v2602
        %v2606 = vadd.f32 %v2549, %v2602
        %v2607 = vadd.f32 %v2556, %v2602
        %v2608 = vadd.f32 %v2563, %v2602
        %v2609 = vadd.f32 %v2570, %v2602
        %v2610 = vadd.f32 %v2577, %v2602
        %v2611 = vadd.f32 %v2584, %v2602
        %v2612 = vadd.f32 %v2604, %v2589
        %v2613 = vadd.f32 %v2605, %v2590
        %v2614 = vadd.f32 %v2606, %v2591
        %v2615 = vadd.f32 %v2607, %v2592
        %v2616 = vadd.f32 %v2608, %v2593
        %v2617 = vadd.f32 %v2609, %v2594
        %v2618 = vadd.f32 %v2610, %v2595
        %v2619 = vadd.f32 %v2611, %v2596
        %v2620 = vmax.f32 %v2612, 0.0
        %v2621 = vmax.f32 %v2613, 0.0
        %v2622 = vmax.f32 %v2614, 0.0
        %v2623 = vmax.f32 %v2615, 0.0
        %v2624 = vmax.f32 %v2616, 0.0
        %v2625 = vmax.f32 %v2617, 0.0
        %v2626 = vmax.f32 %v2618, 0.0
        %v2627 = vmax.f32 %v2619, 0.0
        %2628 = vst.msk [vmem:[%s311] sm:$0xff] %vm340, %v2620
        %2629 = vst.msk [vmem:[%s311 + $0x8] sm:$0xff] %vm340, %v2621
        %2630 = vst.msk [vmem:[%s311 + $0x10] sm:$0xff] %vm340, %v2622
        %2631 = vst.msk [vmem:[%s311 + $0x18] sm:$0xff] %vm340, %v2623
        %2632 = vst.msk [vmem:[%s311 + $0x20] sm:$0xff] %vm340, %v2624
        %2633 = vst.msk [vmem:[%s311 + $0x28] sm:$0xff] %vm340, %v2625
        %2634 = vst.msk [vmem:[%s311 + $0x30] sm:$0xff] %vm340, %v2626
        %2635 = vst.msk [vmem:[%s311 + $0x38] sm:$0xff] %vm340, %v2627
        %s2636 = sand.u32 %s185, 1
        %s2637 = scalar_lea.sflag [#allocation5], %s2636
        %s2638 = sand.u32 %s185, 1
        %s2639 = smul.addr %s2638, 64
        %s2640 = scalar_lea.vmem [#allocation8], %s2639
        // Predicated region
        $region57: #{tpu_custom_call.1} parent=47 // pred_check
          %p2641 = pneg %p195
        $region58: #{tpu_custom_call.1} parent=47 // pred_check_branch
          %2643 = sbr.rel (%p2641) target = $region60
        $region59: #{tpu_custom_call.1} parent=47 // pred_region
          %s2645 = ssub.s32 1024, 1024
          %2646 = vsyncadd %s2637, %s2645
          %s2647 = smul.addr %s25, 8
          %s2648 = smul.addr %s2647, 128
          %s2649 = scalar_lea.hbm %s7, %s2648
          %s2650 = sshll.u32 %s2640, 4
          %s2651 = int_to_ptr.vmem [resolvable:$true] %s2650
          %2656 = dma.vmem_to_hbm [thread:$0]  %s2651, 1024, %s2649, %s2637, 128, 128, 8
        $region60: #{tpu_custom_call.1} parent=47 // pred_fallthru
          _
      $region48: #{tpu_custom_call.1} parent=5 // pred_fallthru
        _
      %p2657 = scmp.le.s32.totalorder 2, %s20
      // Predicated region
      $region61: #{tpu_custom_call.1} parent=5 // pred_check
        %p2658 = pneg %p2657
      $region62: #{tpu_custom_call.1} parent=5 // pred_check_branch
        %2660 = sbr.rel (%p2658) target = $region64
      $region63: #{tpu_custom_call.1} parent=5 // pred_region
        %s2661 = ssub.s32 %s20, 2
        // Predicated region
        $region65: #{tpu_custom_call.1} parent=63 // pred_check
          %p2662 = pneg %p201
        $region66: #{tpu_custom_call.1} parent=63 // pred_check_branch
          %2664 = sbr.rel (%p2662) target = $region68
        $region67: #{tpu_custom_call.1} parent=63 // pred_region
          %s2665 = sand.u32 %s186, 1
          %s2666 = scalar_lea.sflag [#allocation5], %s2665
          %s2667 = sand.u32 %s186, 1
          %s2668 = smul.addr %s2667, 64
          %s2669 = scalar_lea.vmem [#allocation8], %s2668
          %2670 = dma.done %s2666, 1024
        $region68: #{tpu_custom_call.1} parent=63 // pred_fallthru
          _
      $region64: #{tpu_custom_call.1} parent=5 // pred_fallthru
        _
    $region6: #{tpu_custom_call.1} parent=1 // loop_footer
      %s24 = sadd.s32 1, %s20
    $region7: #{tpu_custom_call.1} parent=1 // loop_footer_branch
      %19 = sbr.rel target = $region3
    $region8: #{tpu_custom_call.1} parent=1 // loop_exit
      _
    %2671 = vsyncpa [#allocation4], 1
    %s2672 = scalar_lea.sflag [#allocation4], 1
    %2673 = vsyncpa %s2672, 1
    %2674 = vsyncpa [#allocation7], 1
    %2675 = vsyncpa [#allocation5], 1
    %s2676 = scalar_lea.sflag [#allocation5], 1
    %2677 = vsyncpa %s2676, 1

// kernel: tpu_custom_call.1
$region0: #{tpu_custom_call.1}
  #allocation0 [shape = 'u32[]', space=smem, size = 0x4, offset = 0x4, fixed_abs, tag = 'smem constant byte address 0x4 - core index']
  #allocation1 [shape = 'u32[144,128]{1,0:T(1,128)}', space=vmem, size = 0x12000, scoped, tag = 'internal scratch']
  #allocation2 [shape = 'bf16[10,16,128]{2,1,0:T(16,128)(2,1)}', space=vmem, size = 0xa000, scoped, tag = 'scratch operand']
  %s0 = inlined_call_operand.hbm [shape: f32[2,8,8,16], index: 0, kind: input, shape index: {}]
  %s1 = inlined_call_operand.vmem [shape: bf16[16,128], index: 1, kind: input, shape index: {}]
  %s2 = inlined_call_operand.vmem [shape: f32[1,128], index: 2, kind: input, shape index: {}]
  %s3 = inlined_call_operand.hbm [shape: bf16[3,3,128,128], index: 3, kind: input, shape index: {}]
  %s4 = inlined_call_operand.vmem [shape: f32[1,128], index: 4, kind: input, shape index: {}]
  %s5 = inlined_call_operand.vmem [shape: bf16[128,16], index: 5, kind: input, shape index: {}]
  %s6 = inlined_call_operand.vmem [shape: f32[1,16], index: 6, kind: input, shape index: {}]
  %s7 = inlined_call_operand.hbm [shape: f32[2,8,8,16], index: 7, kind: output, shape index: {}]
  %s8 = sld [smem:[#allocation0]]
  $region69: #{tpu_custom_call.1} parent=0
    _
  %s10 = ssub.s32 1, %s8
  %s11 = scalar_select 0, %s10, %s8
  $region1: #{tpu_custom_call.1} parent=0
    #allocation3 [shape = 'u8[65536]{0}', space=vmem, size = 0x10000, scoped, tag = 'input window, operand 0']
    #allocation4 [shape = 's32[2]{0}', space=sflag, size = 0x8, scoped, tag = 'scoped memory for tpu_custom_call.1']
    #allocation5 [shape = 's32[2]{0}', space=sflag, size = 0x8, scoped, tag = 'scoped memory for tpu_custom_call.1']
    #allocation6 [shape = 'u8[294912]{0}', space=vmem, size = 0x48000, scoped, tag = 'input window, operand 3, single buffered']
    #allocation7 [shape = 's32[1]{0}', space=sflag, size = 0x4, scoped, tag = 'scoped memory for tpu_custom_call.1']
    #allocation8 [shape = 'u8[65536]{0}', space=vmem, size = 0x10000, scoped, tag = 'output window, operand 0']
    %12 = vsyncpa [#allocation4], 0
    %s13 = scalar_lea.sflag [#allocation4], 1
    %14 = vsyncpa %s13, 0
    %15 = vsyncpa [#allocation7], 0
    %16 = vsyncpa [#allocation5], 0
    %s17 = scalar_lea.sflag [#allocation5], 1
    %18 = vsyncpa %s17, 0
    loop: start=0, step=1, limit=4
    $region2: #{tpu_custom_call.1} parent=1 // loop_pre_header
      _
    $region3: #{tpu_custom_call.1} parent=1 // loop_header
      %s20 = sphi 0, %s24
      %p21 = scmp.ge.s32.totalorder %s20, 4
      %s30 = sphi 0, %s32
      %s33 = sphi 0, %s30
      %s34 = sphi 0, %s33
      %s50 = sphi 0, %s34
      %s54 = sphi 0, %s54
      %s56 = sphi 0, %s54
      %s57 = sphi 0, %s56
      %s71 = sphi 0, %s57
      %s75 = sphi 0, %s75
      %s77 = sphi 0, %s75
      %s78 = sphi 0, %s77
      %s92 = sphi 0, %s78
      %s96 = sphi 0, %s96
      %s98 = sphi 0, %s96
      %s99 = sphi 0, %s98
      %s113 = sphi 0, %s99
      %s117 = sphi 0, %s117
      %s119 = sphi 0, %s117
      %s120 = sphi 0, %s119
      %s134 = sphi 0, %s120
      %s138 = sphi 0, %s138
      %s140 = sphi 0, %s138
      %s141 = sphi 0, %s140
      %s155 = sphi 0, %s141
      %s159 = sphi 0, %s159
      %s161 = sphi 0, %s159
      %s162 = sphi 0, %s161
      %s176 = sphi 0, %s162
      %s182 = sphi 0, %s184
      %s185 = sphi 0, %s182
      %s186 = sphi 0, %s185
      %s202 = sphi 0, %s186
    $region4: #{tpu_custom_call.1} parent=1 // loop_header_branch
      %23 = sbr.rel (%p21) target = $region8
    $region5: #{tpu_custom_call.1} parent=1 // loop_body
      %s25 = ssub.s32 %s20, 1
      %s26 = ssub.s32 %s20, 2
      %s27 = sadd.s32 %s20, 1
      %s28 = ssub.s32 %s20, %s27
      %p29 = scmp.eq.s32.totalorder %s28, 0
      %s31 = sadd.s32 %s30, 1
      %s32 = scalar_select %p29, %s30, %s31
      %p35 = pneg %p29
      %p36 = scmp.eq.s32.totalorder %s20, 1
      %p37 = por %p35, %p36
      %p38 = scmp.ne.s32.totalorder %s30, %s33
      %p39 = scmp.eq.s32.totalorder %s20, 0
      %p40 = por %p38, %p39
      %p41 = scmp.ne.s32.totalorder %s30, %s33
      %p42 = scmp.eq.s32.totalorder %s25, 1
      %p43 = por %p41, %p42
      %p44 = scmp.ne.s32.totalorder %s33, %s34
      %p45 = scmp.eq.s32.totalorder %s25, 0
      %p46 = por %p44, %p45
      %p47 = scmp.ne.s32.totalorder %s33, %s34
      %p48 = scmp.eq.s32.totalorder %s26, 1
      %p49 = por %p47, %p48
      %p51 = scmp.ne.s32.totalorder %s34, %s50
      %p52 = scmp.eq.s32.totalorder %s26, 0
      %p53 = por %p51, %p52
      %s55 = sadd.s32 %s54, 1
      %p58 = scmp.eq.s32.totalorder %s20, 1
      %p59 = scmp.ne.s32.totalorder %s54, %s56
      %p60 = scmp.eq.s32.totalorder %s20, 0
      %p61 = por %p59, %p60
      %p62 = scmp.ne.s32.totalorder %s54, %s56
      %p63 = scmp.eq.s32.totalorder %s25, 1
      %p64 = por %p62, %p63
      %p65 = scmp.ne.s32.totalorder %s56, %s57
      %p66 = scmp.eq.s32.totalorder %s25, 0
      %p67 = por %p65, %p66
      %p68 = scmp.ne.s32.totalorder %s56, %s57
      %p69 = scmp.eq.s32.totalorder %s26, 1
      %p70 = por %p68, %p69
      %p72 = scmp.ne.s32.totalorder %s57, %s71
      %p73 = scmp.eq.s32.totalorder %s26, 0
      %p74 = por %p72, %p73
      %s76 = sadd.s32 %s75, 1
      %p79 = scmp.eq.s32.totalorder %s20, 1
      %p80 = scmp.ne.s32.totalorder %s75, %s77
      %p81 = scmp.eq.s32.totalorder %s20, 0
      %p82 = por %p80, %p81
      %p83 = scmp.ne.s32.totalorder %s75, %s77
      %p84 = scmp.eq.s32.totalorder %s25, 1
      %p85 = por %p83, %p84
      %p86 = scmp.ne.s32.totalorder %s77, %s78
      %p87 = scmp.eq.s32.totalorder %s25, 0
      %p88 = por %p86, %p87
      %p89 = scmp.ne.s32.totalorder %s77, %s78
      %p90 = scmp.eq.s32.totalorder %s26, 1
      %p91 = por %p89, %p90
      %p93 = scmp.ne.s32.totalorder %s78, %s92
      %p94 = scmp.eq.s32.totalorder %s26, 0
      %p95 = por %p93, %p94
      %s97 = sadd.s32 %s96, 1
      %p100 = scmp.eq.s32.totalorder %s20, 1
      %p101 = scmp.ne.s32.totalorder %s96, %s98
      %p102 = scmp.eq.s32.totalorder %s20, 0
      %p103 = por %p101, %p102
      %p104 = scmp.ne.s32.totalorder %s96, %s98
      %p105 = scmp.eq.s32.totalorder %s25, 1
      %p106 = por %p104, %p105
      %p107 = scmp.ne.s32.totalorder %s98, %s99
      %p108 = scmp.eq.s32.totalorder %s25, 0
      %p109 = por %p107, %p108
      %p110 = scmp.ne.s32.totalorder %s98, %s99
      %p111 = scmp.eq.s32.totalorder %s26, 1
      %p112 = por %p110, %p111
      %p114 = scmp.ne.s32.totalorder %s99, %s113
      %p115 = scmp.eq.s32.totalorder %s26, 0
      %p116 = por %p114, %p115
      %s118 = sadd.s32 %s117, 1
      %p121 = scmp.eq.s32.totalorder %s20, 1
      %p122 = scmp.ne.s32.totalorder %s117, %s119
      %p123 = scmp.eq.s32.totalorder %s20, 0
      %p124 = por %p122, %p123
      %p125 = scmp.ne.s32.totalorder %s117, %s119
      %p126 = scmp.eq.s32.totalorder %s25, 1
      %p127 = por %p125, %p126
      %p128 = scmp.ne.s32.totalorder %s119, %s120
      %p129 = scmp.eq.s32.totalorder %s25, 0
      %p130 = por %p128, %p129
      %p131 = scmp.ne.s32.totalorder %s119, %s120
      %p132 = scmp.eq.s32.totalorder %s26, 1
      %p133 = por %p131, %p132
      %p135 = scmp.ne.s32.totalorder %s120, %s134
      %p136 = scmp.eq.s32.totalorder %s26, 0
      %p137 = por %p135, %p136
      %s139 = sadd.s32 %s138, 1
      %p142 = scmp.eq.s32.totalorder %s20, 1
      %p143 = scmp.ne.s32.totalorder %s138, %s140
      %p144 = scmp.eq.s32.totalorder %s20, 0
      %p145 = por %p143, %p144
      %p146 = scmp.ne.s32.totalorder %s138, %s140
      %p147 = scmp.eq.s32.totalorder %s25, 1
      %p148 = por %p146, %p147
      %p149 = scmp.ne.s32.totalorder %s140, %s141
      %p150 = scmp.eq.s32.totalorder %s25, 0
      %p151 = por %p149, %p150
      %p152 = scmp.ne.s32.totalorder %s140, %s141
      %p153 = scmp.eq.s32.totalorder %s26, 1
      %p154 = por %p152, %p153
      %p156 = scmp.ne.s32.totalorder %s141, %s155
      %p157 = scmp.eq.s32.totalorder %s26, 0
      %p158 = por %p156, %p157
      %s160 = sadd.s32 %s159, 1
      %p163 = scmp.eq.s32.totalorder %s20, 1
      %p164 = scmp.ne.s32.totalorder %s159, %s161
      %p165 = scmp.eq.s32.totalorder %s20, 0
      %p166 = por %p164, %p165
      %p167 = scmp.ne.s32.totalorder %s159, %s161
      %p168 = scmp.eq.s32.totalorder %s25, 1
      %p169 = por %p167, %p168
      %p170 = scmp.ne.s32.totalorder %s161, %s162
      %p171 = scmp.eq.s32.totalorder %s25, 0
      %p172 = por %p170, %p171
      %p173 = scmp.ne.s32.totalorder %s161, %s162
      %p174 = scmp.eq.s32.totalorder %s26, 1
      %p175 = por %p173, %p174
      %p177 = scmp.ne.s32.totalorder %s162, %s176
      %p178 = scmp.eq.s32.totalorder %s26, 0
      %p179 = por %p177, %p178
      %s180 = ssub.s32 %s20, %s27
      %p181 = scmp.eq.s32.totalorder %s180, 0
      %s183 = sadd.s32 %s182, 1
      %s184 = scalar_select %p181, %s182, %s183
      %p187 = pneg %p181
      %p188 = scmp.eq.s32.totalorder %s20, 1
      %p189 = por %p187, %p188
      %p190 = scmp.ne.s32.totalorder %s182, %s185
      %p191 = scmp.eq.s32.totalorder %s20, 0
      %p192 = por %p190, %p191
      %p193 = scmp.ne.s32.totalorder %s182, %s185
      %p194 = scmp.eq.s32.totalorder %s25, 1
      %p195 = por %p193, %p194
      %p196 = scmp.ne.s32.totalorder %s185, %s186
      %p197 = scmp.eq.s32.totalorder %s25, 0
      %p198 = por %p196, %p197
      %p199 = scmp.ne.s32.totalorder %s185, %s186
      %p200 = scmp.eq.s32.totalorder %s26, 1
      %p201 = por %p199, %p200
      %p203 = scmp.ne.s32.totalorder %s186, %s202
      %p204 = scmp.eq.s32.totalorder %s26, 0
      %p205 = por %p203, %p204
      %p206 = scmp.le.s32.totalorder 1, %s20
      %p207 = scmp.lt.s32.totalorder %s20, 3
      %p208 = pnand %p206, %p207
      %p209 = pneg %p208
      // Predicated region
      $region9: #{tpu_custom_call.1} parent=5 // pred_check
        _
      $region10: #{tpu_custom_call.1} parent=5 // pred_check_branch
        %211 = sbr.rel (%p208) target = $region12
      $region11: #{tpu_custom_call.1} parent=5 // pred_region
        %s212 = ssub.s32 %s20, 1
        // Predicated region
        $region13: #{tpu_custom_call.1} parent=11 // pred_check
          %p213 = pneg %p67
        $region14: #{tpu_custom_call.1} parent=11 // pred_check_branch
          %215 = sbr.rel (%p213) target = $region16
        $region15: #{tpu_custom_call.1} parent=11 // pred_region
          _
        $region16: #{tpu_custom_call.1} parent=11 // pred_fallthru
          _
        // Predicated region
        $region17: #{tpu_custom_call.1} parent=11 // pred_check
          %p216 = pneg %p88
        $region18: #{tpu_custom_call.1} parent=11 // pred_check_branch
          %218 = sbr.rel (%p216) target = $region20
        $region19: #{tpu_custom_call.1} parent=11 // pred_region
          _
        $region20: #{tpu_custom_call.1} parent=11 // pred_fallthru
          _
        // Predicated region
        $region21: #{tpu_custom_call.1} parent=11 // pred_check
          %p219 = pneg %p109
        $region22: #{tpu_custom_call.1} parent=11 // pred_check_branch
          %221 = sbr.rel (%p219) target = $region24
        $region23: #{tpu_custom_call.1} parent=11 // pred_region
          %s223 = ssub.s32 9216, 9216
          %224 = vsyncadd [#allocation7], %s223
          %s225 = sshll.u32 [#allocation6], 4
          %s226 = int_to_ptr.vmem [resolvable:$true] %s225
          %231 = dma.hbm_to_vmem [thread:$0]  %s3, 9216, %s226, [#allocation7], 64, 64, 4
        $region24: #{tpu_custom_call.1} parent=11 // pred_fallthru
          _
        // Predicated region
        $region25: #{tpu_custom_call.1} parent=11 // pred_check
          %p232 = pneg %p130
        $region26: #{tpu_custom_call.1} parent=11 // pred_check_branch
          %234 = sbr.rel (%p232) target = $region28
        $region27: #{tpu_custom_call.1} parent=11 // pred_region
          _
        $region28: #{tpu_custom_call.1} parent=11 // pred_fallthru
          _
        // Predicated region
        $region29: #{tpu_custom_call.1} parent=11 // pred_check
          %p235 = pneg %p151
        $region30: #{tpu_custom_call.1} parent=11 // pred_check_branch
          %237 = sbr.rel (%p235) target = $region32
        $region31: #{tpu_custom_call.1} parent=11 // pred_region
          _
        $region32: #{tpu_custom_call.1} parent=11 // pred_fallthru
          _
        // Predicated region
        $region33: #{tpu_custom_call.1} parent=11 // pred_check
          %p238 = pneg %p172
        $region34: #{tpu_custom_call.1} parent=11 // pred_check_branch
          %240 = sbr.rel (%p238) target = $region36
        $region35: #{tpu_custom_call.1} parent=11 // pred_region
          _
        $region36: #{tpu_custom_call.1} parent=11 // pred_fallthru
          _
      $region12: #{tpu_custom_call.1} parent=5 // pred_fallthru
        _
      %p241 = scmp.lt.s32.totalorder %s20, 2
      // Predicated region
      $region37: #{tpu_custom_call.1} parent=5 // pred_check
        %p242 = pneg %p241
      $region38: #{tpu_custom_call.1} parent=5 // pred_check_branch
        %244 = sbr.rel (%p242) target = $region40
      $region39: #{tpu_custom_call.1} parent=5 // pred_region
        // Predicated region
        $region41: #{tpu_custom_call.1} parent=39 // pred_check
          %p245 = pneg %p40
        $region42: #{tpu_custom_call.1} parent=39 // pred_check_branch
          %247 = sbr.rel (%p245) target = $region44
        $region43: #{tpu_custom_call.1} parent=39 // pred_region
          %s248 = sand.u32 %s30, 1
          %s249 = scalar_lea.sflag [#allocation4], %s248
          %s250 = sand.u32 %s30, 1
          %s251 = smul.addr %s250, 64
          %s252 = scalar_lea.vmem [#allocation3], %s251
          %s254 = ssub.s32 1024, 1024
          %255 = vsyncadd %s249, %s254
          %s256 = smul.addr %s20, 8
          %s257 = smul.addr %s256, 128
          %s258 = scalar_lea.hbm %s0, %s257
          %s259 = sshll.u32 %s252, 4
          %s260 = int_to_ptr.vmem [resolvable:$true] %s259
          %265 = dma.hbm_to_vmem [thread:$0]  %s258, 1024, %s260, %s249, 128, 128, 8
        $region44: #{tpu_custom_call.1} parent=39 // pred_fallthru
          _
      $region40: #{tpu_custom_call.1} parent=5 // pred_fallthru
        _
      %p266 = scmp.le.s32.totalorder 1, %s20
      %p267 = scmp.lt.s32.totalorder %s20, 3
      %p268 = pnand %p266, %p267
      %p269 = pneg %p268
      // Predicated region
      $region45: #{tpu_custom_call.1} parent=5 // pred_check
        _
      $region46: #{tpu_custom_call.1} parent=5 // pred_check_branch
        %271 = sbr.rel (%p268) target = $region48
      $region47: #{tpu_custom_call.1} parent=5 // pred_region
        %s272 = ssub.s32 %s20, 1
        %s273 = sand.u32 %s33, 1
        %s274 = scalar_lea.sflag [#allocation4], %s273
        %s275 = sand.u32 %s33, 1
        %s276 = smul.addr %s275, 64
        %s277 = scalar_lea.vmem [#allocation3], %s276
        // Predicated region
        $region49: #{tpu_custom_call.1} parent=47 // pred_check
          %p278 = pneg %p46
        $region50: #{tpu_custom_call.1} parent=47 // pred_check_branch
          %280 = sbr.rel (%p278) target = $region52
        $region51: #{tpu_custom_call.1} parent=47 // pred_region
          %281 = dma.done %s274, 1024
        $region52: #{tpu_custom_call.1} parent=47 // pred_fallthru
          _
        // Predicated region
        $region53: #{tpu_custom_call.1} parent=47 // pred_check
          %p282 = pneg %p109
        $region54: #{tpu_custom_call.1} parent=47 // pred_check_branch
          %284 = sbr.rel (%p282) target = $region56
        $region55: #{tpu_custom_call.1} parent=47 // pred_region
          %285 = dma.done [#allocation7], 9216
        $region56: #{tpu_custom_call.1} parent=47 // pred_fallthru
          _
        %s286 = sand.u32 %s33, 1
        %s287 = scalar_lea.sflag [#allocation4], %s286
        %s288 = sand.u32 %s33, 1
        %s289 = smul.addr %s288, 64
        %s290 = scalar_lea.vmem [#allocation3], %s289
        %p291 = pneg %p46
        %p292 = pneg %p43
        %p293 = pneg %p67
        %p294 = pneg %p64
        %p295 = pneg %p88
        %p296 = pneg %p85
        %p297 = pneg %p109
        %p298 = pneg %p106
        %p299 = pneg %p130
        %p300 = pneg %p127
        %p301 = pneg %p151
        %p302 = pneg %p148
        %p303 = pneg %p172
        %p304 = pneg %p169
        %p305 = pneg %p198
        %p306 = pneg %p195
        %s307 = sand.u32 %s185, 1
        %s308 = scalar_lea.sflag [#allocation5], %s307
        %s309 = sand.u32 %s185, 1
        %s310 = smul.addr %s309, 64
        %s311 = scalar_lea.vmem [#allocation8], %s310
        %v313 = vld [vmem:[%s277] sm:$0xff]
        %v314 = vld [vmem:[%s277 + $0x8] sm:$0xff]
        %v315 = vld [vmem:[%s277 + $0x10] sm:$0xff]
        %v316 = vld [vmem:[%s277 + $0x18] sm:$0xff]
        %v317 = vld [vmem:[%s277 + $0x20] sm:$0xff]
        %v318 = vld [vmem:[%s277 + $0x28] sm:$0xff]
        %v319 = vld [vmem:[%s277 + $0x30] sm:$0xff]
        %v320 = vld [vmem:[%s277 + $0x38] sm:$0xff]
        %v321 = vpack.c.bf16 %v314, %v313
        %v322 = vpack.c.bf16 %v316, %v315
        %v323 = vpack.c.bf16 %v318, %v317
        %v324 = vpack.c.bf16 %v320, %v319
        %v325 = vld [vmem:[%s1] sm:$0xf]
        %v326 = vld [vmem:[%s1 + $0x4] sm:$0xf]
        %v327 = vld [vmem:[%s2] sm:$0x1]
        %v329 = vlaneseq
        %v330 = vshrl.u32 %v329, 7
        %v331 = vsub.s32 0, %v330
        %v332 = vrot.slane %v327, %v331
        %v336 = vunpack.c.l.b16 %v325
        %v337 = vunpack.c.l.b16 %v326
        %v338 = vpack.c.b16 %v337, %v336
        %vm340 = vcmask 130048
        %v342 = vsel %vm340, %v321, 0
        %v345 = vsel %vm340, %v322, 0
        %v348 = vsel %vm340, %v323, 0
        %v351 = vsel %vm340, %v324, 0
        %353 = vmatprep.subr.bf16.mxu0 0
        %354 = vmatpush1.bf16.msra.mxu0 %v338
        %355 = vmatprep.subr.bf16.mxu0 0
        %356 = vmatpush1.bf16.msra.mxu0 0
        %357 = vmatprep.subr.bf16.mxu0 0
        %358 = vmatpush1.bf16.msra.mxu0 0
        %359 = vmatprep.subr.bf16.mxu0 0
        %360 = vmatpush1.bf16.msra.mxu0 0
        %361 = vmatprep.subr.bf16.mxu0 0
        %362 = vmatpush1.bf16.msra.mxu0 0
        %363 = vmatprep.subr.bf16.mxu0 0
        %364 = vmatpush1.bf16.msra.mxu0 0
        %365 = vmatprep.subr.bf16.mxu0 0
        %366 = vmatpush1.bf16.msra.mxu0 0
        %367 = vmatprep.subr.bf16.mxu0 0
        %368 = vmatpush1.bf16.msra.mxu0 0
        %369 = vmatprep.subr.bf16.mxu0 0
        %370 = vmatpush1.bf16.msra.mxu0 0
        %371 = vmatprep.subr.bf16.mxu0 0
        %372 = vmatpush1.bf16.msra.mxu0 0
        %373 = vmatprep.subr.bf16.mxu0 0
        %374 = vmatpush1.bf16.msra.mxu0 0
        %375 = vmatprep.subr.bf16.mxu0 0
        %376 = vmatpush1.bf16.msra.mxu0 0
        %377 = vmatprep.subr.bf16.mxu0 0
        %378 = vmatpush1.bf16.msra.mxu0 0
        %379 = vmatprep.subr.bf16.mxu0 0
        %380 = vmatpush1.bf16.msra.mxu0 0
        %381 = vmatprep.subr.bf16.mxu0 0
        %382 = vmatpush1.bf16.msra.mxu0 0
        %383 = vmatprep.subr.bf16.mxu0 0
        %384 = vmatpush1.bf16.msra.mxu0 0
        %385 = vmatprep.mubr.bf16.mxu0 0
        %386 = vmatmul.mubr.bf16.gmra.mrb[0].mxu0 %v342
        %v387 = vpop.f32.mrb[0].mxu0
        %v388 = vadd.f32 %v332, %v387
        %v389 = vpop.f32.mrb[0].mxu0
        %v390 = vpop.f32.mrb[0].mxu0
        %v391 = vadd.f32 %v332, %v390
        %v392 = vpop.f32.mrb[0].mxu0
        %393 = vmatprep.mubr.bf16.mxu0 0
        %394 = vmatmul.mubr.bf16.gmra.mrb[0].mxu0 %v345
        %v395 = vpop.f32.mrb[0].mxu0
        %v396 = vadd.f32 %v332, %v395
        %v397 = vpop.f32.mrb[0].mxu0
        %v398 = vpop.f32.mrb[0].mxu0
        %v399 = vadd.f32 %v332, %v398
        %v400 = vpop.f32.mrb[0].mxu0
        %401 = vmatprep.mubr.bf16.mxu0 0
        %402 = vmatmul.mubr.bf16.gmra.mrb[0].mxu0 %v348
        %v403 = vpop.f32.mrb[0].mxu0
        %v404 = vadd.f32 %v332, %v403
        %v405 = vpop.f32.mrb[0].mxu0
        %v406 = vpop.f32.mrb[0].mxu0
        %v407 = vadd.f32 %v332, %v406
        %v408 = vpop.f32.mrb[0].mxu0
        %409 = vmatprep.mubr.bf16.mxu0 0
        %410 = vmatmul.mubr.bf16.gmra.mrb[0].mxu0 %v351
        %v411 = vpop.f32.mrb[0].mxu0
        %v412 = vadd.f32 %v332, %v411
        %v413 = vpop.f32.mrb[0].mxu0
        %v414 = vpop.f32.mrb[0].mxu0
        %v415 = vadd.f32 %v332, %v414
        %v416 = vpop.f32.mrb[0].mxu0
        %417 = vdwg.mxu0
        %v418 = vmax.f32 %v388, 0.0
        %v419 = vmax.f32 %v391, 0.0
        %v420 = vmax.f32 %v396, 0.0
        %v421 = vmax.f32 %v399, 0.0
        %v422 = vmax.f32 %v404, 0.0
        %v423 = vmax.f32 %v407, 0.0
        %v424 = vmax.f32 %v412, 0.0
        %v425 = vmax.f32 %v415, 0.0
        %426 = vst [vmem:[#allocation2] sm:$0xff] 0
        %s427 = scalar_lea.vmem [#allocation2], 72
        %428 = vst [vmem:[%s427] sm:$0xff] 0
        %s429 = scalar_lea.vmem [#allocation2], 8
        %vm430 = vcmask 1040384
        %vm431 = vsmask.f32 256
        %vm432 = vmand %vm430, %vm431
        %v433 = vld [vmem:[%s429] sm:$0x1]
        %v434 = vsel %vm432, 0, %v433
        %435 = vst [vmem:[%s429] sm:$0x1] %v434
        %v436 = vld [vmem:[%s429 + $0x8] sm:$0x1]
        %v437 = vsel %vm432, 0, %v436
        %438 = vst [vmem:[%s429 + $0x8] sm:$0x1] %v437
        %v439 = vld [vmem:[%s429 + $0x10] sm:$0x1]
        %v440 = vsel %vm432, 0, %v439
        %441 = vst [vmem:[%s429 + $0x10] sm:$0x1] %v440
        %v442 = vld [vmem:[%s429 + $0x18] sm:$0x1]
        %v443 = vsel %vm432, 0, %v442
        %444 = vst [vmem:[%s429 + $0x18] sm:$0x1] %v443
        %v445 = vld [vmem:[%s429 + $0x20] sm:$0x1]
        %v446 = vsel %vm432, 0, %v445
        %447 = vst [vmem:[%s429 + $0x20] sm:$0x1] %v446
        %v448 = vld [vmem:[%s429 + $0x28] sm:$0x1]
        %v449 = vsel %vm432, 0, %v448
        %450 = vst [vmem:[%s429 + $0x28] sm:$0x1] %v449
        %v451 = vld [vmem:[%s429 + $0x30] sm:$0x1]
        %v452 = vsel %vm432, 0, %v451
        %453 = vst [vmem:[%s429 + $0x30] sm:$0x1] %v452
        %v454 = vld [vmem:[%s429 + $0x38] sm:$0x1]
        %v455 = vsel %vm432, 0, %v454
        %456 = vst [vmem:[%s429 + $0x38] sm:$0x1] %v455
        %vm457 = vcmask 1047556
        %vm458 = vsmask.f32 7954
        %vm459 = vmand %vm457, %vm458
        %v460 = vld [vmem:[%s429] sm:$0xf0]
        %v461 = vsel %vm459, 0, %v460
        %462 = vst [vmem:[%s429] sm:$0xf0] %v461
        %v463 = vld [vmem:[%s429 + $0x8] sm:$0xf0]
        %v464 = vsel %vm459, 0, %v463
        %465 = vst [vmem:[%s429 + $0x8] sm:$0xf0] %v464
        %v466 = vld [vmem:[%s429 + $0x10] sm:$0xf0]
        %v467 = vsel %vm459, 0, %v466
        %468 = vst [vmem:[%s429 + $0x10] sm:$0xf0] %v467
        %v469 = vld [vmem:[%s429 + $0x18] sm:$0xf0]
        %v470 = vsel %vm459, 0, %v469
        %471 = vst [vmem:[%s429 + $0x18] sm:$0xf0] %v470
        %v472 = vld [vmem:[%s429 + $0x20] sm:$0xf0]
        %v473 = vsel %vm459, 0, %v472
        %474 = vst [vmem:[%s429 + $0x20] sm:$0xf0] %v473
        %v475 = vld [vmem:[%s429 + $0x28] sm:$0xf0]
        %v476 = vsel %vm459, 0, %v475
        %477 = vst [vmem:[%s429 + $0x28] sm:$0xf0] %v476
        %v478 = vld [vmem:[%s429 + $0x30] sm:$0xf0]
        %v479 = vsel %vm459, 0, %v478
        %480 = vst [vmem:[%s429 + $0x30] sm:$0xf0] %v479
        %v481 = vld [vmem:[%s429 + $0x38] sm:$0xf0]
        %v482 = vsel %vm459, 0, %v481
        %483 = vst [vmem:[%s429 + $0x38] sm:$0xf0] %v482
        %v484 = vpack.c.bf16 %v419, %v418
        %v485 = vpack.c.bf16 %v421, %v420
        %v486 = vpack.c.bf16 %v423, %v422
        %v487 = vpack.c.bf16 %v425, %v424
        %v492 = vunpack.c.l.b16 %v484
        %v493 = vunpack.c.h.b16 %v484
        %v494 = vunpack.c.l.b16 %v485
        %v495 = vunpack.c.h.b16 %v485
        %v496 = vunpack.c.l.b16 %v486
        %v497 = vunpack.c.h.b16 %v486
        %v498 = vunpack.c.l.b16 %v487
        %v499 = vunpack.c.h.b16 %v487
        %v500 = vpack.c.b16 %v492, %v492
        %v501 = vpack.c.b16 %v493, %v493
        %v502 = vpack.c.b16 %v494, %v494
        %v503 = vpack.c.b16 %v495, %v495
        %v504 = vpack.c.b16 %v496, %v496
        %v505 = vpack.c.b16 %v497, %v497
        %v506 = vpack.c.b16 %v498, %v498
        %v507 = vpack.c.b16 %v499, %v499
        %v509 = vshrl.u32 %v500, 16
        %v511 = vrot.slane %v509, 7
        %v512 = vshll.u32 %v500, 16
        %v514 = vor.u32 %v511, %v512
        %v516 = vshrl.u32 %v501, 16
        %v518 = vrot.slane %v516, 7
        %v519 = vshll.u32 %v501, 16
        %v521 = vor.u32 %v518, %v519
        %v523 = vshrl.u32 %v502, 16
        %v525 = vrot.slane %v523, 7
        %v526 = vshll.u32 %v502, 16
        %v528 = vor.u32 %v525, %v526
        %v530 = vshrl.u32 %v503, 16
        %v532 = vrot.slane %v530, 7
        %v533 = vshll.u32 %v503, 16
        %v535 = vor.u32 %v532, %v533
        %v537 = vshrl.u32 %v504, 16
        %v539 = vrot.slane %v537, 7
        %v540 = vshll.u32 %v504, 16
        %v542 = vor.u32 %v539, %v540
        %v544 = vshrl.u32 %v505, 16
        %v546 = vrot.slane %v544, 7
        %v547 = vshll.u32 %v505, 16
        %v549 = vor.u32 %v546, %v547
        %v551 = vshrl.u32 %v506, 16
        %v553 = vrot.slane %v551, 7
        %v554 = vshll.u32 %v506, 16
        %v556 = vor.u32 %v553, %v554
        %v558 = vshrl.u32 %v507, 16
        %v560 = vrot.slane %v558, 7
        %v561 = vshll.u32 %v507, 16
        %v563 = vor.u32 %v560, %v561
        %vm572 = vcmask 1044480
        %vm573 = vsmask.f32 4354
        %vm574 = vmand %vm572, %vm573
        %v575 = vld [vmem:[%s429] sm:$0x1f]
        %v576 = vsel %vm574, %v514, %v575
        %577 = vst [vmem:[%s429] sm:$0x1f] %v576
        %v578 = vld [vmem:[%s429 + $0x8] sm:$0x1f]
        %v579 = vsel %vm574, %v521, %v578
        %580 = vst [vmem:[%s429 + $0x8] sm:$0x1f] %v579
        %v581 = vld [vmem:[%s429 + $0x10] sm:$0x1f]
        %v582 = vsel %vm574, %v528, %v581
        %583 = vst [vmem:[%s429 + $0x10] sm:$0x1f] %v582
        %v584 = vld [vmem:[%s429 + $0x18] sm:$0x1f]
        %v585 = vsel %vm574, %v535, %v584
        %586 = vst [vmem:[%s429 + $0x18] sm:$0x1f] %v585
        %v587 = vld [vmem:[%s429 + $0x20] sm:$0x1f]
        %v588 = vsel %vm574, %v542, %v587
        %589 = vst [vmem:[%s429 + $0x20] sm:$0x1f] %v588
        %v590 = vld [vmem:[%s429 + $0x28] sm:$0x1f]
        %v591 = vsel %vm574, %v549, %v590
        %592 = vst [vmem:[%s429 + $0x28] sm:$0x1f] %v591
        %v593 = vld [vmem:[%s429 + $0x30] sm:$0x1f]
        %v594 = vsel %vm574, %v556, %v593
        %595 = vst [vmem:[%s429 + $0x30] sm:$0x1f] %v594
        %v596 = vld [vmem:[%s429 + $0x38] sm:$0x1f]
        %v597 = vsel %vm574, %v563, %v596
        %598 = vst [vmem:[%s429 + $0x38] sm:$0x1f] %v597
        %v599 = vld [vmem:[#allocation2] sm:$0xff]
        %v600 = vld [vmem:[#allocation2 + $0x8] sm:$0xff]
        %v601 = vld [vmem:[#allocation2 + $0x10] sm:$0xff]
        %v602 = vld [vmem:[#allocation2 + $0x18] sm:$0xff]
        %v603 = vld [vmem:[#allocation2 + $0x20] sm:$0xff]
        %v604 = vld [vmem:[#allocation2 + $0x28] sm:$0xff]
        %v605 = vld [vmem:[#allocation2 + $0x30] sm:$0xff]
        %v606 = vld [vmem:[#allocation2 + $0x38] sm:$0xff]
        %v607 = vld [vmem:[#allocation6] sm:$0xf]
        %v608 = vld [vmem:[#allocation6 + $0x4] sm:$0xf]
        %v609 = vld [vmem:[#allocation6 + $0x8] sm:$0xf]
        %v610 = vld [vmem:[#allocation6 + $0xc] sm:$0xf]
        %v611 = vld [vmem:[#allocation6 + $0x10] sm:$0xf]
        %v612 = vld [vmem:[#allocation6 + $0x14] sm:$0xf]
        %v613 = vld [vmem:[#allocation6 + $0x18] sm:$0xf]
        %v614 = vld [vmem:[#allocation6 + $0x1c] sm:$0xf]
        %v615 = vld [vmem:[#allocation6 + $0x20] sm:$0xf]
        %v616 = vld [vmem:[#allocation6 + $0x24] sm:$0xf]
        %v617 = vld [vmem:[#allocation6 + $0x28] sm:$0xf]
        %v618 = vld [vmem:[#allocation6 + $0x2c] sm:$0xf]
        %v619 = vld [vmem:[#allocation6 + $0x30] sm:$0xf]
        %v620 = vld [vmem:[#allocation6 + $0x34] sm:$0xf]
        %v621 = vld [vmem:[#allocation6 + $0x38] sm:$0xf]
        %v622 = vld [vmem:[#allocation6 + $0x3c] sm:$0xf]
        %s623 = scalar_lea.vmem [#allocation6], 64
        %v624 = vld [vmem:[%s623] sm:$0xf]
        %v625 = vld [vmem:[%s623 + $0x4] sm:$0xf]
        %v626 = vld [vmem:[%s623 + $0x8] sm:$0xf]
        %v627 = vld [vmem:[%s623 + $0xc] sm:$0xf]
        %v628 = vld [vmem:[%s623 + $0x10] sm:$0xf]
        %v629 = vld [vmem:[%s623 + $0x14] sm:$0xf]
        %v630 = vld [vmem:[%s623 + $0x18] sm:$0xf]
        %v631 = vld [vmem:[%s623 + $0x1c] sm:$0xf]
        %v632 = vld [vmem:[%s623 + $0x20] sm:$0xf]
        %v633 = vld [vmem:[%s623 + $0x24] sm:$0xf]
        %v634 = vld [vmem:[%s623 + $0x28] sm:$0xf]
        %v635 = vld [vmem:[%s623 + $0x2c] sm:$0xf]
        %v636 = vld [vmem:[%s623 + $0x30] sm:$0xf]
        %v637 = vld [vmem:[%s623 + $0x34] sm:$0xf]
        %v638 = vld [vmem:[%s623 + $0x38] sm:$0xf]
        %v639 = vld [vmem:[%s623 + $0x3c] sm:$0xf]
        %v656 = vunpack.c.l.b16 %v624
        %v657 = vunpack.c.l.b16 %v625
        %v658 = vunpack.c.l.b16 %v626
        %v659 = vunpack.c.l.b16 %v627
        %v660 = vunpack.c.l.b16 %v628
        %v661 = vunpack.c.l.b16 %v629
        %v662 = vunpack.c.l.b16 %v630
        %v663 = vunpack.c.l.b16 %v631
        %v664 = vunpack.c.l.b16 %v632
        %v665 = vunpack.c.l.b16 %v633
        %v666 = vunpack.c.l.b16 %v634
        %v667 = vunpack.c.l.b16 %v635
        %v668 = vunpack.c.l.b16 %v636
        %v669 = vunpack.c.l.b16 %v637
        %v670 = vunpack.c.l.b16 %v638
        %v671 = vunpack.c.l.b16 %v639
        %v672 = vpack.c.b16 %v657, %v656
        %v673 = vpack.c.b16 %v659, %v658
        %v674 = vpack.c.b16 %v661, %v660
        %v675 = vpack.c.b16 %v663, %v662
        %v676 = vpack.c.b16 %v665, %v664
        %v677 = vpack.c.b16 %v667, %v666
        %v678 = vpack.c.b16 %v669, %v668
        %v679 = vpack.c.b16 %v671, %v670
        %688 = vmatprep.subr.bf16.mxu0 0
        %689 = vmatpush1.bf16.msra.mxu0 %v672
        %690 = vmatprep.subr.bf16.mxu0 0
        %691 = vmatpush1.bf16.msra.mxu0 %v673
        %692 = vmatprep.subr.bf16.mxu0 0
        %693 = vmatpush1.bf16.msra.mxu0 %v674
        %694 = vmatprep.subr.bf16.mxu0 0
        %695 = vmatpush1.bf16.msra.mxu0 %v675
        %696 = vmatprep.subr.bf16.mxu0 0
        %697 = vmatpush1.bf16.msra.mxu0 %v676
        %698 = vmatprep.subr.bf16.mxu0 0
        %699 = vmatpush1.bf16.msra.mxu0 %v677
        %700 = vmatprep.subr.bf16.mxu0 0
        %701 = vmatpush1.bf16.msra.mxu0 %v678
        %702 = vmatprep.subr.bf16.mxu0 0
        %703 = vmatpush1.bf16.msra.mxu0 %v679
        %704 = vmatprep.subr.bf16.mxu0 0
        %705 = vmatpush1.bf16.msra.mxu0 0
        %706 = vmatprep.subr.bf16.mxu0 0
        %707 = vmatpush1.bf16.msra.mxu0 0
        %708 = vmatprep.subr.bf16.mxu0 0
        %709 = vmatpush1.bf16.msra.mxu0 0
        %710 = vmatprep.subr.bf16.mxu0 0
        %711 = vmatpush1.bf16.msra.mxu0 0
        %712 = vmatprep.subr.bf16.mxu0 0
        %713 = vmatpush1.bf16.msra.mxu0 0
        %714 = vmatprep.subr.bf16.mxu0 0
        %715 = vmatpush1.bf16.msra.mxu0 0
        %716 = vmatprep.subr.bf16.mxu0 0
        %717 = vmatpush1.bf16.msra.mxu0 0
        %718 = vmatprep.subr.bf16.mxu0 0
        %719 = vmatpush1.bf16.msra.mxu0 0
        %720 = vmatprep.mubr.bf16.mxu0 0
        %721 = vmatmul.mubr.bf16.gmra.mrb[0].mxu0 %v599
        %v722 = vpop.f32.mrb[0].mxu0
        %v723 = vadd.f32 0.0, %v722
        %v724 = vpop.f32.mrb[0].mxu0
        %v725 = vpop.f32.mrb[0].mxu0
        %v726 = vadd.f32 0.0, %v725
        %v727 = vpop.f32.mrb[0].mxu0
        %728 = vmatprep.mubr.bf16.mxu0 0
        %729 = vmatmul.mubr.bf16.gmra.mrb[0].mxu0 %v600
        %v730 = vpop.f32.mrb[0].mxu0
        %v731 = vadd.f32 0.0, %v730
        %v732 = vpop.f32.mrb[0].mxu0
        %v733 = vpop.f32.mrb[0].mxu0
        %v734 = vadd.f32 0.0, %v733
        %v735 = vpop.f32.mrb[0].mxu0
        %736 = vmatprep.mubr.bf16.mxu0 0
        %737 = vmatmul.mubr.bf16.gmra.mrb[0].mxu0 %v601
        %v738 = vpop.f32.mrb[0].mxu0
        %v739 = vadd.f32 0.0, %v738
        %v740 = vpop.f32.mrb[0].mxu0
        %v741 = vpop.f32.mrb[0].mxu0
        %v742 = vadd.f32 0.0, %v741
        %v743 = vpop.f32.mrb[0].mxu0
        %744 = vmatprep.mubr.bf16.mxu0 0
        %745 = vmatmul.mubr.bf16.gmra.mrb[0].mxu0 %v602
        %v746 = vpop.f32.mrb[0].mxu0
        %v747 = vadd.f32 0.0, %v746
        %v748 = vpop.f32.mrb[0].mxu0
        %v749 = vpop.f32.mrb[0].mxu0
        %v750 = vadd.f32 0.0, %v749
        %v751 = vpop.f32.mrb[0].mxu0
        %752 = vmatprep.mubr.bf16.mxu0 0
        %753 = vmatmul.mubr.bf16.gmra.mrb[0].mxu0 %v603
        %v754 = vpop.f32.mrb[0].mxu0
        %v755 = vadd.f32 0.0, %v754
        %v756 = vpop.f32.mrb[0].mxu0
        %v757 = vpop.f32.mrb[0].mxu0
        %v758 = vadd.f32 0.0, %v757
        %v759 = vpop.f32.mrb[0].mxu0
        %760 = vmatprep.mubr.bf16.mxu0 0
        %761 = vmatmul.mubr.bf16.gmra.mrb[0].mxu0 %v604
        %v762 = vpop.f32.mrb[0].mxu0
        %v763 = vadd.f32 0.0, %v762
        %v764 = vpop.f32.mrb[0].mxu0
        %v765 = vpop.f32.mrb[0].mxu0
        %v766 = vadd.f32 0.0, %v765
        %v767 = vpop.f32.mrb[0].mxu0
        %768 = vmatprep.mubr.bf16.mxu0 0
        %769 = vmatmul.mubr.bf16.gmra.mrb[0].mxu0 %v605
        %v770 = vpop.f32.mrb[0].mxu0
        %v771 = vadd.f32 0.0, %v770
        %v772 = vpop.f32.mrb[0].mxu0
        %v773 = vpop.f32.mrb[0].mxu0
        %v774 = vadd.f32 0.0, %v773
        %v775 = vpop.f32.mrb[0].mxu0
        %776 = vmatprep.mubr.bf16.mxu0 0
        %777 = vmatmul.mubr.bf16.gmra.mrb[0].mxu0 %v606
        %v778 = vpop.f32.mrb[0].mxu0
        %v779 = vadd.f32 0.0, %v778
        %v780 = vpop.f32.mrb[0].mxu0
        %v781 = vpop.f32.mrb[0].mxu0
        %v782 = vadd.f32 0.0, %v781
        %v783 = vpop.f32.mrb[0].mxu0
        %784 = vdwg.mxu0
        %v785 = vrot.slane %v723, 1
        %v786 = vrot.slane %v726, 1
        %v787 = vrot.slane %v731, 1
        %v788 = vrot.slane %v734, 1
        %v789 = vrot.slane %v739, 1
        %v790 = vrot.slane %v742, 1
        %v791 = vrot.slane %v747, 1
        %v792 = vrot.slane %v750, 1
        %v793 = vrot.slane %v755, 1
        %v794 = vrot.slane %v758, 1
        %v795 = vrot.slane %v763, 1
        %v796 = vrot.slane %v766, 1
        %v797 = vrot.slane %v771, 1
        %v798 = vrot.slane %v774, 1
        %v799 = vrot.slane %v779, 1
        %v800 = vrot.slane %v782, 1
        %v801 = vlaneseq
        %v802 = vshrl.u32 %v801, 7
        %vm803 = vcmp.lt.s32.totalorder %v802, 7
        %v804 = vsel %vm803, %v799, %v800
        %v805 = vsel %vm803, %v798, %v799
        %v806 = vsel %vm803, %v797, %v798
        %v807 = vsel %vm803, %v796, %v797
        %v808 = vsel %vm803, %v795, %v796
        %v809 = vsel %vm803, %v794, %v795
        %v810 = vsel %vm803, %v793, %v794
        %v811 = vsel %vm803, %v792, %v793
        %v812 = vsel %vm803, %v791, %v792
        %v813 = vsel %vm803, %v790, %v791
        %v814 = vsel %vm803, %v789, %v790
        %v815 = vsel %vm803, %v788, %v789
        %v816 = vsel %vm803, %v787, %v788
        %v817 = vsel %vm803, %v786, %v787
        %v818 = vsel %vm803, %v785, %v786
        %v819 = vsel %vm803, %v800, %v785
        %v836 = vunpack.c.l.b16 %v607
        %v837 = vunpack.c.l.b16 %v608
        %v838 = vunpack.c.l.b16 %v609
        %v839 = vunpack.c.l.b16 %v610
        %v840 = vunpack.c.l.b16 %v611
        %v841 = vunpack.c.l.b16 %v612
        %v842 = vunpack.c.l.b16 %v613
        %v843 = vunpack.c.l.b16 %v614
        %v844 = vunpack.c.l.b16 %v615
        %v845 = vunpack.c.l.b16 %v616
        %v846 = vunpack.c.l.b16 %v617
        %v847 = vunpack.c.l.b16 %v618
        %v848 = vunpack.c.l.b16 %v619
        %v849 = vunpack.c.l.b16 %v620
        %v850 = vunpack.c.l.b16 %v621
        %v851 = vunpack.c.l.b16 %v622
        %v852 = vpack.c.b16 %v837, %v836
        %v853 = vpack.c.b16 %v839, %v838
        %v854 = vpack.c.b16 %v841, %v840
        %v855 = vpack.c.b16 %v843, %v842
        %v856 = vpack.c.b16 %v845, %v844
        %v857 = vpack.c.b16 %v847, %v846
        %v858 = vpack.c.b16 %v849, %v848
        %v859 = vpack.c.b16 %v851, %v850
        %868 = vmatprep.subr.bf16.mxu0 0
        %869 = vmatpush1.bf16.msra.mxu0 %v852
        %870 = vmatprep.subr.bf16.mxu0 0
        %871 = vmatpush1.bf16.msra.mxu0 %v853
        %872 = vmatprep.subr.bf16.mxu0 0
        %873 = vmatpush1.bf16.msra.mxu0 %v854
        %874 = vmatprep.subr.bf16.mxu0 0
        %875 = vmatpush1.bf16.msra.mxu0 %v855
        %876 = vmatprep.subr.bf16.mxu0 0
        %877 = vmatpush1.bf16.msra.mxu0 %v856
        %878 = vmatprep.subr.bf16.mxu0 0
        %879 = vmatpush1.bf16.msra.mxu0 %v857
        %880 = vmatprep.subr.bf16.mxu0 0
        %881 = vmatpush1.bf16.msra.mxu0 %v858
        %882 = vmatprep.subr.bf16.mxu0 0
        %883 = vmatpush1.bf16.msra.mxu0 %v859
        %884 = vmatprep.subr.bf16.mxu0 0
        %885 = vmatpush1.bf16.msra.mxu0 0
        %886 = vmatprep.subr.bf16.mxu0 0
        %887 = vmatpush1.bf16.msra.mxu0 0
        %888 = vmatprep.subr.bf16.mxu0 0
        %889 = vmatpush1.bf16.msra.mxu0 0
        %890 = vmatprep.subr.bf16.mxu0 0
        %891 = vmatpush1.bf16.msra.mxu0 0
        %892 = vmatprep.subr.bf16.mxu0 0
        %893 = vmatpush1.bf16.msra.mxu0 0
        %894 = vmatprep.subr.bf16.mxu0 0
        %895 = vmatpush1.bf16.msra.mxu0 0
        %896 = vmatprep.subr.bf16.mxu0 0
        %897 = vmatpush1.bf16.msra.mxu0 0
        %898 = vmatprep.subr.bf16.mxu0 0
        %899 = vmatpush1.bf16.msra.mxu0 0
        %900 = vmatprep.mubr.bf16.mxu0 0
        %901 = vmatmul.mubr.bf16.gmra.mrb[0].mxu0 %v599
        %v902 = vpop.f32.mrb[0].mxu0
        %v903 = vadd.f32 %v818, %v902
        %v904 = vpop.f32.mrb[0].mxu0
        %v905 = vpop.f32.mrb[0].mxu0
        %v906 = vadd.f32 %v817, %v905
        %v907 = vpop.f32.mrb[0].mxu0
        %908 = vmatprep.mubr.bf16.mxu0 0
        %909 = vmatmul.mubr.bf16.gmra.mrb[0].mxu0 %v600
        %v910 = vpop.f32.mrb[0].mxu0
        %v911 = vadd.f32 %v816, %v910
        %v912 = vpop.f32.mrb[0].mxu0
        %v913 = vpop.f32.mrb[0].mxu0
        %v914 = vadd.f32 %v815, %v913
        %v915 = vpop.f32.mrb[0].mxu0
        %916 = vmatprep.mubr.bf16.mxu0 0
        %917 = vmatmul.mubr.bf16.gmra.mrb[0].mxu0 %v601
        %v918 = vpop.f32.mrb[0].mxu0
        %v919 = vadd.f32 %v814, %v918
        %v920 = vpop.f32.mrb[0].mxu0
        %v921 = vpop.f32.mrb[0].mxu0
        %v922 = vadd.f32 %v813, %v921
        %v923 = vpop.f32.mrb[0].mxu0
        %924 = vmatprep.mubr.bf16.mxu0 0
        %925 = vmatmul.mubr.bf16.gmra.mrb[0].mxu0 %v602
        %v926 = vpop.f32.mrb[0].mxu0
        %v927 = vadd.f32 %v812, %v926
        %v928 = vpop.f32.mrb[0].mxu0
        %v929 = vpop.f32.mrb[0].mxu0
        %v930 = vadd.f32 %v811, %v929
        %v931 = vpop.f32.mrb[0].mxu0
        %932 = vmatprep.mubr.bf16.mxu0 0
        %933 = vmatmul.mubr.bf16.gmra.mrb[0].mxu0 %v603
        %v934 = vpop.f32.mrb[0].mxu0
        %v935 = vadd.f32 %v810, %v934
        %v936 = vpop.f32.mrb[0].mxu0
        %v937 = vpop.f32.mrb[0].mxu0
        %v938 = vadd.f32 %v809, %v937
        %v939 = vpop.f32.mrb[0].mxu0
        %940 = vmatprep.mubr.bf16.mxu0 0
        %941 = vmatmul.mubr.bf16.gmra.mrb[0].mxu0 %v604
        %v942 = vpop.f32.mrb[0].mxu0
        %v943 = vadd.f32 %v808, %v942
        %v944 = vpop.f32.mrb[0].mxu0
        %v945 = vpop.f32.mrb[0].mxu0
        %v946 = vadd.f32 %v807, %v945
        %v947 = vpop.f32.mrb[0].mxu0
        %948 = vmatprep.mubr.bf16.mxu0 0
        %949 = vmatmul.mubr.bf16.gmra.mrb[0].mxu0 %v605
        %v950 = vpop.f32.mrb[0].mxu0
        %v951 = vadd.f32 %v806, %v950
        %v952 = vpop.f32.mrb[0].mxu0
        %v953 = vpop.f32.mrb[0].mxu0
        %v954 = vadd.f32 %v805, %v953
        %v955 = vpop.f32.mrb[0].mxu0
        %956 = vmatprep.mubr.bf16.mxu0 0
        %957 = vmatmul.mubr.bf16.gmra.mrb[0].mxu0 %v606
        %v958 = vpop.f32.mrb[0].mxu0
        %v959 = vadd.f32 %v804, %v958
        %v960 = vpop.f32.mrb[0].mxu0
        %v961 = vpop.f32.mrb[0].mxu0
        %v962 = vadd.f32 %v819, %v961
        %v963 = vpop.f32.mrb[0].mxu0
        %964 = vdwg.mxu0
        %s965 = scalar_lea.vmem [#allocation6], 128
        %v966 = vld [vmem:[%s965] sm:$0xf]
        %v967 = vld [vmem:[%s965 + $0x4] sm:$0xf]
        %v968 = vld [vmem:[%s965 + $0x8] sm:$0xf]
        %v969 = vld [vmem:[%s965 + $0xc] sm:$0xf]
        %v970 = vld [vmem:[%s965 + $0x10] sm:$0xf]
        %v971 = vld [vmem:[%s965 + $0x14] sm:$0xf]
        %v972 = vld [vmem:[%s965 + $0x18] sm:$0xf]
        %v973 = vld [vmem:[%s965 + $0x1c] sm:$0xf]
        %v974 = vld [vmem:[%s965 + $0x20] sm:$0xf]
        %v975 = vld [vmem:[%s965 + $0x24] sm:$0xf]
        %v976 = vld [vmem:[%s965 + $0x28] sm:$0xf]
        %v977 = vld [vmem:[%s965 + $0x2c] sm:$0xf]
        %v978 = vld [vmem:[%s965 + $0x30] sm:$0xf]
        %v979 = vld [vmem:[%s965 + $0x34] sm:$0xf]
        %v980 = vld [vmem:[%s965 + $0x38] sm:$0xf]
        %v981 = vld [vmem:[%s965 + $0x3c] sm:$0xf]
        %v998 = vunpack.c.l.b16 %v966
        %v999 = vunpack.c.l.b16 %v967
        %v1000 = vunpack.c.l.b16 %v968
        %v1001 = vunpack.c.l.b16 %v969
        %v1002 = vunpack.c.l.b16 %v970
        %v1003 = vunpack.c.l.b16 %v971
        %v1004 = vunpack.c.l.b16 %v972
        %v1005 = vunpack.c.l.b16 %v973
        %v1006 = vunpack.c.l.b16 %v974
        %v1007 = vunpack.c.l.b16 %v975
        %v1008 = vunpack.c.l.b16 %v976
        %v1009 = vunpack.c.l.b16 %v977
        %v1010 = vunpack.c.l.b16 %v978
        %v1011 = vunpack.c.l.b16 %v979
        %v1012 = vunpack.c.l.b16 %v980
        %v1013 = vunpack.c.l.b16 %v981
        %v1014 = vpack.c.b16 %v999, %v998
        %v1015 = vpack.c.b16 %v1001, %v1000
        %v1016 = vpack.c.b16 %v1003, %v1002
        %v1017 = vpack.c.b16 %v1005, %v1004
        %v1018 = vpack.c.b16 %v1007, %v1006
        %v1019 = vpack.c.b16 %v1009, %v1008
        %v1020 = vpack.c.b16 %v1011, %v1010
        %v1021 = vpack.c.b16 %v1013, %v1012
        %1030 = vmatprep.subr.bf16.mxu0 0
        %1031 = vmatpush1.bf16.msra.mxu0 %v1014
        %1032 = vmatprep.subr.bf16.mxu0 0
        %1033 = vmatpush1.bf16.msra.mxu0 %v1015
        %1034 = vmatprep.subr.bf16.mxu0 0
        %1035 = vmatpush1.bf16.msra.mxu0 %v1016
        %1036 = vmatprep.subr.bf16.mxu0 0
        %1037 = vmatpush1.bf16.msra.mxu0 %v1017
        %1038 = vmatprep.subr.bf16.mxu0 0
        %1039 = vmatpush1.bf16.msra.mxu0 %v1018
        %1040 = vmatprep.subr.bf16.mxu0 0
        %1041 = vmatpush1.bf16.msra.mxu0 %v1019
        %1042 = vmatprep.subr.bf16.mxu0 0
        %1043 = vmatpush1.bf16.msra.mxu0 %v1020
        %1044 = vmatprep.subr.bf16.mxu0 0
        %1045 = vmatpush1.bf16.msra.mxu0 %v1021
        %1046 = vmatprep.subr.bf16.mxu0 0
        %1047 = vmatpush1.bf16.msra.mxu0 0
        %1048 = vmatprep.subr.bf16.mxu0 0
        %1049 = vmatpush1.bf16.msra.mxu0 0
        %1050 = vmatprep.subr.bf16.mxu0 0
        %1051 = vmatpush1.bf16.msra.mxu0 0
        %1052 = vmatprep.subr.bf16.mxu0 0
        %1053 = vmatpush1.bf16.msra.mxu0 0
        %1054 = vmatprep.subr.bf16.mxu0 0
        %1055 = vmatpush1.bf16.msra.mxu0 0
        %1056 = vmatprep.subr.bf16.mxu0 0
        %1057 = vmatpush1.bf16.msra.mxu0 0
        %1058 = vmatprep.subr.bf16.mxu0 0
        %1059 = vmatpush1.bf16.msra.mxu0 0
        %1060 = vmatprep.subr.bf16.mxu0 0
        %1061 = vmatpush1.bf16.msra.mxu0 0
        %1062 = vmatprep.mubr.bf16.mxu0 0
        %1063 = vmatmul.mubr.bf16.gmra.mrb[0].mxu0 %v599
        %v1064 = vpop.f32.mrb[0].mxu0
        %v1065 = vadd.f32 0.0, %v1064
        %v1066 = vpop.f32.mrb[0].mxu0
        %v1067 = vpop.f32.mrb[0].mxu0
        %v1068 = vadd.f32 0.0, %v1067
        %v1069 = vpop.f32.mrb[0].mxu0
        %1070 = vmatprep.mubr.bf16.mxu0 0
        %1071 = vmatmul.mubr.bf16.gmra.mrb[0].mxu0 %v600
        %v1072 = vpop.f32.mrb[0].mxu0
        %v1073 = vadd.f32 0.0, %v1072
        %v1074 = vpop.f32.mrb[0].mxu0
        %v1075 = vpop.f32.mrb[0].mxu0
        %v1076 = vadd.f32 0.0, %v1075
        %v1077 = vpop.f32.mrb[0].mxu0
        %1078 = vmatprep.mubr.bf16.mxu0 0
        %1079 = vmatmul.mubr.bf16.gmra.mrb[0].mxu0 %v601
        %v1080 = vpop.f32.mrb[0].mxu0
        %v1081 = vadd.f32 0.0, %v1080
        %v1082 = vpop.f32.mrb[0].mxu0
        %v1083 = vpop.f32.mrb[0].mxu0
        %v1084 = vadd.f32 0.0, %v1083
        %v1085 = vpop.f32.mrb[0].mxu0
        %1086 = vmatprep.mubr.bf16.mxu0 0
        %1087 = vmatmul.mubr.bf16.gmra.mrb[0].mxu0 %v602
        %v1088 = vpop.f32.mrb[0].mxu0
        %v1089 = vadd.f32 0.0, %v1088
        %v1090 = vpop.f32.mrb[0].mxu0
        %v1091 = vpop.f32.mrb[0].mxu0
        %v1092 = vadd.f32 0.0, %v1091
        %v1093 = vpop.f32.mrb[0].mxu0
        %1094 = vmatprep.mubr.bf16.mxu0 0
        %1095 = vmatmul.mubr.bf16.gmra.mrb[0].mxu0 %v603
        %v1096 = vpop.f32.mrb[0].mxu0
        %v1097 = vadd.f32 0.0, %v1096
        %v1098 = vpop.f32.mrb[0].mxu0
        %v1099 = vpop.f32.mrb[0].mxu0
        %v1100 = vadd.f32 0.0, %v1099
        %v1101 = vpop.f32.mrb[0].mxu0
        %1102 = vmatprep.mubr.bf16.mxu0 0
        %1103 = vmatmul.mubr.bf16.gmra.mrb[0].mxu0 %v604
        %v1104 = vpop.f32.mrb[0].mxu0
        %v1105 = vadd.f32 0.0, %v1104
        %v1106 = vpop.f32.mrb[0].mxu0
        %v1107 = vpop.f32.mrb[0].mxu0
        %v1108 = vadd.f32 0.0, %v1107
        %v1109 = vpop.f32.mrb[0].mxu0
        %1110 = vmatprep.mubr.bf16.mxu0 0
        %1111 = vmatmul.mubr.bf16.gmra.mrb[0].mxu0 %v605
        %v1112 = vpop.f32.mrb[0].mxu0
        %v1113 = vadd.f32 0.0, %v1112
        %v1114 = vpop.f32.mrb[0].mxu0
        %v1115 = vpop.f32.mrb[0].mxu0
        %v1116 = vadd.f32 0.0, %v1115
        %v1117 = vpop.f32.mrb[0].mxu0
        %1118 = vmatprep.mubr.bf16.mxu0 0
        %1119 = vmatmul.mubr.bf16.gmra.mrb[0].mxu0 %v606
        %v1120 = vpop.f32.mrb[0].mxu0
        %v1121 = vadd.f32 0.0, %v1120
        %v1122 = vpop.f32.mrb[0].mxu0
        %v1123 = vpop.f32.mrb[0].mxu0
        %v1124 = vadd.f32 0.0, %v1123
        %v1125 = vpop.f32.mrb[0].mxu0
        %1126 = vdwg.mxu0
        %v1127 = vrot.slane %v1065, 2
        %v1128 = vrot.slane %v1068, 2
        %v1129 = vrot.slane %v1073, 2
        %v1130 = vrot.slane %v1076, 2
        %v1131 = vrot.slane %v1081, 2
        %v1132 = vrot.slane %v1084, 2
        %v1133 = vrot.slane %v1089, 2
        %v1134 = vrot.slane %v1092, 2
        %v1135 = vrot.slane %v1097, 2
        %v1136 = vrot.slane %v1100, 2
        %v1137 = vrot.slane %v1105, 2
        %v1138 = vrot.slane %v1108, 2
        %v1139 = vrot.slane %v1113, 2
        %v1140 = vrot.slane %v1116, 2
        %v1141 = vrot.slane %v1121, 2
        %v1142 = vrot.slane %v1124, 2
        %vm1143 = vcmp.lt.s32.totalorder %v802, 6
        %v1144 = vsel %vm1143, %v1141, %v1142
        %v1145 = vsel %vm1143, %v1140, %v1141
        %v1146 = vsel %vm1143, %v1139, %v1140
        %v1147 = vsel %vm1143, %v1138, %v1139
        %v1148 = vsel %vm1143, %v1137, %v1138
        %v1149 = vsel %vm1143, %v1136, %v1137
        %v1150 = vsel %vm1143, %v1135, %v1136
        %v1151 = vsel %vm1143, %v1134, %v1135
        %v1152 = vsel %vm1143, %v1133, %v1134
        %v1153 = vsel %vm1143, %v1132, %v1133
        %v1154 = vsel %vm1143, %v1131, %v1132
        %v1155 = vsel %vm1143, %v1130, %v1131
        %v1156 = vsel %vm1143, %v1129, %v1130
        %v1157 = vsel %vm1143, %v1128, %v1129
        %v1158 = vsel %vm1143, %v1127, %v1128
        %v1159 = vsel %vm1143, %v1142, %v1127
        %v1160 = vadd.f32 %v903, %v1158
        %v1161 = vadd.f32 %v906, %v1157
        %v1162 = vadd.f32 %v911, %v1156
        %v1163 = vadd.f32 %v914, %v1155
        %v1164 = vadd.f32 %v919, %v1154
        %v1165 = vadd.f32 %v922, %v1153
        %v1166 = vadd.f32 %v927, %v1152
        %v1167 = vadd.f32 %v930, %v1151
        %v1168 = vadd.f32 %v935, %v1150
        %v1169 = vadd.f32 %v938, %v1149
        %v1170 = vadd.f32 %v943, %v1148
        %v1171 = vadd.f32 %v946, %v1147
        %v1172 = vadd.f32 %v951, %v1146
        %v1173 = vadd.f32 %v954, %v1145
        %v1174 = vadd.f32 %v959, %v1144
        %v1175 = vadd.f32 %v962, %v1159
        %v1176 = vld [vmem:[%s429] sm:$0xff]
        %v1177 = vld [vmem:[%s429 + $0x8] sm:$0xff]
        %v1178 = vld [vmem:[%s429 + $0x10] sm:$0xff]
        %v1179 = vld [vmem:[%s429 + $0x18] sm:$0xff]
        %v1180 = vld [vmem:[%s429 + $0x20] sm:$0xff]
        %v1181 = vld [vmem:[%s429 + $0x28] sm:$0xff]
        %v1182 = vld [vmem:[%s429 + $0x30] sm:$0xff]
        %v1183 = vld [vmem:[%s429 + $0x38] sm:$0xff]
        %s1184 = scalar_lea.vmem [#allocation6], 192
        %v1185 = vld [vmem:[%s1184] sm:$0xf]
        %v1186 = vld [vmem:[%s1184 + $0x4] sm:$0xf]
        %v1187 = vld [vmem:[%s1184 + $0x8] sm:$0xf]
        %v1188 = vld [vmem:[%s1184 + $0xc] sm:$0xf]
        %v1189 = vld [vmem:[%s1184 + $0x10] sm:$0xf]
        %v1190 = vld [vmem:[%s1184 + $0x14] sm:$0xf]
        %v1191 = vld [vmem:[%s1184 + $0x18] sm:$0xf]
        %v1192 = vld [vmem:[%s1184 + $0x1c] sm:$0xf]
        %v1193 = vld [vmem:[%s1184 + $0x20] sm:$0xf]
        %v1194 = vld [vmem:[%s1184 + $0x24] sm:$0xf]
        %v1195 = vld [vmem:[%s1184 + $0x28] sm:$0xf]
        %v1196 = vld [vmem:[%s1184 + $0x2c] sm:$0xf]
        %v1197 = vld [vmem:[%s1184 + $0x30] sm:$0xf]
        %v1198 = vld [vmem:[%s1184 + $0x34] sm:$0xf]
        %v1199 = vld [vmem:[%s1184 + $0x38] sm:$0xf]
        %v1200 = vld [vmem:[%s1184 + $0x3c] sm:$0xf]
        %v1217 = vunpack.c.l.b16 %v1185
        %v1218 = vunpack.c.l.b16 %v1186
        %v1219 = vunpack.c.l.b16 %v1187
        %v1220 = vunpack.c.l.b16 %v1188
        %v1221 = vunpack.c.l.b16 %v1189
        %v1222 = vunpack.c.l.b16 %v1190
        %v1223 = vunpack.c.l.b16 %v1191
        %v1224 = vunpack.c.l.b16 %v1192
        %v1225 = vunpack.c.l.b16 %v1193
        %v1226 = vunpack.c.l.b16 %v1194
        %v1227 = vunpack.c.l.b16 %v1195
        %v1228 = vunpack.c.l.b16 %v1196
        %v1229 = vunpack.c.l.b16 %v1197
        %v1230 = vunpack.c.l.b16 %v1198
        %v1231 = vunpack.c.l.b16 %v1199
        %v1232 = vunpack.c.l.b16 %v1200
        %v1233 = vpack.c.b16 %v1218, %v1217
        %v1234 = vpack.c.b16 %v1220, %v1219
        %v1235 = vpack.c.b16 %v1222, %v1221
        %v1236 = vpack.c.b16 %v1224, %v1223
        %v1237 = vpack.c.b16 %v1226, %v1225
        %v1238 = vpack.c.b16 %v1228, %v1227
        %v1239 = vpack.c.b16 %v1230, %v1229
        %v1240 = vpack.c.b16 %v1232, %v1231
        %1249 = vmatprep.subr.bf16.mxu0 0
        %1250 = vmatpush1.bf16.msra.mxu0 %v1233
        %1251 = vmatprep.subr.bf16.mxu0 0
        %1252 = vmatpush1.bf16.msra.mxu0 %v1234
        %1253 = vmatprep.subr.bf16.mxu0 0
        %1254 = vmatpush1.bf16.msra.mxu0 %v1235
        %1255 = vmatprep.subr.bf16.mxu0 0
        %1256 = vmatpush1.bf16.msra.mxu0 %v1236
        %1257 = vmatprep.subr.bf16.mxu0 0
        %1258 = vmatpush1.bf16.msra.mxu0 %v1237
        %1259 = vmatprep.subr.bf16.mxu0 0
        %1260 = vmatpush1.bf16.msra.mxu0 %v1238
        %1261 = vmatprep.subr.bf16.mxu0 0
        %1262 = vmatpush1.bf16.msra.mxu0 %v1239
        %1263 = vmatprep.subr.bf16.mxu0 0
        %1264 = vmatpush1.bf16.msra.mxu0 %v1240
        %1265 = vmatprep.subr.bf16.mxu0 0
        %1266 = vmatpush1.bf16.msra.mxu0 0
        %1267 = vmatprep.subr.bf16.mxu0 0
        %1268 = vmatpush1.bf16.msra.mxu0 0
        %1269 = vmatprep.subr.bf16.mxu0 0
        %1270 = vmatpush1.bf16.msra.mxu0 0
        %1271 = vmatprep.subr.bf16.mxu0 0
        %1272 = vmatpush1.bf16.msra.mxu0 0
        %1273 = vmatprep.subr.bf16.mxu0 0
        %1274 = vmatpush1.bf16.msra.mxu0 0
        %1275 = vmatprep.subr.bf16.mxu0 0
        %1276 = vmatpush1.bf16.msra.mxu0 0
        %1277 = vmatprep.subr.bf16.mxu0 0
        %1278 = vmatpush1.bf16.msra.mxu0 0
        %1279 = vmatprep.subr.bf16.mxu0 0
        %1280 = vmatpush1.bf16.msra.mxu0 0
        %1281 = vmatprep.mubr.bf16.mxu0 0
        %1282 = vmatmul.mubr.bf16.gmra.mrb[0].mxu0 %v1176
        %v1283 = vpop.f32.mrb[0].mxu0
        %v1284 = vadd.f32 0.0, %v1283
        %v1285 = vpop.f32.mrb[0].mxu0
        %v1286 = vpop.f32.mrb[0].mxu0
        %v1287 = vadd.f32 0.0, %v1286
        %v1288 = vpop.f32.mrb[0].mxu0
        %1289 = vmatprep.mubr.bf16.mxu0 0
        %1290 = vmatmul.mubr.bf16.gmra.mrb[0].mxu0 %v1177
        %v1291 = vpop.f32.mrb[0].mxu0
        %v1292 = vadd.f32 0.0, %v1291
        %v1293 = vpop.f32.mrb[0].mxu0
        %v1294 = vpop.f32.mrb[0].mxu0
        %v1295 = vadd.f32 0.0, %v1294
        %v1296 = vpop.f32.mrb[0].mxu0
        %1297 = vmatprep.mubr.bf16.mxu0 0
        %1298 = vmatmul.mubr.bf16.gmra.mrb[0].mxu0 %v1178
        %v1299 = vpop.f32.mrb[0].mxu0
        %v1300 = vadd.f32 0.0, %v1299
        %v1301 = vpop.f32.mrb[0].mxu0
        %v1302 = vpop.f32.mrb[0].mxu0
        %v1303 = vadd.f32 0.0, %v1302
        %v1304 = vpop.f32.mrb[0].mxu0
        %1305 = vmatprep.mubr.bf16.mxu0 0
        %1306 = vmatmul.mubr.bf16.gmra.mrb[0].mxu0 %v1179
        %v1307 = vpop.f32.mrb[0].mxu0
        %v1308 = vadd.f32 0.0, %v1307
        %v1309 = vpop.f32.mrb[0].mxu0
        %v1310 = vpop.f32.mrb[0].mxu0
        %v1311 = vadd.f32 0.0, %v1310
        %v1312 = vpop.f32.mrb[0].mxu0
        %1313 = vmatprep.mubr.bf16.mxu0 0
        %1314 = vmatmul.mubr.bf16.gmra.mrb[0].mxu0 %v1180
        %v1315 = vpop.f32.mrb[0].mxu0
        %v1316 = vadd.f32 0.0, %v1315
        %v1317 = vpop.f32.mrb[0].mxu0
        %v1318 = vpop.f32.mrb[0].mxu0
        %v1319 = vadd.f32 0.0, %v1318
        %v1320 = vpop.f32.mrb[0].mxu0
        %1321 = vmatprep.mubr.bf16.mxu0 0
        %1322 = vmatmul.mubr.bf16.gmra.mrb[0].mxu0 %v1181
        %v1323 = vpop.f32.mrb[0].mxu0
        %v1324 = vadd.f32 0.0, %v1323
        %v1325 = vpop.f32.mrb[0].mxu0
        %v1326 = vpop.f32.mrb[0].mxu0
        %v1327 = vadd.f32 0.0, %v1326
        %v1328 = vpop.f32.mrb[0].mxu0
        %1329 = vmatprep.mubr.bf16.mxu0 0
        %1330 = vmatmul.mubr.bf16.gmra.mrb[0].mxu0 %v1182
        %v1331 = vpop.f32.mrb[0].mxu0
        %v1332 = vadd.f32 0.0, %v1331
        %v1333 = vpop.f32.mrb[0].mxu0
        %v1334 = vpop.f32.mrb[0].mxu0
        %v1335 = vadd.f32 0.0, %v1334
        %v1336 = vpop.f32.mrb[0].mxu0
        %1337 = vmatprep.mubr.bf16.mxu0 0
        %1338 = vmatmul.mubr.bf16.gmra.mrb[0].mxu0 %v1183
        %v1339 = vpop.f32.mrb[0].mxu0
        %v1340 = vadd.f32 0.0, %v1339
        %v1341 = vpop.f32.mrb[0].mxu0
        %v1342 = vpop.f32.mrb[0].mxu0
        %v1343 = vadd.f32 0.0, %v1342
        %v1344 = vpop.f32.mrb[0].mxu0
        %1345 = vdwg.mxu0
        %v1346 = vadd.f32 %v1160, %v1284
        %v1347 = vadd.f32 %v1161, %v1287
        %v1348 = vadd.f32 %v1162, %v1292
        %v1349 = vadd.f32 %v1163, %v1295
        %v1350 = vadd.f32 %v1164, %v1300
        %v1351 = vadd.f32 %v1165, %v1303
        %v1352 = vadd.f32 %v1166, %v1308
        %v1353 = vadd.f32 %v1167, %v1311
        %v1354 = vadd.f32 %v1168, %v1316
        %v1355 = vadd.f32 %v1169, %v1319
        %v1356 = vadd.f32 %v1170, %v1324
        %v1357 = vadd.f32 %v1171, %v1327
        %v1358 = vadd.f32 %v1172, %v1332
        %v1359 = vadd.f32 %v1173, %v1335
        %v1360 = vadd.f32 %v1174, %v1340
        %v1361 = vadd.f32 %v1175, %v1343
        %s1362 = scalar_lea.vmem [#allocation6], 256
        %v1363 = vld [vmem:[%s1362] sm:$0xf]
        %v1364 = vld [vmem:[%s1362 + $0x4] sm:$0xf]
        %v1365 = vld [vmem:[%s1362 + $0x8] sm:$0xf]
        %v1366 = vld [vmem:[%s1362 + $0xc] sm:$0xf]
        %v1367 = vld [vmem:[%s1362 + $0x10] sm:$0xf]
        %v1368 = vld [vmem:[%s1362 + $0x14] sm:$0xf]
        %v1369 = vld [vmem:[%s1362 + $0x18] sm:$0xf]
        %v1370 = vld [vmem:[%s1362 + $0x1c] sm:$0xf]
        %v1371 = vld [vmem:[%s1362 + $0x20] sm:$0xf]
        %v1372 = vld [vmem:[%s1362 + $0x24] sm:$0xf]
        %v1373 = vld [vmem:[%s1362 + $0x28] sm:$0xf]
        %v1374 = vld [vmem:[%s1362 + $0x2c] sm:$0xf]
        %v1375 = vld [vmem:[%s1362 + $0x30] sm:$0xf]
        %v1376 = vld [vmem:[%s1362 + $0x34] sm:$0xf]
        %v1377 = vld [vmem:[%s1362 + $0x38] sm:$0xf]
        %v1378 = vld [vmem:[%s1362 + $0x3c] sm:$0xf]
        %v1395 = vunpack.c.l.b16 %v1363
        %v1396 = vunpack.c.l.b16 %v1364
        %v1397 = vunpack.c.l.b16 %v1365
        %v1398 = vunpack.c.l.b16 %v1366
        %v1399 = vunpack.c.l.b16 %v1367
        %v1400 = vunpack.c.l.b16 %v1368
        %v1401 = vunpack.c.l.b16 %v1369
        %v1402 = vunpack.c.l.b16 %v1370
        %v1403 = vunpack.c.l.b16 %v1371
        %v1404 = vunpack.c.l.b16 %v1372
        %v1405 = vunpack.c.l.b16 %v1373
        %v1406 = vunpack.c.l.b16 %v1374
        %v1407 = vunpack.c.l.b16 %v1375
        %v1408 = vunpack.c.l.b16 %v1376
        %v1409 = vunpack.c.l.b16 %v1377
        %v1410 = vunpack.c.l.b16 %v1378
        %v1411 = vpack.c.b16 %v1396, %v1395
        %v1412 = vpack.c.b16 %v1398, %v1397
        %v1413 = vpack.c.b16 %v1400, %v1399
        %v1414 = vpack.c.b16 %v1402, %v1401
        %v1415 = vpack.c.b16 %v1404, %v1403
        %v1416 = vpack.c.b16 %v1406, %v1405
        %v1417 = vpack.c.b16 %v1408, %v1407
        %v1418 = vpack.c.b16 %v1410, %v1409
        %1427 = vmatprep.subr.bf16.mxu0 0
        %1428 = vmatpush1.bf16.msra.mxu0 %v1411
        %1429 = vmatprep.subr.bf16.mxu0 0
        %1430 = vmatpush1.bf16.msra.mxu0 %v1412
        %1431 = vmatprep.subr.bf16.mxu0 0
        %1432 = vmatpush1.bf16.msra.mxu0 %v1413
        %1433 = vmatprep.subr.bf16.mxu0 0
        %1434 = vmatpush1.bf16.msra.mxu0 %v1414
        %1435 = vmatprep.subr.bf16.mxu0 0
        %1436 = vmatpush1.bf16.msra.mxu0 %v1415
        %1437 = vmatprep.subr.bf16.mxu0 0
        %1438 = vmatpush1.bf16.msra.mxu0 %v1416
        %1439 = vmatprep.subr.bf16.mxu0 0
        %1440 = vmatpush1.bf16.msra.mxu0 %v1417
        %1441 = vmatprep.subr.bf16.mxu0 0
        %1442 = vmatpush1.bf16.msra.mxu0 %v1418
        %1443 = vmatprep.subr.bf16.mxu0 0
        %1444 = vmatpush1.bf16.msra.mxu0 0
        %1445 = vmatprep.subr.bf16.mxu0 0
        %1446 = vmatpush1.bf16.msra.mxu0 0
        %1447 = vmatprep.subr.bf16.mxu0 0
        %1448 = vmatpush1.bf16.msra.mxu0 0
        %1449 = vmatprep.subr.bf16.mxu0 0
        %1450 = vmatpush1.bf16.msra.mxu0 0
        %1451 = vmatprep.subr.bf16.mxu0 0
        %1452 = vmatpush1.bf16.msra.mxu0 0
        %1453 = vmatprep.subr.bf16.mxu0 0
        %1454 = vmatpush1.bf16.msra.mxu0 0
        %1455 = vmatprep.subr.bf16.mxu0 0
        %1456 = vmatpush1.bf16.msra.mxu0 0
        %1457 = vmatprep.subr.bf16.mxu0 0
        %1458 = vmatpush1.bf16.msra.mxu0 0
        %1459 = vmatprep.mubr.bf16.mxu0 0
        %1460 = vmatmul.mubr.bf16.gmra.mrb[0].mxu0 %v1176
        %v1461 = vpop.f32.mrb[0].mxu0
        %v1462 = vadd.f32 0.0, %v1461
        %v1463 = vpop.f32.mrb[0].mxu0
        %v1464 = vpop.f32.mrb[0].mxu0
        %v1465 = vadd.f32 0.0, %v1464
        %v1466 = vpop.f32.mrb[0].mxu0
        %1467 = vmatprep.mubr.bf16.mxu0 0
        %1468 = vmatmul.mubr.bf16.gmra.mrb[0].mxu0 %v1177
        %v1469 = vpop.f32.mrb[0].mxu0
        %v1470 = vadd.f32 0.0, %v1469
        %v1471 = vpop.f32.mrb[0].mxu0
        %v1472 = vpop.f32.mrb[0].mxu0
        %v1473 = vadd.f32 0.0, %v1472
        %v1474 = vpop.f32.mrb[0].mxu0
        %1475 = vmatprep.mubr.bf16.mxu0 0
        %1476 = vmatmul.mubr.bf16.gmra.mrb[0].mxu0 %v1178
        %v1477 = vpop.f32.mrb[0].mxu0
        %v1478 = vadd.f32 0.0, %v1477
        %v1479 = vpop.f32.mrb[0].mxu0
        %v1480 = vpop.f32.mrb[0].mxu0
        %v1481 = vadd.f32 0.0, %v1480
        %v1482 = vpop.f32.mrb[0].mxu0
        %1483 = vmatprep.mubr.bf16.mxu0 0
        %1484 = vmatmul.mubr.bf16.gmra.mrb[0].mxu0 %v1179
        %v1485 = vpop.f32.mrb[0].mxu0
        %v1486 = vadd.f32 0.0, %v1485
        %v1487 = vpop.f32.mrb[0].mxu0
        %v1488 = vpop.f32.mrb[0].mxu0
        %v1489 = vadd.f32 0.0, %v1488
        %v1490 = vpop.f32.mrb[0].mxu0
        %1491 = vmatprep.mubr.bf16.mxu0 0
        %1492 = vmatmul.mubr.bf16.gmra.mrb[0].mxu0 %v1180
        %v1493 = vpop.f32.mrb[0].mxu0
        %v1494 = vadd.f32 0.0, %v1493
        %v1495 = vpop.f32.mrb[0].mxu0
        %v1496 = vpop.f32.mrb[0].mxu0
        %v1497 = vadd.f32 0.0, %v1496
        %v1498 = vpop.f32.mrb[0].mxu0
        %1499 = vmatprep.mubr.bf16.mxu0 0
        %1500 = vmatmul.mubr.bf16.gmra.mrb[0].mxu0 %v1181
        %v1501 = vpop.f32.mrb[0].mxu0
        %v1502 = vadd.f32 0.0, %v1501
        %v1503 = vpop.f32.mrb[0].mxu0
        %v1504 = vpop.f32.mrb[0].mxu0
        %v1505 = vadd.f32 0.0, %v1504
        %v1506 = vpop.f32.mrb[0].mxu0
        %1507 = vmatprep.mubr.bf16.mxu0 0
        %1508 = vmatmul.mubr.bf16.gmra.mrb[0].mxu0 %v1182
        %v1509 = vpop.f32.mrb[0].mxu0
        %v1510 = vadd.f32 0.0, %v1509
        %v1511 = vpop.f32.mrb[0].mxu0
        %v1512 = vpop.f32.mrb[0].mxu0
        %v1513 = vadd.f32 0.0, %v1512
        %v1514 = vpop.f32.mrb[0].mxu0
        %1515 = vmatprep.mubr.bf16.mxu0 0
        %1516 = vmatmul.mubr.bf16.gmra.mrb[0].mxu0 %v1183
        %v1517 = vpop.f32.mrb[0].mxu0
        %v1518 = vadd.f32 0.0, %v1517
        %v1519 = vpop.f32.mrb[0].mxu0
        %v1520 = vpop.f32.mrb[0].mxu0
        %v1521 = vadd.f32 0.0, %v1520
        %v1522 = vpop.f32.mrb[0].mxu0
        %1523 = vdwg.mxu0
        %v1524 = vrot.slane %v1462, 1
        %v1525 = vrot.slane %v1465, 1
        %v1526 = vrot.slane %v1470, 1
        %v1527 = vrot.slane %v1473, 1
        %v1528 = vrot.slane %v1478, 1
        %v1529 = vrot.slane %v1481, 1
        %v1530 = vrot.slane %v1486, 1
        %v1531 = vrot.slane %v1489, 1
        %v1532 = vrot.slane %v1494, 1
        %v1533 = vrot.slane %v1497, 1
        %v1534 = vrot.slane %v1502, 1
        %v1535 = vrot.slane %v1505, 1
        %v1536 = vrot.slane %v1510, 1
        %v1537 = vrot.slane %v1513, 1
        %v1538 = vrot.slane %v1518, 1
        %v1539 = vrot.slane %v1521, 1
        %v1540 = vsel %vm803, %v1538, %v1539
        %v1541 = vsel %vm803, %v1537, %v1538
        %v1542 = vsel %vm803, %v1536, %v1537
        %v1543 = vsel %vm803, %v1535, %v1536
        %v1544 = vsel %vm803, %v1534, %v1535
        %v1545 = vsel %vm803, %v1533, %v1534
        %v1546 = vsel %vm803, %v1532, %v1533
        %v1547 = vsel %vm803, %v1531, %v1532
        %v1548 = vsel %vm803, %v1530, %v1531
        %v1549 = vsel %vm803, %v1529, %v1530
        %v1550 = vsel %vm803, %v1528, %v1529
        %v1551 = vsel %vm803, %v1527, %v1528
        %v1552 = vsel %vm803, %v1526, %v1527
        %v1553 = vsel %vm803, %v1525, %v1526
        %v1554 = vsel %vm803, %v1524, %v1525
        %v1555 = vsel %vm803, %v1539, %v1524
        %v1556 = vadd.f32 %v1346, %v1554
        %v1557 = vadd.f32 %v1347, %v1553
        %v1558 = vadd.f32 %v1348, %v1552
        %v1559 = vadd.f32 %v1349, %v1551
        %v1560 = vadd.f32 %v1350, %v1550
        %v1561 = vadd.f32 %v1351, %v1549
        %v1562 = vadd.f32 %v1352, %v1548
        %v1563 = vadd.f32 %v1353, %v1547
        %v1564 = vadd.f32 %v1354, %v1546
        %v1565 = vadd.f32 %v1355, %v1545
        %v1566 = vadd.f32 %v1356, %v1544
        %v1567 = vadd.f32 %v1357, %v1543
        %v1568 = vadd.f32 %v1358, %v1542
        %v1569 = vadd.f32 %v1359, %v1541
        %v1570 = vadd.f32 %v1360, %v1540
        %v1571 = vadd.f32 %v1361, %v1555
        %s1572 = scalar_lea.vmem [#allocation6], 320
        %v1573 = vld [vmem:[%s1572] sm:$0xf]
        %v1574 = vld [vmem:[%s1572 + $0x4] sm:$0xf]
        %v1575 = vld [vmem:[%s1572 + $0x8] sm:$0xf]
        %v1576 = vld [vmem:[%s1572 + $0xc] sm:$0xf]
        %v1577 = vld [vmem:[%s1572 + $0x10] sm:$0xf]
        %v1578 = vld [vmem:[%s1572 + $0x14] sm:$0xf]
        %v1579 = vld [vmem:[%s1572 + $0x18] sm:$0xf]
        %v1580 = vld [vmem:[%s1572 + $0x1c] sm:$0xf]
        %v1581 = vld [vmem:[%s1572 + $0x20] sm:$0xf]
        %v1582 = vld [vmem:[%s1572 + $0x24] sm:$0xf]
        %v1583 = vld [vmem:[%s1572 + $0x28] sm:$0xf]
        %v1584 = vld [vmem:[%s1572 + $0x2c] sm:$0xf]
        %v1585 = vld [vmem:[%s1572 + $0x30] sm:$0xf]
        %v1586 = vld [vmem:[%s1572 + $0x34] sm:$0xf]
        %v1587 = vld [vmem:[%s1572 + $0x38] sm:$0xf]
        %v1588 = vld [vmem:[%s1572 + $0x3c] sm:$0xf]
        %v1605 = vunpack.c.l.b16 %v1573
        %v1606 = vunpack.c.l.b16 %v1574
        %v1607 = vunpack.c.l.b16 %v1575
        %v1608 = vunpack.c.l.b16 %v1576
        %v1609 = vunpack.c.l.b16 %v1577
        %v1610 = vunpack.c.l.b16 %v1578
        %v1611 = vunpack.c.l.b16 %v1579
        %v1612 = vunpack.c.l.b16 %v1580
        %v1613 = vunpack.c.l.b16 %v1581
        %v1614 = vunpack.c.l.b16 %v1582
        %v1615 = vunpack.c.l.b16 %v1583
        %v1616 = vunpack.c.l.b16 %v1584
        %v1617 = vunpack.c.l.b16 %v1585
        %v1618 = vunpack.c.l.b16 %v1586
        %v1619 = vunpack.c.l.b16 %v1587
        %v1620 = vunpack.c.l.b16 %v1588
        %v1621 = vpack.c.b16 %v1606, %v1605
        %v1622 = vpack.c.b16 %v1608, %v1607
        %v1623 = vpack.c.b16 %v1610, %v1609
        %v1624 = vpack.c.b16 %v1612, %v1611
        %v1625 = vpack.c.b16 %v1614, %v1613
        %v1626 = vpack.c.b16 %v1616, %v1615
        %v1627 = vpack.c.b16 %v1618, %v1617
        %v1628 = vpack.c.b16 %v1620, %v1619
        %1637 = vmatprep.subr.bf16.mxu0 0
        %1638 = vmatpush1.bf16.msra.mxu0 %v1621
        %1639 = vmatprep.subr.bf16.mxu0 0
        %1640 = vmatpush1.bf16.msra.mxu0 %v1622
        %1641 = vmatprep.subr.bf16.mxu0 0
        %1642 = vmatpush1.bf16.msra.mxu0 %v1623
        %1643 = vmatprep.subr.bf16.mxu0 0
        %1644 = vmatpush1.bf16.msra.mxu0 %v1624
        %1645 = vmatprep.subr.bf16.mxu0 0
        %1646 = vmatpush1.bf16.msra.mxu0 %v1625
        %1647 = vmatprep.subr.bf16.mxu0 0
        %1648 = vmatpush1.bf16.msra.mxu0 %v1626
        %1649 = vmatprep.subr.bf16.mxu0 0
        %1650 = vmatpush1.bf16.msra.mxu0 %v1627
        %1651 = vmatprep.subr.bf16.mxu0 0
        %1652 = vmatpush1.bf16.msra.mxu0 %v1628
        %1653 = vmatprep.subr.bf16.mxu0 0
        %1654 = vmatpush1.bf16.msra.mxu0 0
        %1655 = vmatprep.subr.bf16.mxu0 0
        %1656 = vmatpush1.bf16.msra.mxu0 0
        %1657 = vmatprep.subr.bf16.mxu0 0
        %1658 = vmatpush1.bf16.msra.mxu0 0
        %1659 = vmatprep.subr.bf16.mxu0 0
        %1660 = vmatpush1.bf16.msra.mxu0 0
        %1661 = vmatprep.subr.bf16.mxu0 0
        %1662 = vmatpush1.bf16.msra.mxu0 0
        %1663 = vmatprep.subr.bf16.mxu0 0
        %1664 = vmatpush1.bf16.msra.mxu0 0
        %1665 = vmatprep.subr.bf16.mxu0 0
        %1666 = vmatpush1.bf16.msra.mxu0 0
        %1667 = vmatprep.subr.bf16.mxu0 0
        %1668 = vmatpush1.bf16.msra.mxu0 0
        %1669 = vmatprep.mubr.bf16.mxu0 0
        %1670 = vmatmul.mubr.bf16.gmra.mrb[0].mxu0 %v1176
        %v1671 = vpop.f32.mrb[0].mxu0
        %v1672 = vadd.f32 0.0, %v1671
        %v1673 = vpop.f32.mrb[0].mxu0
        %v1674 = vpop.f32.mrb[0].mxu0
        %v1675 = vadd.f32 0.0, %v1674
        %v1676 = vpop.f32.mrb[0].mxu0
        %1677 = vmatprep.mubr.bf16.mxu0 0
        %1678 = vmatmul.mubr.bf16.gmra.mrb[0].mxu0 %v1177
        %v1679 = vpop.f32.mrb[0].mxu0
        %v1680 = vadd.f32 0.0, %v1679
        %v1681 = vpop.f32.mrb[0].mxu0
        %v1682 = vpop.f32.mrb[0].mxu0
        %v1683 = vadd.f32 0.0, %v1682
        %v1684 = vpop.f32.mrb[0].mxu0
        %1685 = vmatprep.mubr.bf16.mxu0 0
        %1686 = vmatmul.mubr.bf16.gmra.mrb[0].mxu0 %v1178
        %v1687 = vpop.f32.mrb[0].mxu0
        %v1688 = vadd.f32 0.0, %v1687
        %v1689 = vpop.f32.mrb[0].mxu0
        %v1690 = vpop.f32.mrb[0].mxu0
        %v1691 = vadd.f32 0.0, %v1690
        %v1692 = vpop.f32.mrb[0].mxu0
        %1693 = vmatprep.mubr.bf16.mxu0 0
        %1694 = vmatmul.mubr.bf16.gmra.mrb[0].mxu0 %v1179
        %v1695 = vpop.f32.mrb[0].mxu0
        %v1696 = vadd.f32 0.0, %v1695
        %v1697 = vpop.f32.mrb[0].mxu0
        %v1698 = vpop.f32.mrb[0].mxu0
        %v1699 = vadd.f32 0.0, %v1698
        %v1700 = vpop.f32.mrb[0].mxu0
        %1701 = vmatprep.mubr.bf16.mxu0 0
        %1702 = vmatmul.mubr.bf16.gmra.mrb[0].mxu0 %v1180
        %v1703 = vpop.f32.mrb[0].mxu0
        %v1704 = vadd.f32 0.0, %v1703
        %v1705 = vpop.f32.mrb[0].mxu0
        %v1706 = vpop.f32.mrb[0].mxu0
        %v1707 = vadd.f32 0.0, %v1706
        %v1708 = vpop.f32.mrb[0].mxu0
        %1709 = vmatprep.mubr.bf16.mxu0 0
        %1710 = vmatmul.mubr.bf16.gmra.mrb[0].mxu0 %v1181
        %v1711 = vpop.f32.mrb[0].mxu0
        %v1712 = vadd.f32 0.0, %v1711
        %v1713 = vpop.f32.mrb[0].mxu0
        %v1714 = vpop.f32.mrb[0].mxu0
        %v1715 = vadd.f32 0.0, %v1714
        %v1716 = vpop.f32.mrb[0].mxu0
        %1717 = vmatprep.mubr.bf16.mxu0 0
        %1718 = vmatmul.mubr.bf16.gmra.mrb[0].mxu0 %v1182
        %v1719 = vpop.f32.mrb[0].mxu0
        %v1720 = vadd.f32 0.0, %v1719
        %v1721 = vpop.f32.mrb[0].mxu0
        %v1722 = vpop.f32.mrb[0].mxu0
        %v1723 = vadd.f32 0.0, %v1722
        %v1724 = vpop.f32.mrb[0].mxu0
        %1725 = vmatprep.mubr.bf16.mxu0 0
        %1726 = vmatmul.mubr.bf16.gmra.mrb[0].mxu0 %v1183
        %v1727 = vpop.f32.mrb[0].mxu0
        %v1728 = vadd.f32 0.0, %v1727
        %v1729 = vpop.f32.mrb[0].mxu0
        %v1730 = vpop.f32.mrb[0].mxu0
        %v1731 = vadd.f32 0.0, %v1730
        %v1732 = vpop.f32.mrb[0].mxu0
        %1733 = vdwg.mxu0
        %v1734 = vrot.slane %v1672, 2
        %v1735 = vrot.slane %v1675, 2
        %v1736 = vrot.slane %v1680, 2
        %v1737 = vrot.slane %v1683, 2
        %v1738 = vrot.slane %v1688, 2
        %v1739 = vrot.slane %v1691, 2
        %v1740 = vrot.slane %v1696, 2
        %v1741 = vrot.slane %v1699, 2
        %v1742 = vrot.slane %v1704, 2
        %v1743 = vrot.slane %v1707, 2
        %v1744 = vrot.slane %v1712, 2
        %v1745 = vrot.slane %v1715, 2
        %v1746 = vrot.slane %v1720, 2
        %v1747 = vrot.slane %v1723, 2
        %v1748 = vrot.slane %v1728, 2
        %v1749 = vrot.slane %v1731, 2
        %v1750 = vsel %vm1143, %v1748, %v1749
        %v1751 = vsel %vm1143, %v1747, %v1748
        %v1752 = vsel %vm1143, %v1746, %v1747
        %v1753 = vsel %vm1143, %v1745, %v1746
        %v1754 = vsel %vm1143, %v1744, %v1745
        %v1755 = vsel %vm1143, %v1743, %v1744
        %v1756 = vsel %vm1143, %v1742, %v1743
        %v1757 = vsel %vm1143, %v1741, %v1742
        %v1758 = vsel %vm1143, %v1740, %v1741
        %v1759 = vsel %vm1143, %v1739, %v1740
        %v1760 = vsel %vm1143, %v1738, %v1739
        %v1761 = vsel %vm1143, %v1737, %v1738
        %v1762 = vsel %vm1143, %v1736, %v1737
        %v1763 = vsel %vm1143, %v1735, %v1736
        %v1764 = vsel %vm1143, %v1734, %v1735
        %v1765 = vsel %vm1143, %v1749, %v1734
        %v1766 = vadd.f32 %v1556, %v1764
        %v1767 = vadd.f32 %v1557, %v1763
        %v1768 = vadd.f32 %v1558, %v1762
        %v1769 = vadd.f32 %v1559, %v1761
        %v1770 = vadd.f32 %v1560, %v1760
        %v1771 = vadd.f32 %v1561, %v1759
        %v1772 = vadd.f32 %v1562, %v1758
        %v1773 = vadd.f32 %v1563, %v1757
        %v1774 = vadd.f32 %v1564, %v1756
        %v1775 = vadd.f32 %v1565, %v1755
        %v1776 = vadd.f32 %v1566, %v1754
        %v1777 = vadd.f32 %v1567, %v1753
        %v1778 = vadd.f32 %v1568, %v1752
        %v1779 = vadd.f32 %v1569, %v1751
        %v1780 = vadd.f32 %v1570, %v1750
        %v1781 = vadd.f32 %v1571, %v1765
        %s1782 = scalar_lea.vmem [#allocation2], 16
        %v1783 = vld [vmem:[%s1782] sm:$0xff]
        %v1784 = vld [vmem:[%s1782 + $0x8] sm:$0xff]
        %v1785 = vld [vmem:[%s1782 + $0x10] sm:$0xff]
        %v1786 = vld [vmem:[%s1782 + $0x18] sm:$0xff]
        %v1787 = vld [vmem:[%s1782 + $0x20] sm:$0xff]
        %v1788 = vld [vmem:[%s1782 + $0x28] sm:$0xff]
        %v1789 = vld [vmem:[%s1782 + $0x30] sm:$0xff]
        %v1790 = vld [vmem:[%s1782 + $0x38] sm:$0xff]
        %s1791 = scalar_lea.vmem [#allocation6], 384
        %v1792 = vld [vmem:[%s1791] sm:$0xf]
        %v1793 = vld [vmem:[%s1791 + $0x4] sm:$0xf]
        %v1794 = vld [vmem:[%s1791 + $0x8] sm:$0xf]
        %v1795 = vld [vmem:[%s1791 + $0xc] sm:$0xf]
        %v1796 = vld [vmem:[%s1791 + $0x10] sm:$0xf]
        %v1797 = vld [vmem:[%s1791 + $0x14] sm:$0xf]
        %v1798 = vld [vmem:[%s1791 + $0x18] sm:$0xf]
        %v1799 = vld [vmem:[%s1791 + $0x1c] sm:$0xf]
        %v1800 = vld [vmem:[%s1791 + $0x20] sm:$0xf]
        %v1801 = vld [vmem:[%s1791 + $0x24] sm:$0xf]
        %v1802 = vld [vmem:[%s1791 + $0x28] sm:$0xf]
        %v1803 = vld [vmem:[%s1791 + $0x2c] sm:$0xf]
        %v1804 = vld [vmem:[%s1791 + $0x30] sm:$0xf]
        %v1805 = vld [vmem:[%s1791 + $0x34] sm:$0xf]
        %v1806 = vld [vmem:[%s1791 + $0x38] sm:$0xf]
        %v1807 = vld [vmem:[%s1791 + $0x3c] sm:$0xf]
        %v1824 = vunpack.c.l.b16 %v1792
        %v1825 = vunpack.c.l.b16 %v1793
        %v1826 = vunpack.c.l.b16 %v1794
        %v1827 = vunpack.c.l.b16 %v1795
        %v1828 = vunpack.c.l.b16 %v1796
        %v1829 = vunpack.c.l.b16 %v1797
        %v1830 = vunpack.c.l.b16 %v1798
        %v1831 = vunpack.c.l.b16 %v1799
        %v1832 = vunpack.c.l.b16 %v1800
        %v1833 = vunpack.c.l.b16 %v1801
        %v1834 = vunpack.c.l.b16 %v1802
        %v1835 = vunpack.c.l.b16 %v1803
        %v1836 = vunpack.c.l.b16 %v1804
        %v1837 = vunpack.c.l.b16 %v1805
        %v1838 = vunpack.c.l.b16 %v1806
        %v1839 = vunpack.c.l.b16 %v1807
        %v1840 = vpack.c.b16 %v1825, %v1824
        %v1841 = vpack.c.b16 %v1827, %v1826
        %v1842 = vpack.c.b16 %v1829, %v1828
        %v1843 = vpack.c.b16 %v1831, %v1830
        %v1844 = vpack.c.b16 %v1833, %v1832
        %v1845 = vpack.c.b16 %v1835, %v1834
        %v1846 = vpack.c.b16 %v1837, %v1836
        %v1847 = vpack.c.b16 %v1839, %v1838
        %1856 = vmatprep.subr.bf16.mxu0 0
        %1857 = vmatpush1.bf16.msra.mxu0 %v1840
        %1858 = vmatprep.subr.bf16.mxu0 0
        %1859 = vmatpush1.bf16.msra.mxu0 %v1841
        %1860 = vmatprep.subr.bf16.mxu0 0
        %1861 = vmatpush1.bf16.msra.mxu0 %v1842
        %1862 = vmatprep.subr.bf16.mxu0 0
        %1863 = vmatpush1.bf16.msra.mxu0 %v1843
        %1864 = vmatprep.subr.bf16.mxu0 0
        %1865 = vmatpush1.bf16.msra.mxu0 %v1844
        %1866 = vmatprep.subr.bf16.mxu0 0
        %1867 = vmatpush1.bf16.msra.mxu0 %v1845
        %1868 = vmatprep.subr.bf16.mxu0 0
        %1869 = vmatpush1.bf16.msra.mxu0 %v1846
        %1870 = vmatprep.subr.bf16.mxu0 0
        %1871 = vmatpush1.bf16.msra.mxu0 %v1847
        %1872 = vmatprep.subr.bf16.mxu0 0
        %1873 = vmatpush1.bf16.msra.mxu0 0
        %1874 = vmatprep.subr.bf16.mxu0 0
        %1875 = vmatpush1.bf16.msra.mxu0 0
        %1876 = vmatprep.subr.bf16.mxu0 0
        %1877 = vmatpush1.bf16.msra.mxu0 0
        %1878 = vmatprep.subr.bf16.mxu0 0
        %1879 = vmatpush1.bf16.msra.mxu0 0
        %1880 = vmatprep.subr.bf16.mxu0 0
        %1881 = vmatpush1.bf16.msra.mxu0 0
        %1882 = vmatprep.subr.bf16.mxu0 0
        %1883 = vmatpush1.bf16.msra.mxu0 0
        %1884 = vmatprep.subr.bf16.mxu0 0
        %1885 = vmatpush1.bf16.msra.mxu0 0
        %1886 = vmatprep.subr.bf16.mxu0 0
        %1887 = vmatpush1.bf16.msra.mxu0 0
        %1888 = vmatprep.mubr.bf16.mxu0 0
        %1889 = vmatmul.mubr.bf16.gmra.mrb[0].mxu0 %v1783
        %v1890 = vpop.f32.mrb[0].mxu0
        %v1891 = vadd.f32 0.0, %v1890
        %v1892 = vpop.f32.mrb[0].mxu0
        %v1893 = vpop.f32.mrb[0].mxu0
        %v1894 = vadd.f32 0.0, %v1893
        %v1895 = vpop.f32.mrb[0].mxu0
        %1896 = vmatprep.mubr.bf16.mxu0 0
        %1897 = vmatmul.mubr.bf16.gmra.mrb[0].mxu0 %v1784
        %v1898 = vpop.f32.mrb[0].mxu0
        %v1899 = vadd.f32 0.0, %v1898
        %v1900 = vpop.f32.mrb[0].mxu0
        %v1901 = vpop.f32.mrb[0].mxu0
        %v1902 = vadd.f32 0.0, %v1901
        %v1903 = vpop.f32.mrb[0].mxu0
        %1904 = vmatprep.mubr.bf16.mxu0 0
        %1905 = vmatmul.mubr.bf16.gmra.mrb[0].mxu0 %v1785
        %v1906 = vpop.f32.mrb[0].mxu0
        %v1907 = vadd.f32 0.0, %v1906
        %v1908 = vpop.f32.mrb[0].mxu0
        %v1909 = vpop.f32.mrb[0].mxu0
        %v1910 = vadd.f32 0.0, %v1909
        %v1911 = vpop.f32.mrb[0].mxu0
        %1912 = vmatprep.mubr.bf16.mxu0 0
        %1913 = vmatmul.mubr.bf16.gmra.mrb[0].mxu0 %v1786
        %v1914 = vpop.f32.mrb[0].mxu0
        %v1915 = vadd.f32 0.0, %v1914
        %v1916 = vpop.f32.mrb[0].mxu0
        %v1917 = vpop.f32.mrb[0].mxu0
        %v1918 = vadd.f32 0.0, %v1917
        %v1919 = vpop.f32.mrb[0].mxu0
        %1920 = vmatprep.mubr.bf16.mxu0 0
        %1921 = vmatmul.mubr.bf16.gmra.mrb[0].mxu0 %v1787
        %v1922 = vpop.f32.mrb[0].mxu0
        %v1923 = vadd.f32 0.0, %v1922
        %v1924 = vpop.f32.mrb[0].mxu0
        %v1925 = vpop.f32.mrb[0].mxu0
        %v1926 = vadd.f32 0.0, %v1925
        %v1927 = vpop.f32.mrb[0].mxu0
        %1928 = vmatprep.mubr.bf16.mxu0 0
        %1929 = vmatmul.mubr.bf16.gmra.mrb[0].mxu0 %v1788
        %v1930 = vpop.f32.mrb[0].mxu0
        %v1931 = vadd.f32 0.0, %v1930
        %v1932 = vpop.f32.mrb[0].mxu0
        %v1933 = vpop.f32.mrb[0].mxu0
        %v1934 = vadd.f32 0.0, %v1933
        %v1935 = vpop.f32.mrb[0].mxu0
        %1936 = vmatprep.mubr.bf16.mxu0 0
        %1937 = vmatmul.mubr.bf16.gmra.mrb[0].mxu0 %v1789
        %v1938 = vpop.f32.mrb[0].mxu0
        %v1939 = vadd.f32 0.0, %v1938
        %v1940 = vpop.f32.mrb[0].mxu0
        %v1941 = vpop.f32.mrb[0].mxu0
        %v1942 = vadd.f32 0.0, %v1941
        %v1943 = vpop.f32.mrb[0].mxu0
        %1944 = vmatprep.mubr.bf16.mxu0 0
        %1945 = vmatmul.mubr.bf16.gmra.mrb[0].mxu0 %v1790
        %v1946 = vpop.f32.mrb[0].mxu0
        %v1947 = vadd.f32 0.0, %v1946
        %v1948 = vpop.f32.mrb[0].mxu0
        %v1949 = vpop.f32.mrb[0].mxu0
        %v1950 = vadd.f32 0.0, %v1949
        %v1951 = vpop.f32.mrb[0].mxu0
        %1952 = vdwg.mxu0
        %v1953 = vadd.f32 %v1766, %v1891
        %v1954 = vadd.f32 %v1767, %v1894
        %v1955 = vadd.f32 %v1768, %v1899
        %v1956 = vadd.f32 %v1769, %v1902
        %v1957 = vadd.f32 %v1770, %v1907
        %v1958 = vadd.f32 %v1771, %v1910
        %v1959 = vadd.f32 %v1772, %v1915
        %v1960 = vadd.f32 %v1773, %v1918
        %v1961 = vadd.f32 %v1774, %v1923
        %v1962 = vadd.f32 %v1775, %v1926
        %v1963 = vadd.f32 %v1776, %v1931
        %v1964 = vadd.f32 %v1777, %v1934
        %v1965 = vadd.f32 %v1778, %v1939
        %v1966 = vadd.f32 %v1779, %v1942
        %v1967 = vadd.f32 %v1780, %v1947
        %v1968 = vadd.f32 %v1781, %v1950
        %s1969 = scalar_lea.vmem [#allocation6], 448
        %v1970 = vld [vmem:[%s1969] sm:$0xf]
        %v1971 = vld [vmem:[%s1969 + $0x4] sm:$0xf]
        %v1972 = vld [vmem:[%s1969 + $0x8] sm:$0xf]
        %v1973 = vld [vmem:[%s1969 + $0xc] sm:$0xf]
        %v1974 = vld [vmem:[%s1969 + $0x10] sm:$0xf]
        %v1975 = vld [vmem:[%s1969 + $0x14] sm:$0xf]
        %v1976 = vld [vmem:[%s1969 + $0x18] sm:$0xf]
        %v1977 = vld [vmem:[%s1969 + $0x1c] sm:$0xf]
        %v1978 = vld [vmem:[%s1969 + $0x20] sm:$0xf]
        %v1979 = vld [vmem:[%s1969 + $0x24] sm:$0xf]
        %v1980 = vld [vmem:[%s1969 + $0x28] sm:$0xf]
        %v1981 = vld [vmem:[%s1969 + $0x2c] sm:$0xf]
        %v1982 = vld [vmem:[%s1969 + $0x30] sm:$0xf]
        %v1983 = vld [vmem:[%s1969 + $0x34] sm:$0xf]
        %v1984 = vld [vmem:[%s1969 + $0x38] sm:$0xf]
        %v1985 = vld [vmem:[%s1969 + $0x3c] sm:$0xf]
        %v2002 = vunpack.c.l.b16 %v1970
        %v2003 = vunpack.c.l.b16 %v1971
        %v2004 = vunpack.c.l.b16 %v1972
        %v2005 = vunpack.c.l.b16 %v1973
        %v2006 = vunpack.c.l.b16 %v1974
        %v2007 = vunpack.c.l.b16 %v1975
        %v2008 = vunpack.c.l.b16 %v1976
        %v2009 = vunpack.c.l.b16 %v1977
        %v2010 = vunpack.c.l.b16 %v1978
        %v2011 = vunpack.c.l.b16 %v1979
        %v2012 = vunpack.c.l.b16 %v1980
        %v2013 = vunpack.c.l.b16 %v1981
        %v2014 = vunpack.c.l.b16 %v1982
        %v2015 = vunpack.c.l.b16 %v1983
        %v2016 = vunpack.c.l.b16 %v1984
        %v2017 = vunpack.c.l.b16 %v1985
        %v2018 = vpack.c.b16 %v2003, %v2002
        %v2019 = vpack.c.b16 %v2005, %v2004
        %v2020 = vpack.c.b16 %v2007, %v2006
        %v2021 = vpack.c.b16 %v2009, %v2008
        %v2022 = vpack.c.b16 %v2011, %v2010
        %v2023 = vpack.c.b16 %v2013, %v2012
        %v2024 = vpack.c.b16 %v2015, %v2014
        %v2025 = vpack.c.b16 %v2017, %v2016
        %2034 = vmatprep.subr.bf16.mxu0 0
        %2035 = vmatpush1.bf16.msra.mxu0 %v2018
        %2036 = vmatprep.subr.bf16.mxu0 0
        %2037 = vmatpush1.bf16.msra.mxu0 %v2019
        %2038 = vmatprep.subr.bf16.mxu0 0
        %2039 = vmatpush1.bf16.msra.mxu0 %v2020
        %2040 = vmatprep.subr.bf16.mxu0 0
        %2041 = vmatpush1.bf16.msra.mxu0 %v2021
        %2042 = vmatprep.subr.bf16.mxu0 0
        %2043 = vmatpush1.bf16.msra.mxu0 %v2022
        %2044 = vmatprep.subr.bf16.mxu0 0
        %2045 = vmatpush1.bf16.msra.mxu0 %v2023
        %2046 = vmatprep.subr.bf16.mxu0 0
        %2047 = vmatpush1.bf16.msra.mxu0 %v2024
        %2048 = vmatprep.subr.bf16.mxu0 0
        %2049 = vmatpush1.bf16.msra.mxu0 %v2025
        %2050 = vmatprep.subr.bf16.mxu0 0
        %2051 = vmatpush1.bf16.msra.mxu0 0
        %2052 = vmatprep.subr.bf16.mxu0 0
        %2053 = vmatpush1.bf16.msra.mxu0 0
        %2054 = vmatprep.subr.bf16.mxu0 0
        %2055 = vmatpush1.bf16.msra.mxu0 0
        %2056 = vmatprep.subr.bf16.mxu0 0
        %2057 = vmatpush1.bf16.msra.mxu0 0
        %2058 = vmatprep.subr.bf16.mxu0 0
        %2059 = vmatpush1.bf16.msra.mxu0 0
        %2060 = vmatprep.subr.bf16.mxu0 0
        %2061 = vmatpush1.bf16.msra.mxu0 0
        %2062 = vmatprep.subr.bf16.mxu0 0
        %2063 = vmatpush1.bf16.msra.mxu0 0
        %2064 = vmatprep.subr.bf16.mxu0 0
        %2065 = vmatpush1.bf16.msra.mxu0 0
        %2066 = vmatprep.mubr.bf16.mxu0 0
        %2067 = vmatmul.mubr.bf16.gmra.mrb[0].mxu0 %v1783
        %v2068 = vpop.f32.mrb[0].mxu0
        %v2069 = vadd.f32 0.0, %v2068
        %v2070 = vpop.f32.mrb[0].mxu0
        %v2071 = vpop.f32.mrb[0].mxu0
        %v2072 = vadd.f32 0.0, %v2071
        %v2073 = vpop.f32.mrb[0].mxu0
        %2074 = vmatprep.mubr.bf16.mxu0 0
        %2075 = vmatmul.mubr.bf16.gmra.mrb[0].mxu0 %v1784
        %v2076 = vpop.f32.mrb[0].mxu0
        %v2077 = vadd.f32 0.0, %v2076
        %v2078 = vpop.f32.mrb[0].mxu0
        %v2079 = vpop.f32.mrb[0].mxu0
        %v2080 = vadd.f32 0.0, %v2079
        %v2081 = vpop.f32.mrb[0].mxu0
        %2082 = vmatprep.mubr.bf16.mxu0 0
        %2083 = vmatmul.mubr.bf16.gmra.mrb[0].mxu0 %v1785
        %v2084 = vpop.f32.mrb[0].mxu0
        %v2085 = vadd.f32 0.0, %v2084
        %v2086 = vpop.f32.mrb[0].mxu0
        %v2087 = vpop.f32.mrb[0].mxu0
        %v2088 = vadd.f32 0.0, %v2087
        %v2089 = vpop.f32.mrb[0].mxu0
        %2090 = vmatprep.mubr.bf16.mxu0 0
        %2091 = vmatmul.mubr.bf16.gmra.mrb[0].mxu0 %v1786
        %v2092 = vpop.f32.mrb[0].mxu0
        %v2093 = vadd.f32 0.0, %v2092
        %v2094 = vpop.f32.mrb[0].mxu0
        %v2095 = vpop.f32.mrb[0].mxu0
        %v2096 = vadd.f32 0.0, %v2095
        %v2097 = vpop.f32.mrb[0].mxu0
        %2098 = vmatprep.mubr.bf16.mxu0 0
        %2099 = vmatmul.mubr.bf16.gmra.mrb[0].mxu0 %v1787
        %v2100 = vpop.f32.mrb[0].mxu0
        %v2101 = vadd.f32 0.0, %v2100
        %v2102 = vpop.f32.mrb[0].mxu0
        %v2103 = vpop.f32.mrb[0].mxu0
        %v2104 = vadd.f32 0.0, %v2103
        %v2105 = vpop.f32.mrb[0].mxu0
        %2106 = vmatprep.mubr.bf16.mxu0 0
        %2107 = vmatmul.mubr.bf16.gmra.mrb[0].mxu0 %v1788
        %v2108 = vpop.f32.mrb[0].mxu0
        %v2109 = vadd.f32 0.0, %v2108
        %v2110 = vpop.f32.mrb[0].mxu0
        %v2111 = vpop.f32.mrb[0].mxu0
        %v2112 = vadd.f32 0.0, %v2111
        %v2113 = vpop.f32.mrb[0].mxu0
        %2114 = vmatprep.mubr.bf16.mxu0 0
        %2115 = vmatmul.mubr.bf16.gmra.mrb[0].mxu0 %v1789
        %v2116 = vpop.f32.mrb[0].mxu0
        %v2117 = vadd.f32 0.0, %v2116
        %v2118 = vpop.f32.mrb[0].mxu0
        %v2119 = vpop.f32.mrb[0].mxu0
        %v2120 = vadd.f32 0.0, %v2119
        %v2121 = vpop.f32.mrb[0].mxu0
        %2122 = vmatprep.mubr.bf16.mxu0 0
        %2123 = vmatmul.mubr.bf16.gmra.mrb[0].mxu0 %v1790
        %v2124 = vpop.f32.mrb[0].mxu0
        %v2125 = vadd.f32 0.0, %v2124
        %v2126 = vpop.f32.mrb[0].mxu0
        %v2127 = vpop.f32.mrb[0].mxu0
        %v2128 = vadd.f32 0.0, %v2127
        %v2129 = vpop.f32.mrb[0].mxu0
        %2130 = vdwg.mxu0
        %v2131 = vrot.slane %v2069, 1
        %v2132 = vrot.slane %v2072, 1
        %v2133 = vrot.slane %v2077, 1
        %v2134 = vrot.slane %v2080, 1
        %v2135 = vrot.slane %v2085, 1
        %v2136 = vrot.slane %v2088, 1
        %v2137 = vrot.slane %v2093, 1
        %v2138 = vrot.slane %v2096, 1
        %v2139 = vrot.slane %v2101, 1
        %v2140 = vrot.slane %v2104, 1
        %v2141 = vrot.slane %v2109, 1
        %v2142 = vrot.slane %v2112, 1
        %v2143 = vrot.slane %v2117, 1
        %v2144 = vrot.slane %v2120, 1
        %v2145 = vrot.slane %v2125, 1
        %v2146 = vrot.slane %v2128, 1
        %v2147 = vsel %vm803, %v2145, %v2146
        %v2148 = vsel %vm803, %v2144, %v2145
        %v2149 = vsel %vm803, %v2143, %v2144
        %v2150 = vsel %vm803, %v2142, %v2143
        %v2151 = vsel %vm803, %v2141, %v2142
        %v2152 = vsel %vm803, %v2140, %v2141
        %v2153 = vsel %vm803, %v2139, %v2140
        %v2154 = vsel %vm803, %v2138, %v2139
        %v2155 = vsel %vm803, %v2137, %v2138
        %v2156 = vsel %vm803, %v2136, %v2137
        %v2157 = vsel %vm803, %v2135, %v2136
        %v2158 = vsel %vm803, %v2134, %v2135
        %v2159 = vsel %vm803, %v2133, %v2134
        %v2160 = vsel %vm803, %v2132, %v2133
        %v2161 = vsel %vm803, %v2131, %v2132
        %v2162 = vsel %vm803, %v2146, %v2131
        %v2163 = vadd.f32 %v1953, %v2161
        %v2164 = vadd.f32 %v1954, %v2160
        %v2165 = vadd.f32 %v1955, %v2159
        %v2166 = vadd.f32 %v1956, %v2158
        %v2167 = vadd.f32 %v1957, %v2157
        %v2168 = vadd.f32 %v1958, %v2156
        %v2169 = vadd.f32 %v1959, %v2155
        %v2170 = vadd.f32 %v1960, %v2154
        %v2171 = vadd.f32 %v1961, %v2153
        %v2172 = vadd.f32 %v1962, %v2152
        %v2173 = vadd.f32 %v1963, %v2151
        %v2174 = vadd.f32 %v1964, %v2150
        %v2175 = vadd.f32 %v1965, %v2149
        %v2176 = vadd.f32 %v1966, %v2148
        %v2177 = vadd.f32 %v1967, %v2147
        %v2178 = vadd.f32 %v1968, %v2162
        %s2179 = scalar_lea.vmem [#allocation6], 512
        %v2180 = vld [vmem:[%s2179] sm:$0xf]
        %v2181 = vld [vmem:[%s2179 + $0x4] sm:$0xf]
        %v2182 = vld [vmem:[%s2179 + $0x8] sm:$0xf]
        %v2183 = vld [vmem:[%s2179 + $0xc] sm:$0xf]
        %v2184 = vld [vmem:[%s2179 + $0x10] sm:$0xf]
        %v2185 = vld [vmem:[%s2179 + $0x14] sm:$0xf]
        %v2186 = vld [vmem:[%s2179 + $0x18] sm:$0xf]
        %v2187 = vld [vmem:[%s2179 + $0x1c] sm:$0xf]
        %v2188 = vld [vmem:[%s2179 + $0x20] sm:$0xf]
        %v2189 = vld [vmem:[%s2179 + $0x24] sm:$0xf]
        %v2190 = vld [vmem:[%s2179 + $0x28] sm:$0xf]
        %v2191 = vld [vmem:[%s2179 + $0x2c] sm:$0xf]
        %v2192 = vld [vmem:[%s2179 + $0x30] sm:$0xf]
        %v2193 = vld [vmem:[%s2179 + $0x34] sm:$0xf]
        %v2194 = vld [vmem:[%s2179 + $0x38] sm:$0xf]
        %v2195 = vld [vmem:[%s2179 + $0x3c] sm:$0xf]
        %v2212 = vunpack.c.l.b16 %v2180
        %v2213 = vunpack.c.l.b16 %v2181
        %v2214 = vunpack.c.l.b16 %v2182
        %v2215 = vunpack.c.l.b16 %v2183
        %v2216 = vunpack.c.l.b16 %v2184
        %v2217 = vunpack.c.l.b16 %v2185
        %v2218 = vunpack.c.l.b16 %v2186
        %v2219 = vunpack.c.l.b16 %v2187
        %v2220 = vunpack.c.l.b16 %v2188
        %v2221 = vunpack.c.l.b16 %v2189
        %v2222 = vunpack.c.l.b16 %v2190
        %v2223 = vunpack.c.l.b16 %v2191
        %v2224 = vunpack.c.l.b16 %v2192
        %v2225 = vunpack.c.l.b16 %v2193
        %v2226 = vunpack.c.l.b16 %v2194
        %v2227 = vunpack.c.l.b16 %v2195
        %v2228 = vpack.c.b16 %v2213, %v2212
        %v2229 = vpack.c.b16 %v2215, %v2214
        %v2230 = vpack.c.b16 %v2217, %v2216
        %v2231 = vpack.c.b16 %v2219, %v2218
        %v2232 = vpack.c.b16 %v2221, %v2220
        %v2233 = vpack.c.b16 %v2223, %v2222
        %v2234 = vpack.c.b16 %v2225, %v2224
        %v2235 = vpack.c.b16 %v2227, %v2226
        %2244 = vmatprep.subr.bf16.mxu0 0
        %2245 = vmatpush1.bf16.msra.mxu0 %v2228
        %2246 = vmatprep.subr.bf16.mxu0 0
        %2247 = vmatpush1.bf16.msra.mxu0 %v2229
        %2248 = vmatprep.subr.bf16.mxu0 0
        %2249 = vmatpush1.bf16.msra.mxu0 %v2230
        %2250 = vmatprep.subr.bf16.mxu0 0
        %2251 = vmatpush1.bf16.msra.mxu0 %v2231
        %2252 = vmatprep.subr.bf16.mxu0 0
        %2253 = vmatpush1.bf16.msra.mxu0 %v2232
        %2254 = vmatprep.subr.bf16.mxu0 0
        %2255 = vmatpush1.bf16.msra.mxu0 %v2233
        %2256 = vmatprep.subr.bf16.mxu0 0
        %2257 = vmatpush1.bf16.msra.mxu0 %v2234
        %2258 = vmatprep.subr.bf16.mxu0 0
        %2259 = vmatpush1.bf16.msra.mxu0 %v2235
        %2260 = vmatprep.subr.bf16.mxu0 0
        %2261 = vmatpush1.bf16.msra.mxu0 0
        %2262 = vmatprep.subr.bf16.mxu0 0
        %2263 = vmatpush1.bf16.msra.mxu0 0
        %2264 = vmatprep.subr.bf16.mxu0 0
        %2265 = vmatpush1.bf16.msra.mxu0 0
        %2266 = vmatprep.subr.bf16.mxu0 0
        %2267 = vmatpush1.bf16.msra.mxu0 0
        %2268 = vmatprep.subr.bf16.mxu0 0
        %2269 = vmatpush1.bf16.msra.mxu0 0
        %2270 = vmatprep.subr.bf16.mxu0 0
        %2271 = vmatpush1.bf16.msra.mxu0 0
        %2272 = vmatprep.subr.bf16.mxu0 0
        %2273 = vmatpush1.bf16.msra.mxu0 0
        %2274 = vmatprep.subr.bf16.mxu0 0
        %2275 = vmatpush1.bf16.msra.mxu0 0
        %2276 = vmatprep.mubr.bf16.mxu0 0
        %2277 = vmatmul.mubr.bf16.gmra.mrb[0].mxu0 %v1783
        %v2278 = vpop.f32.mrb[0].mxu0
        %v2279 = vadd.f32 0.0, %v2278
        %v2280 = vpop.f32.mrb[0].mxu0
        %v2281 = vpop.f32.mrb[0].mxu0
        %v2282 = vadd.f32 0.0, %v2281
        %v2283 = vpop.f32.mrb[0].mxu0
        %2284 = vmatprep.mubr.bf16.mxu0 0
        %2285 = vmatmul.mubr.bf16.gmra.mrb[0].mxu0 %v1784
        %v2286 = vpop.f32.mrb[0].mxu0
        %v2287 = vadd.f32 0.0, %v2286
        %v2288 = vpop.f32.mrb[0].mxu0
        %v2289 = vpop.f32.mrb[0].mxu0
        %v2290 = vadd.f32 0.0, %v2289
        %v2291 = vpop.f32.mrb[0].mxu0
        %2292 = vmatprep.mubr.bf16.mxu0 0
        %2293 = vmatmul.mubr.bf16.gmra.mrb[0].mxu0 %v1785
        %v2294 = vpop.f32.mrb[0].mxu0
        %v2295 = vadd.f32 0.0, %v2294
        %v2296 = vpop.f32.mrb[0].mxu0
        %v2297 = vpop.f32.mrb[0].mxu0
        %v2298 = vadd.f32 0.0, %v2297
        %v2299 = vpop.f32.mrb[0].mxu0
        %2300 = vmatprep.mubr.bf16.mxu0 0
        %2301 = vmatmul.mubr.bf16.gmra.mrb[0].mxu0 %v1786
        %v2302 = vpop.f32.mrb[0].mxu0
        %v2303 = vadd.f32 0.0, %v2302
        %v2304 = vpop.f32.mrb[0].mxu0
        %v2305 = vpop.f32.mrb[0].mxu0
        %v2306 = vadd.f32 0.0, %v2305
        %v2307 = vpop.f32.mrb[0].mxu0
        %2308 = vmatprep.mubr.bf16.mxu0 0
        %2309 = vmatmul.mubr.bf16.gmra.mrb[0].mxu0 %v1787
        %v2310 = vpop.f32.mrb[0].mxu0
        %v2311 = vadd.f32 0.0, %v2310
        %v2312 = vpop.f32.mrb[0].mxu0
        %v2313 = vpop.f32.mrb[0].mxu0
        %v2314 = vadd.f32 0.0, %v2313
        %v2315 = vpop.f32.mrb[0].mxu0
        %2316 = vmatprep.mubr.bf16.mxu0 0
        %2317 = vmatmul.mubr.bf16.gmra.mrb[0].mxu0 %v1788
        %v2318 = vpop.f32.mrb[0].mxu0
        %v2319 = vadd.f32 0.0, %v2318
        %v2320 = vpop.f32.mrb[0].mxu0
        %v2321 = vpop.f32.mrb[0].mxu0
        %v2322 = vadd.f32 0.0, %v2321
        %v2323 = vpop.f32.mrb[0].mxu0
        %2324 = vmatprep.mubr.bf16.mxu0 0
        %2325 = vmatmul.mubr.bf16.gmra.mrb[0].mxu0 %v1789
        %v2326 = vpop.f32.mrb[0].mxu0
        %v2327 = vadd.f32 0.0, %v2326
        %v2328 = vpop.f32.mrb[0].mxu0
        %v2329 = vpop.f32.mrb[0].mxu0
        %v2330 = vadd.f32 0.0, %v2329
        %v2331 = vpop.f32.mrb[0].mxu0
        %2332 = vmatprep.mubr.bf16.mxu0 0
        %2333 = vmatmul.mubr.bf16.gmra.mrb[0].mxu0 %v1790
        %v2334 = vpop.f32.mrb[0].mxu0
        %v2335 = vadd.f32 0.0, %v2334
        %v2336 = vpop.f32.mrb[0].mxu0
        %v2337 = vpop.f32.mrb[0].mxu0
        %v2338 = vadd.f32 0.0, %v2337
        %v2339 = vpop.f32.mrb[0].mxu0
        %2340 = vdwg.mxu0
        %v2341 = vrot.slane %v2279, 2
        %v2342 = vrot.slane %v2282, 2
        %v2343 = vrot.slane %v2287, 2
        %v2344 = vrot.slane %v2290, 2
        %v2345 = vrot.slane %v2295, 2
        %v2346 = vrot.slane %v2298, 2
        %v2347 = vrot.slane %v2303, 2
        %v2348 = vrot.slane %v2306, 2
        %v2349 = vrot.slane %v2311, 2
        %v2350 = vrot.slane %v2314, 2
        %v2351 = vrot.slane %v2319, 2
        %v2352 = vrot.slane %v2322, 2
        %v2353 = vrot.slane %v2327, 2
        %v2354 = vrot.slane %v2330, 2
        %v2355 = vrot.slane %v2335, 2
        %v2356 = vrot.slane %v2338, 2
        %v2357 = vsel %vm1143, %v2355, %v2356
        %v2358 = vsel %vm1143, %v2354, %v2355
        %v2359 = vsel %vm1143, %v2353, %v2354
        %v2360 = vsel %vm1143, %v2352, %v2353
        %v2361 = vsel %vm1143, %v2351, %v2352
        %v2362 = vsel %vm1143, %v2350, %v2351
        %v2363 = vsel %vm1143, %v2349, %v2350
        %v2364 = vsel %vm1143, %v2348, %v2349
        %v2365 = vsel %vm1143, %v2347, %v2348
        %v2366 = vsel %vm1143, %v2346, %v2347
        %v2367 = vsel %vm1143, %v2345, %v2346
        %v2368 = vsel %vm1143, %v2344, %v2345
        %v2369 = vsel %vm1143, %v2343, %v2344
        %v2370 = vsel %vm1143, %v2342, %v2343
        %v2371 = vsel %vm1143, %v2341, %v2342
        %v2372 = vsel %vm1143, %v2356, %v2341
        %v2373 = vadd.f32 %v2163, %v2371
        %v2374 = vadd.f32 %v2164, %v2370
        %v2375 = vadd.f32 %v2165, %v2369
        %v2376 = vadd.f32 %v2166, %v2368
        %v2377 = vadd.f32 %v2167, %v2367
        %v2378 = vadd.f32 %v2168, %v2366
        %v2379 = vadd.f32 %v2169, %v2365
        %v2380 = vadd.f32 %v2170, %v2364
        %v2381 = vadd.f32 %v2171, %v2363
        %v2382 = vadd.f32 %v2172, %v2362
        %v2383 = vadd.f32 %v2173, %v2361
        %v2384 = vadd.f32 %v2174, %v2360
        %v2385 = vadd.f32 %v2175, %v2359
        %v2386 = vadd.f32 %v2176, %v2358
        %v2387 = vadd.f32 %v2177, %v2357
        %v2388 = vadd.f32 %v2178, %v2372
        %v2389 = vld [vmem:[%s4] sm:$0x1]
        %v2391 = vlaneseq
        %v2392 = vshrl.u32 %v2391, 7
        %v2393 = vsub.s32 0, %v2392
        %v2394 = vrot.slane %v2389, %v2393
        %v2396 = vadd.f32 %v2373, %v2394
        %v2397 = vadd.f32 %v2374, %v2394
        %v2398 = vadd.f32 %v2375, %v2394
        %v2399 = vadd.f32 %v2376, %v2394
        %v2400 = vadd.f32 %v2377, %v2394
        %v2401 = vadd.f32 %v2378, %v2394
        %v2402 = vadd.f32 %v2379, %v2394
        %v2403 = vadd.f32 %v2380, %v2394
        %v2404 = vadd.f32 %v2381, %v2394
        %v2405 = vadd.f32 %v2382, %v2394
        %v2406 = vadd.f32 %v2383, %v2394
        %v2407 = vadd.f32 %v2384, %v2394
        %v2408 = vadd.f32 %v2385, %v2394
        %v2409 = vadd.f32 %v2386, %v2394
        %v2410 = vadd.f32 %v2387, %v2394
        %v2411 = vadd.f32 %v2388, %v2394
        %v2412 = vmax.f32 %v2396, 0.0
        %v2413 = vmax.f32 %v2397, 0.0
        %v2414 = vmax.f32 %v2398, 0.0
        %v2415 = vmax.f32 %v2399, 0.0
        %v2416 = vmax.f32 %v2400, 0.0
        %v2417 = vmax.f32 %v2401, 0.0
        %v2418 = vmax.f32 %v2402, 0.0
        %v2419 = vmax.f32 %v2403, 0.0
        %v2420 = vmax.f32 %v2404, 0.0
        %v2421 = vmax.f32 %v2405, 0.0
        %v2422 = vmax.f32 %v2406, 0.0
        %v2423 = vmax.f32 %v2407, 0.0
        %v2424 = vmax.f32 %v2408, 0.0
        %v2425 = vmax.f32 %v2409, 0.0
        %v2426 = vmax.f32 %v2410, 0.0
        %v2427 = vmax.f32 %v2411, 0.0
        %v2428 = vpack.c.bf16 %v2413, %v2412
        %v2429 = vpack.c.bf16 %v2415, %v2414
        %v2430 = vpack.c.bf16 %v2417, %v2416
        %v2431 = vpack.c.bf16 %v2419, %v2418
        %v2432 = vpack.c.bf16 %v2421, %v2420
        %v2433 = vpack.c.bf16 %v2423, %v2422
        %v2434 = vpack.c.bf16 %v2425, %v2424
        %v2435 = vpack.c.bf16 %v2427, %v2426
        %v2436 = vld [vmem:[%s5] sm:$0xf]
        %v2437 = vld [vmem:[%s5 + $0x4] sm:$0xf]
        %v2438 = vld [vmem:[%s5 + $0x8] sm:$0xf]
        %v2439 = vld [vmem:[%s5 + $0xc] sm:$0xf]
        %v2440 = vld [vmem:[%s5 + $0x10] sm:$0xf]
        %v2441 = vld [vmem:[%s5 + $0x14] sm:$0xf]
        %v2442 = vld [vmem:[%s5 + $0x18] sm:$0xf]
        %v2443 = vld [vmem:[%s5 + $0x1c] sm:$0xf]
        %v2444 = vld [vmem:[%s5 + $0x20] sm:$0xf]
        %v2445 = vld [vmem:[%s5 + $0x24] sm:$0xf]
        %v2446 = vld [vmem:[%s5 + $0x28] sm:$0xf]
        %v2447 = vld [vmem:[%s5 + $0x2c] sm:$0xf]
        %v2448 = vld [vmem:[%s5 + $0x30] sm:$0xf]
        %v2449 = vld [vmem:[%s5 + $0x34] sm:$0xf]
        %v2450 = vld [vmem:[%s5 + $0x38] sm:$0xf]
        %v2451 = vld [vmem:[%s5 + $0x3c] sm:$0xf]
        %v2468 = vunpack.c.l.b16 %v2436
        %v2469 = vunpack.c.l.b16 %v2437
        %v2470 = vunpack.c.l.b16 %v2438
        %v2471 = vunpack.c.l.b16 %v2439
        %v2472 = vunpack.c.l.b16 %v2440
        %v2473 = vunpack.c.l.b16 %v2441
        %v2474 = vunpack.c.l.b16 %v2442
        %v2475 = vunpack.c.l.b16 %v2443
        %v2476 = vunpack.c.l.b16 %v2444
        %v2477 = vunpack.c.l.b16 %v2445
        %v2478 = vunpack.c.l.b16 %v2446
        %v2479 = vunpack.c.l.b16 %v2447
        %v2480 = vunpack.c.l.b16 %v2448
        %v2481 = vunpack.c.l.b16 %v2449
        %v2482 = vunpack.c.l.b16 %v2450
        %v2483 = vunpack.c.l.b16 %v2451
        %v2484 = vpack.c.b16 %v2469, %v2468
        %v2485 = vpack.c.b16 %v2471, %v2470
        %v2486 = vpack.c.b16 %v2473, %v2472
        %v2487 = vpack.c.b16 %v2475, %v2474
        %v2488 = vpack.c.b16 %v2477, %v2476
        %v2489 = vpack.c.b16 %v2479, %v2478
        %v2490 = vpack.c.b16 %v2481, %v2480
        %v2491 = vpack.c.b16 %v2483, %v2482
        %2500 = vmatprep.subr.bf16.mxu0 0
        %2501 = vmatpush1.bf16.msra.mxu0 %v2484
        %2502 = vmatprep.subr.bf16.mxu0 0
        %2503 = vmatpush1.bf16.msra.mxu0 %v2485
        %2504 = vmatprep.subr.bf16.mxu0 0
        %2505 = vmatpush1.bf16.msra.mxu0 %v2486
        %2506 = vmatprep.subr.bf16.mxu0 0
        %2507 = vmatpush1.bf16.msra.mxu0 %v2487
        %2508 = vmatprep.subr.bf16.mxu0 0
        %2509 = vmatpush1.bf16.msra.mxu0 %v2488
        %2510 = vmatprep.subr.bf16.mxu0 0
        %2511 = vmatpush1.bf16.msra.mxu0 %v2489
        %2512 = vmatprep.subr.bf16.mxu0 0
        %2513 = vmatpush1.bf16.msra.mxu0 %v2490
        %2514 = vmatprep.subr.bf16.mxu0 0
        %2515 = vmatpush1.bf16.msra.mxu0 %v2491
        %2516 = vmatprep.subr.bf16.mxu0 0
        %2517 = vmatpush1.bf16.msra.mxu0 0
        %2518 = vmatprep.subr.bf16.mxu0 0
        %2519 = vmatpush1.bf16.msra.mxu0 0
        %2520 = vmatprep.subr.bf16.mxu0 0
        %2521 = vmatpush1.bf16.msra.mxu0 0
        %2522 = vmatprep.subr.bf16.mxu0 0
        %2523 = vmatpush1.bf16.msra.mxu0 0
        %2524 = vmatprep.subr.bf16.mxu0 0
        %2525 = vmatpush1.bf16.msra.mxu0 0
        %2526 = vmatprep.subr.bf16.mxu0 0
        %2527 = vmatpush1.bf16.msra.mxu0 0
        %2528 = vmatprep.subr.bf16.mxu0 0
        %2529 = vmatpush1.bf16.msra.mxu0 0
        %2530 = vmatprep.subr.bf16.mxu0 0
        %2531 = vmatpush1.bf16.msra.mxu0 0
        %2532 = vmatprep.mubr.bf16.mxu0 0
        %2533 = vmatmul.mubr.bf16.gmra.mrb[0].mxu0 %v2428
        %v2534 = vpop.f32.mrb[0].mxu0
        %v2535 = vadd.f32 0.0, %v2534
        %v2536 = vpop.f32.mrb[0].mxu0
        %v2537 = vpop.f32.mrb[0].mxu0
        %v2538 = vpop.f32.mrb[0].mxu0
        %2539 = vmatprep.mubr.bf16.mxu0 0
        %2540 = vmatmul.mubr.bf16.gmra.mrb[0].mxu0 %v2429
        %v2541 = vpop.f32.mrb[0].mxu0
        %v2542 = vadd.f32 0.0, %v2541
        %v2543 = vpop.f32.mrb[0].mxu0
        %v2544 = vpop.f32.mrb[0].mxu0
        %v2545 = vpop.f32.mrb[0].mxu0
        %2546 = vmatprep.mubr.bf16.mxu0 0
        %2547 = vmatmul.mubr.bf16.gmra.mrb[0].mxu0 %v2430
        %v2548 = vpop.f32.mrb[0].mxu0
        %v2549 = vadd.f32 0.0, %v2548
        %v2550 = vpop.f32.mrb[0].mxu0
        %v2551 = vpop.f32.mrb[0].mxu0
        %v2552 = vpop.f32.mrb[0].mxu0
        %2553 = vmatprep.mubr.bf16.mxu0 0
        %2554 = vmatmul.mubr.bf16.gmra.mrb[0].mxu0 %v2431
        %v2555 = vpop.f32.mrb[0].mxu0
        %v2556 = vadd.f32 0.0, %v2555
        %v2557 = vpop.f32.mrb[0].mxu0
        %v2558 = vpop.f32.mrb[0].mxu0
        %v2559 = vpop.f32.mrb[0].mxu0
        %2560 = vmatprep.mubr.bf16.mxu0 0
        %2561 = vmatmul.mubr.bf16.gmra.mrb[0].mxu0 %v2432
        %v2562 = vpop.f32.mrb[0].mxu0
        %v2563 = vadd.f32 0.0, %v2562
        %v2564 = vpop.f32.mrb[0].mxu0
        %v2565 = vpop.f32.mrb[0].mxu0
        %v2566 = vpop.f32.mrb[0].mxu0
        %2567 = vmatprep.mubr.bf16.mxu0 0
        %2568 = vmatmul.mubr.bf16.gmra.mrb[0].mxu0 %v2433
        %v2569 = vpop.f32.mrb[0].mxu0
        %v2570 = vadd.f32 0.0, %v2569
        %v2571 = vpop.f32.mrb[0].mxu0
        %v2572 = vpop.f32.mrb[0].mxu0
        %v2573 = vpop.f32.mrb[0].mxu0
        %2574 = vmatprep.mubr.bf16.mxu0 0
        %2575 = vmatmul.mubr.bf16.gmra.mrb[0].mxu0 %v2434
        %v2576 = vpop.f32.mrb[0].mxu0
        %v2577 = vadd.f32 0.0, %v2576
        %v2578 = vpop.f32.mrb[0].mxu0
        %v2579 = vpop.f32.mrb[0].mxu0
        %v2580 = vpop.f32.mrb[0].mxu0
        %2581 = vmatprep.mubr.bf16.mxu0 0
        %2582 = vmatmul.mubr.bf16.gmra.mrb[0].mxu0 %v2435
        %v2583 = vpop.f32.mrb[0].mxu0
        %v2584 = vadd.f32 0.0, %v2583
        %v2585 = vpop.f32.mrb[0].mxu0
        %v2586 = vpop.f32.mrb[0].mxu0
        %v2587 = vpop.f32.mrb[0].mxu0
        %2588 = vdwg.mxu0
        %v2589 = vld [vmem:[%s277] sm:$0xff]
        %v2590 = vld [vmem:[%s277 + $0x8] sm:$0xff]
        %v2591 = vld [vmem:[%s277 + $0x10] sm:$0xff]
        %v2592 = vld [vmem:[%s277 + $0x18] sm:$0xff]
        %v2593 = vld [vmem:[%s277 + $0x20] sm:$0xff]
        %v2594 = vld [vmem:[%s277 + $0x28] sm:$0xff]
        %v2595 = vld [vmem:[%s277 + $0x30] sm:$0xff]
        %v2596 = vld [vmem:[%s277 + $0x38] sm:$0xff]
        %v2597 = vld [vmem:[%s6] sm:$0x1]
        %v2599 = vlaneseq
        %v2600 = vshrl.u32 %v2599, 7
        %v2601 = vsub.s32 0, %v2600
        %v2602 = vrot.slane %v2597, %v2601
        %v2604 = vadd.f32 %v2535, %v2602
        %v2605 = vadd.f32 %v2542, %v2602
        %v2606 = vadd.f32 %v2549, %v2602
        %v2607 = vadd.f32 %v2556, %v2602
        %v2608 = vadd.f32 %v2563, %v2602
        %v2609 = vadd.f32 %v2570, %v2602
        %v2610 = vadd.f32 %v2577, %v2602
        %v2611 = vadd.f32 %v2584, %v2602
        %v2612 = vadd.f32 %v2604, %v2589
        %v2613 = vadd.f32 %v2605, %v2590
        %v2614 = vadd.f32 %v2606, %v2591
        %v2615 = vadd.f32 %v2607, %v2592
        %v2616 = vadd.f32 %v2608, %v2593
        %v2617 = vadd.f32 %v2609, %v2594
        %v2618 = vadd.f32 %v2610, %v2595
        %v2619 = vadd.f32 %v2611, %v2596
        %v2620 = vmax.f32 %v2612, 0.0
        %v2621 = vmax.f32 %v2613, 0.0
        %v2622 = vmax.f32 %v2614, 0.0
        %v2623 = vmax.f32 %v2615, 0.0
        %v2624 = vmax.f32 %v2616, 0.0
        %v2625 = vmax.f32 %v2617, 0.0
        %v2626 = vmax.f32 %v2618, 0.0
        %v2627 = vmax.f32 %v2619, 0.0
        %2628 = vst.msk [vmem:[%s311] sm:$0xff] %vm340, %v2620
        %2629 = vst.msk [vmem:[%s311 + $0x8] sm:$0xff] %vm340, %v2621
        %2630 = vst.msk [vmem:[%s311 + $0x10] sm:$0xff] %vm340, %v2622
        %2631 = vst.msk [vmem:[%s311 + $0x18] sm:$0xff] %vm340, %v2623
        %2632 = vst.msk [vmem:[%s311 + $0x20] sm:$0xff] %vm340, %v2624
        %2633 = vst.msk [vmem:[%s311 + $0x28] sm:$0xff] %vm340, %v2625
        %2634 = vst.msk [vmem:[%s311 + $0x30] sm:$0xff] %vm340, %v2626
        %2635 = vst.msk [vmem:[%s311 + $0x38] sm:$0xff] %vm340, %v2627
        %s2636 = sand.u32 %s185, 1
        %s2637 = scalar_lea.sflag [#allocation5], %s2636
        %s2638 = sand.u32 %s185, 1
        %s2639 = smul.addr %s2638, 64
        %s2640 = scalar_lea.vmem [#allocation8], %s2639
        // Predicated region
        $region57: #{tpu_custom_call.1} parent=47 // pred_check
          %p2641 = pneg %p195
        $region58: #{tpu_custom_call.1} parent=47 // pred_check_branch
          %2643 = sbr.rel (%p2641) target = $region60
        $region59: #{tpu_custom_call.1} parent=47 // pred_region
          %s2645 = ssub.s32 1024, 1024
          %2646 = vsyncadd %s2637, %s2645
          %s2647 = smul.addr %s25, 8
          %s2648 = smul.addr %s2647, 128
          %s2649 = scalar_lea.hbm %s7, %s2648
          %s2650 = sshll.u32 %s2640, 4
          %s2651 = int_to_ptr.vmem [resolvable:$true] %s2650
          %2656 = dma.vmem_to_hbm [thread:$0]  %s2651, 1024, %s2649, %s2637, 128, 128, 8
        $region60: #{tpu_custom_call.1} parent=47 // pred_fallthru
          _
      $region48: #{tpu_custom_call.1} parent=5 // pred_fallthru
        _
      %p2657 = scmp.le.s32.totalorder 2, %s20
      // Predicated region
      $region61: #{tpu_custom_call.1} parent=5 // pred_check
        %p2658 = pneg %p2657
      $region62: #{tpu_custom_call.1} parent=5 // pred_check_branch
        %2660 = sbr.rel (%p2658) target = $region64
      $region63: #{tpu_custom_call.1} parent=5 // pred_region
        %s2661 = ssub.s32 %s20, 2
        // Predicated region
        $region65: #{tpu_custom_call.1} parent=63 // pred_check
          %p2662 = pneg %p201
        $region66: #{tpu_custom_call.1} parent=63 // pred_check_branch
          %2664 = sbr.rel (%p2662) target = $region68
        $region67: #{tpu_custom_call.1} parent=63 // pred_region
          %s2665 = sand.u32 %s186, 1
          %s2666 = scalar_lea.sflag [#allocation5], %s2665
          %s2667 = sand.u32 %s186, 1
          %s2668 = smul.addr %s2667, 64
          %s2669 = scalar_lea.vmem [#allocation8], %s2668
          %2670 = dma.done %s2666, 1024
        $region68: #{tpu_custom_call.1} parent=63 // pred_fallthru
          _
      $region64: #{tpu_custom_call.1} parent=5 // pred_fallthru
        _
    $region6: #{tpu_custom_call.1} parent=1 // loop_footer
      %s24 = sadd.s32 1, %s20
    $region7: #{tpu_custom_call.1} parent=1 // loop_footer_branch
      %19 = sbr.rel target = $region3
    $region8: #{tpu_custom_call.1} parent=1 // loop_exit
      _
    %2671 = vsyncpa [#allocation4], 1
    %s2672 = scalar_lea.sflag [#allocation4], 1
    %2673 = vsyncpa %s2672, 1
    %2674 = vsyncpa [#allocation7], 1
    %2675 = vsyncpa [#allocation5], 1
    %s2676 = scalar_lea.sflag [#allocation5], 1
    %2677 = vsyncpa %s2676, 1

</llo_original>
